<compile_context>
chip_gen: v7x
topology: tpu7x:2x2x1
jax: 0.10.0
libtpu: 0.0.40
codegen_flags: <defaults>
</compile_context>

<pallas_src>
import jax
import jax.numpy as jnp
from jax import lax
from jax.experimental import pallas as pl
from jax.experimental.pallas import tpu as pltpu


def _round_up(x, m):
    return (x + m - 1) // m * m


def _full_spec(shape):
    n = len(shape)
    return pl.BlockSpec(shape, lambda: (0,) * n)


# ----------------------------------------------------------------------------
# Fused kernel: 4 stacked GRU layers + Linear head, whole sequence per call.
# Gate semantics follow PyTorch nn.GRU (order r, z, n; reset gate applied to
# W_hn h + b_hn; h0 = 0).  Gate blocks are padded so each gate starts on a
# 128-lane boundary -> all gate slices are lane-aligned (no relayout copies).
# ----------------------------------------------------------------------------
def fused_gru_kernel(*refs):
    """refs layout:
      [0]              x        (T, Bp, Ip)   padded, time-major
      [1+4l .. 4+4l]   layer l: w_ih (Kp,3Hp), w_hh (Hp,3Hp), b_ih (1,3Hp), b_hh (1,3Hp)
      [17], [18]       w_fc (Hp, Op), b_fc (1, Op)
      [19]             out      (T, Bp, Op)
      [20], [21]       scratch: gi (T, Bp, 3Hp), seq (T, Bp, Hp)
    """
    x_ref = refs[0]
    layer_refs = [refs[1 + 4 * l: 1 + 4 * (l + 1)] for l in range(4)]
    wfc_ref, bfc_ref = refs[17], refs[18]
    out_ref = refs[19]
    gi_ref, seq_ref = refs[20], refs[21]

    T, Bp, Hp = seq_ref.shape

    for layer in range(4):
        w_ih, w_hh, b_ih, b_hh = layer_refs[layer]

        # ---- hoisted input projection: ONE (T*Bp, K) @ (K, 3Hp) MXU GEMM ----
        if layer == 0:
            x_all = x_ref[...].reshape(T * Bp, x_ref.shape[-1])
        else:
            x_all = seq_ref[...].reshape(T * Bp, Hp)   # previous layer, VMEM-resident
        gi_ref[...] = (
            jnp.dot(x_all, w_ih[...], preferred_element_type=jnp.float32)
            + b_ih[...]
        ).reshape(T, Bp, 3 * Hp)

        # ---- sequential recurrence over time, all in VMEM, h carried in vregs ----
        def step(t, h_prev):
            gi = gi_ref[t]                                          # (Bp, 3Hp)
            gh = (jnp.dot(h_prev, w_hh[...],
                          preferred_element_type=jnp.float32) + b_hh[...])
            # gate blocks start at 128-lane boundaries -> free slices
            r = jax.nn.sigmoid(gi[:, 0:Hp] + gh[:, 0:Hp])
            z = jax.nn.sigmoid(gi[:, Hp:2 * Hp] + gh[:, Hp:2 * Hp])
            n = jnp.tanh(gi[:, 2 * Hp:] + r * gh[:, 2 * Hp:])
            h_new = (1.0 - z) * n + z * h_prev
            seq_ref[t] = h_new                                      # lane-dense (8,128) store
            return h_new

        lax.fori_loop(0, T, step, jnp.zeros((Bp, Hp), jnp.float32))

    # ---- fused Linear head: one (T*Bp, Hp) @ (Hp, Op) GEMM, single writeback ----
    y = (jnp.dot(seq_ref[...].reshape(T * Bp, Hp), wfc_ref[...],
                 preferred_element_type=jnp.float32) + bfc_ref[...])
    out_ref[...] = y.reshape(out_ref.shape)


# ----------------------------------------------------------------------------
# Weight/bias padding helpers (PyTorch layout -> lane-aligned transposed tiles)
# ----------------------------------------------------------------------------
def _pad_gate_matrix(w, k_pad, h_pad):
    """PyTorch (3H, K) gate-stacked weight -> (k_pad, 3*h_pad), transposed,
    each gate block starting on a 128-lane boundary; padding is zero."""
    three_h, k = w.shape
    h = three_h // 3
    wt = jnp.transpose(w).astype(jnp.float32)                 # (K, 3H)
    out = jnp.zeros((k_pad, 3 * h_pad), jnp.float32)
    for g in range(3):
        out = out.at[:k, g * h_pad:g * h_pad + h].set(wt[:, g * h:(g + 1) * h])
    return out


def _pad_gate_bias(b, h_pad):
    h = b.shape[0] // 3
    out = jnp.zeros((1, 3 * h_pad), jnp.float32)
    for g in range(3):
        out = out.at[0, g * h_pad:g * h_pad + h].set(b[g * h:(g + 1) * h].astype(jnp.float32))
    return out


# ----------------------------------------------------------------------------
# Full model forward (GRUModel.forward): 4 stacked GRUs + Linear, one kernel.
# ----------------------------------------------------------------------------
def gru_model_forward(x_btf, params):
    """x_btf: (B, T, input_size), batch_first like PyTorch. Returns (B, T, output_size)."""
    B, T, I = x_btf.shape
    H = params["gru1"]["w_hh"].shape[1]
    O = params["fc"]["w"].shape[0]

    Bp = _round_up(B, 8)      # sublane multiple (f32)
    Ip = _round_up(I, 128)    # lane multiples
    Hp = _round_up(H, 128)
    Op = _round_up(O, 128)

    # time-major, zero-padded input (padded rows/cols stay zero through the GRU)
    x_tbf = jnp.transpose(x_btf, (1, 0, 2)).astype(jnp.float32)
    x_pad = jnp.zeros((T, Bp, Ip), jnp.float32).at[:, :B, :I].set(x_tbf)

    # TODO(synk): optional bf16 weight cast (v6e/v7x MXU) left off to keep exact
    # f32 parity with the PyTorch module.
    args = [x_pad]
    in_dims = [Ip, Hp, Hp, Hp]
    for li, name in enumerate(("gru1", "gru2", "gru3", "gru4")):
        p = params[name]
        args += [
            _pad_gate_matrix(p["w_ih"], in_dims[li], Hp),
            _pad_gate_matrix(p["w_hh"], Hp, Hp),
            _pad_gate_bias(p["b_ih"], Hp),
            _pad_gate_bias(p["b_hh"], Hp),
        ]
    w_fc = jnp.zeros((Hp, Op), jnp.float32).at[:H, :O].set(
        jnp.transpose(params["fc"]["w"]).astype(jnp.float32))
    b_fc = jnp.zeros((1, Op), jnp.float32).at[0, :O].set(
        params["fc"]["b"].astype(jnp.float32))
    args += [w_fc, b_fc]

    out_pad = pl.pallas_call(
        fused_gru_kernel,
        out_shape=jax.ShapeDtypeStruct((T, Bp, Op), jnp.float32),
        in_specs=[_full_spec(a.shape) for a in args],
        out_specs=_full_spec((T, Bp, Op)),
        scratch_shapes=[
            pltpu.VMEM((T, Bp, 3 * Hp), jnp.float32),   # per-layer input projection
            pltpu.VMEM((T, Bp, Hp), jnp.float32),       # layer-output sequence (VMEM-resident)
        ],
    )(*args)

    # strip padding, back to batch-first
    return jnp.transpose(out_pad[:, :B, :O], (1, 0, 2))


# ----------------------------------------------------------------------------
# Deterministic parameter init (PyTorch-style U(-1/sqrt(H), 1/sqrt(H))).
# ----------------------------------------------------------------------------
def init_params(key, input_size, hidden_size, output_size):
    params = {}
    bound = 1.0 / (hidden_size ** 0.5)
    in_dims = [input_size, hidden_size, hidden_size, hidden_size]
    for i, name in enumerate(("gru1", "gru2", "gru3", "gru4")):
        key, k1, k2, k3, k4 = jax.random.split(key, 5)
        params[name] = {
            "w_ih": jax.random.uniform(k1, (3 * hidden_size, in_dims[i]),
                                       jnp.float32, -bound, bound),
            "w_hh": jax.random.uniform(k2, (3 * hidden_size, hidden_size),
                                       jnp.float32, -bound, bound),
            "b_ih": jax.random.uniform(k3, (3 * hidden_size,),
                                       jnp.float32, -bound, bound),
            "b_hh": jax.random.uniform(k4, (3 * hidden_size,),
                                       jnp.float32, -bound, bound),
        }
    key, k1, k2 = jax.random.split(key, 3)
    fc_bound = 1.0 / (hidden_size ** 0.5)
    params["fc"] = {
        "w": jax.random.uniform(k1, (output_size, hidden_size),
                                jnp.float32, -fc_bound, fc_bound),
        "b": jax.random.uniform(k2, (output_size,),
                                jnp.float32, -fc_bound, fc_bound),
    }
    return params


# ----------------------------------------------------------------------------
# Pure-JAX reference (same math) to validate the Pallas path.
# ----------------------------------------------------------------------------
def _ref_gru_layer(x_btf, w_ih, w_hh, b_ih, b_hh):
    B, T, _ = x_btf.shape
    H = w_hh.shape[1]
    h = jnp.zeros((B, H), jnp.float32)

    def step(h, x_t):
        gi = x_t @ w_ih.T + b_ih
        gh = h @ w_hh.T + b_hh
        i_r, i_z, i_n = jnp.split(gi, 3, axis=-1)
        h_r, h_z, h_n = jnp.split(gh, 3, axis=-1)
        r = jax.nn.sigmoid(i_r + h_r)
        z = jax.nn.sigmoid(i_z + h_z)
        n = jnp.tanh(i_n + r * h_n)
        h_new = (1.0 - z) * n + z * h
        return h_new, h_new

    _, ys = jax.lax.scan(step, h, jnp.transpose(x_btf, (1, 0, 2)))
    return jnp.transpose(ys, (1, 0, 2))


def _ref_forward(x, params):
    out = x
    for name in ("gru1", "gru2", "gru3", "gru4"):
        p = params[name]
        out = _ref_gru_layer(out, p["w_ih"], p["w_hh"], p["b_ih"], p["b_hh"])
    return out @ params["fc"]["w"].T + params["fc"]["b"]


if __name__ == "__main__":
    B, T = 2, 8
    input_size, hidden_size, output_size = 16, 32, 16

    key = jax.random.PRNGKey(0)
    key, xk = jax.random.split(key)
    x = jax.random.normal(xk, (B, T, input_size), jnp.float32)
    params = init_params(key, input_size, hidden_size, output_size)

    out = gru_model_forward(x, params)
    out = jax.block_until_ready(out)
    assert out.shape == (B, T, output_size), out.shape

    ref = jax.block_until_ready(_ref_forward(x, params))
    err = float(jnp.max(jnp.abs(out - ref)))
    assert jnp.allclose(out, ref, atol=1e-4, rtol=1e-4), err

    print("KERNEL_OK")
</pallas_src>

<mosaic_0001>
module attributes {stable_mosaic.version = 11 : i64} {
  func.func @fused_gru_kernel(%arg0: memref<8x8x128xf32, #tpu.memory_space<vmem>>, %arg1: memref<128x384xf32, #tpu.memory_space<vmem>>, %arg2: memref<128x384xf32, #tpu.memory_space<vmem>>, %arg3: memref<1x384xf32, #tpu.memory_space<vmem>>, %arg4: memref<1x384xf32, #tpu.memory_space<vmem>>, %arg5: memref<128x384xf32, #tpu.memory_space<vmem>>, %arg6: memref<128x384xf32, #tpu.memory_space<vmem>>, %arg7: memref<1x384xf32, #tpu.memory_space<vmem>>, %arg8: memref<1x384xf32, #tpu.memory_space<vmem>>, %arg9: memref<128x384xf32, #tpu.memory_space<vmem>>, %arg10: memref<128x384xf32, #tpu.memory_space<vmem>>, %arg11: memref<1x384xf32, #tpu.memory_space<vmem>>, %arg12: memref<1x384xf32, #tpu.memory_space<vmem>>, %arg13: memref<128x384xf32, #tpu.memory_space<vmem>>, %arg14: memref<128x384xf32, #tpu.memory_space<vmem>>, %arg15: memref<1x384xf32, #tpu.memory_space<vmem>>, %arg16: memref<1x384xf32, #tpu.memory_space<vmem>>, %arg17: memref<128x128xf32, #tpu.memory_space<vmem>>, %arg18: memref<1x128xf32, #tpu.memory_space<vmem>>, %arg19: memref<8x8x128xf32, #tpu.memory_space<vmem>>, %arg20: memref<8x8x384xf32, #tpu.memory_space<vmem>>, %arg21: memref<8x8x128xf32, #tpu.memory_space<vmem>>) attributes {dimension_semantics = [], scalar_prefetch = 0 : i64, scratch_operands = 2 : i64, tpu.core_type = #tpu.core_type<tc>} {
    %c0 = arith.constant 0 : index
    %c0_0 = arith.constant 0 : index
    %c0_1 = arith.constant 0 : index
    %0 = vector.load %arg0[%c0, %c0_0, %c0_1] : memref<8x8x128xf32, #tpu.memory_space<vmem>>, vector<8x8x128xf32>
    %1 = vector.shape_cast %0 : vector<8x8x128xf32> to vector<64x128xf32>
    %c0_2 = arith.constant 0 : index
    %c0_3 = arith.constant 0 : index
    %2 = vector.load %arg1[%c0_2, %c0_3] : memref<128x384xf32, #tpu.memory_space<vmem>>, vector<128x384xf32>
    %cst = arith.constant dense<0.000000e+00> : vector<64x384xf32>
    %3 = tpu.matmul %1, %2, %cst {dimension_numbers = #tpu.dot_dimension_numbers<[1], [0], [0], [1], [0, 0, 1, 1], [], []>} : vector<64x128xf32>, vector<128x384xf32>, vector<64x384xf32> -> vector<64x384xf32>
    %c0_4 = arith.constant 0 : index
    %c0_5 = arith.constant 0 : index
    %4 = vector.load %arg3[%c0_4, %c0_5] : memref<1x384xf32, #tpu.memory_space<vmem>>, vector<1x384xf32>
    %5 = vector.broadcast %4 : vector<1x384xf32> to vector<64x384xf32>
    %6 = arith.addf %3, %5 : vector<64x384xf32>
    %7 = vector.shape_cast %6 : vector<64x384xf32> to vector<8x8x384xf32>
    %c0_6 = arith.constant 0 : index
    %c0_7 = arith.constant 0 : index
    %c0_8 = arith.constant 0 : index
    %8 = vector.load %arg20[%c0_6, %c0_7, %c0_8] : memref<8x8x384xf32, #tpu.memory_space<vmem>>, vector<8x8x384xf32>
    tpu.vector_store %arg20[%c0_6, %c0_7, %c0_8], %7 {strides = array<i32>} : memref<8x8x384xf32, #tpu.memory_space<vmem>>, vector<8x8x384xf32>,
    %cst_9 = arith.constant 0.000000e+00 : f32
    %9 = vector.broadcast %cst_9 : f32 to vector<8x128xf32>
    %c0_i32 = arith.constant 0 : i32
    %c8_i32 = arith.constant 8 : i32
    %10 = arith.addi %c0_i32, %c8_i32 : i32
    %c1_i32 = arith.constant 1 : i32
    %11 = scf.for %arg22 = %c0_i32 to %10 step %c1_i32 iter_args(%arg23 = %9) -> (vector<8x128xf32>)  : i32 {
      %57 = arith.index_cast %arg22 : i32 to index
      %c0_70 = arith.constant 0 : index
      %c0_71 = arith.constant 0 : index
      %58 = vector.load %arg20[%57, %c0_70, %c0_71] : memref<8x8x384xf32, #tpu.memory_space<vmem>>, vector<1x8x384xf32>
      %59 = vector.shape_cast %58 : vector<1x8x384xf32> to vector<8x384xf32>
      %c0_72 = arith.constant 0 : index
      %c0_73 = arith.constant 0 : index
      %60 = vector.load %arg2[%c0_72, %c0_73] : memref<128x384xf32, #tpu.memory_space<vmem>>, vector<128x384xf32>
      %cst_74 = arith.constant dense<0.000000e+00> : vector<8x384xf32>
      %61 = tpu.matmul %arg23, %60, %cst_74 {dimension_numbers = #tpu.dot_dimension_numbers<[1], [0], [0], [1], [0, 0, 1, 1], [], []>} : vector<8x128xf32>, vector<128x384xf32>, vector<8x384xf32> -> vector<8x384xf32>
      %c0_75 = arith.constant 0 : index
      %c0_76 = arith.constant 0 : index
      %62 = vector.load %arg4[%c0_75, %c0_76] : memref<1x384xf32, #tpu.memory_space<vmem>>, vector<1x384xf32>
      %63 = vector.broadcast %62 : vector<1x384xf32> to vector<8x384xf32>
      %64 = arith.addf %61, %63 : vector<8x384xf32>
      %65 = vector.extract_strided_slice %59 {offsets = [0, 0], sizes = [8, 128], strides = [1, 1]} : vector<8x384xf32> to vector<8x128xf32>
      %66 = vector.extract_strided_slice %64 {offsets = [0, 0], sizes = [8, 128], strides = [1, 1]} : vector<8x384xf32> to vector<8x128xf32>
      %67 = arith.addf %65, %66 : vector<8x128xf32>
      %68 = arith.negf %67 : vector<8x128xf32>
      %69 = math.exp %68 : vector<8x128xf32>
      %cst_77 = arith.constant 1.000000e+00 : f32
      %70 = vector.broadcast %cst_77 : f32 to vector<8x128xf32>
      %71 = arith.addf %70, %69 : vector<8x128xf32>
      %72 = arith.divf %70, %71 : vector<8x128xf32>
      %73 = vector.extract_strided_slice %59 {offsets = [0, 128], sizes = [8, 128], strides = [1, 1]} : vector<8x384xf32> to vector<8x128xf32>
      %74 = vector.extract_strided_slice %64 {offsets = [0, 128], sizes = [8, 128], strides = [1, 1]} : vector<8x384xf32> to vector<8x128xf32>
      %75 = arith.addf %73, %74 : vector<8x128xf32>
      %76 = arith.negf %75 : vector<8x128xf32>
      %77 = math.exp %76 : vector<8x128xf32>
      %cst_78 = arith.constant 1.000000e+00 : f32
      %78 = vector.broadcast %cst_78 : f32 to vector<8x128xf32>
      %79 = arith.addf %78, %77 : vector<8x128xf32>
      %80 = arith.divf %78, %79 : vector<8x128xf32>
      %81 = vector.extract_strided_slice %59 {offsets = [0, 256], sizes = [8, 128], strides = [1, 1]} : vector<8x384xf32> to vector<8x128xf32>
      %82 = vector.extract_strided_slice %64 {offsets = [0, 256], sizes = [8, 128], strides = [1, 1]} : vector<8x384xf32> to vector<8x128xf32>
      %83 = arith.mulf %72, %82 : vector<8x128xf32>
      %84 = arith.addf %81, %83 : vector<8x128xf32>
      %85 = math.tanh %84 : vector<8x128xf32>
      %cst_79 = arith.constant 1.000000e+00 : f32
      %86 = vector.broadcast %cst_79 : f32 to vector<8x128xf32>
      %87 = arith.subf %86, %80 : vector<8x128xf32>
      %88 = arith.mulf %87, %85 : vector<8x128xf32>
      %89 = arith.mulf %80, %arg23 : vector<8x128xf32>
      %90 = arith.addf %88, %89 : vector<8x128xf32>
      %91 = arith.index_cast %arg22 : i32 to index
      %c0_80 = arith.constant 0 : index
      %c0_81 = arith.constant 0 : index
      %92 = vector.load %arg21[%91, %c0_80, %c0_81] : memref<8x8x128xf32, #tpu.memory_space<vmem>>, vector<1x8x128xf32>
      %93 = vector.shape_cast %92 : vector<1x8x128xf32> to vector<8x128xf32>
      %94 = vector.shape_cast %90 : vector<8x128xf32> to vector<1x8x128xf32>
      tpu.vector_store %arg21[%91, %c0_80, %c0_81], %94 {strides = array<i32>} : memref<8x8x128xf32, #tpu.memory_space<vmem>>, vector<1x8x128xf32>,
      scf.yield %90 : vector<8x128xf32>
    }
    %c8_i32_10 = arith.constant 8 : i32
    %c0_11 = arith.constant 0 : index
    %c0_12 = arith.constant 0 : index
    %c0_13 = arith.constant 0 : index
    %12 = vector.load %arg21[%c0_11, %c0_12, %c0_13] : memref<8x8x128xf32, #tpu.memory_space<vmem>>, vector<8x8x128xf32>
    %13 = vector.shape_cast %12 : vector<8x8x128xf32> to vector<64x128xf32>
    %c0_14 = arith.constant 0 : index
    %c0_15 = arith.constant 0 : index
    %14 = vector.load %arg5[%c0_14, %c0_15] : memref<128x384xf32, #tpu.memory_space<vmem>>, vector<128x384xf32>
    %cst_16 = arith.constant dense<0.000000e+00> : vector<64x384xf32>
    %15 = tpu.matmul %13, %14, %cst_16 {dimension_numbers = #tpu.dot_dimension_numbers<[1], [0], [0], [1], [0, 0, 1, 1], [], []>} : vector<64x128xf32>, vector<128x384xf32>, vector<64x384xf32> -> vector<64x384xf32>
    %c0_17 = arith.constant 0 : index
    %c0_18 = arith.constant 0 : index
    %16 = vector.load %arg7[%c0_17, %c0_18] : memref<1x384xf32, #tpu.memory_space<vmem>>, vector<1x384xf32>
    %17 = vector.broadcast %16 : vector<1x384xf32> to vector<64x384xf32>
    %18 = arith.addf %15, %17 : vector<64x384xf32>
    %19 = vector.shape_cast %18 : vector<64x384xf32> to vector<8x8x384xf32>
    %c0_19 = arith.constant 0 : index
    %c0_20 = arith.constant 0 : index
    %c0_21 = arith.constant 0 : index
    %20 = vector.load %arg20[%c0_19, %c0_20, %c0_21] : memref<8x8x384xf32, #tpu.memory_space<vmem>>, vector<8x8x384xf32>
    tpu.vector_store %arg20[%c0_19, %c0_20, %c0_21], %19 {strides = array<i32>} : memref<8x8x384xf32, #tpu.memory_space<vmem>>, vector<8x8x384xf32>,
    %cst_22 = arith.constant 0.000000e+00 : f32
    %21 = vector.broadcast %cst_22 : f32 to vector<8x128xf32>
    %c0_i32_23 = arith.constant 0 : i32
    %c8_i32_24 = arith.constant 8 : i32
    %22 = arith.addi %c0_i32_23, %c8_i32_24 : i32
    %c1_i32_25 = arith.constant 1 : i32
    %23 = scf.for %arg22 = %c0_i32_23 to %22 step %c1_i32_25 iter_args(%arg23 = %21) -> (vector<8x128xf32>)  : i32 {
      %57 = arith.index_cast %arg22 : i32 to index
      %c0_70 = arith.constant 0 : index
      %c0_71 = arith.constant 0 : index
      %58 = vector.load %arg20[%57, %c0_70, %c0_71] : memref<8x8x384xf32, #tpu.memory_space<vmem>>, vector<1x8x384xf32>
      %59 = vector.shape_cast %58 : vector<1x8x384xf32> to vector<8x384xf32>
      %c0_72 = arith.constant 0 : index
      %c0_73 = arith.constant 0 : index
      %60 = vector.load %arg6[%c0_72, %c0_73] : memref<128x384xf32, #tpu.memory_space<vmem>>, vector<128x384xf32>
      %cst_74 = arith.constant dense<0.000000e+00> : vector<8x384xf32>
      %61 = tpu.matmul %arg23, %60, %cst_74 {dimension_numbers = #tpu.dot_dimension_numbers<[1], [0], [0], [1], [0, 0, 1, 1], [], []>} : vector<8x128xf32>, vector<128x384xf32>, vector<8x384xf32> -> vector<8x384xf32>
      %c0_75 = arith.constant 0 : index
      %c0_76 = arith.constant 0 : index
      %62 = vector.load %arg8[%c0_75, %c0_76] : memref<1x384xf32, #tpu.memory_space<vmem>>, vector<1x384xf32>
      %63 = vector.broadcast %62 : vector<1x384xf32> to vector<8x384xf32>
      %64 = arith.addf %61, %63 : vector<8x384xf32>
      %65 = vector.extract_strided_slice %59 {offsets = [0, 0], sizes = [8, 128], strides = [1, 1]} : vector<8x384xf32> to vector<8x128xf32>
      %66 = vector.extract_strided_slice %64 {offsets = [0, 0], sizes = [8, 128], strides = [1, 1]} : vector<8x384xf32> to vector<8x128xf32>
      %67 = arith.addf %65, %66 : vector<8x128xf32>
      %68 = arith.negf %67 : vector<8x128xf32>
      %69 = math.exp %68 : vector<8x128xf32>
      %cst_77 = arith.constant 1.000000e+00 : f32
      %70 = vector.broadcast %cst_77 : f32 to vector<8x128xf32>
      %71 = arith.addf %70, %69 : vector<8x128xf32>
      %72 = arith.divf %70, %71 : vector<8x128xf32>
      %73 = vector.extract_strided_slice %59 {offsets = [0, 128], sizes = [8, 128], strides = [1, 1]} : vector<8x384xf32> to vector<8x128xf32>
      %74 = vector.extract_strided_slice %64 {offsets = [0, 128], sizes = [8, 128], strides = [1, 1]} : vector<8x384xf32> to vector<8x128xf32>
      %75 = arith.addf %73, %74 : vector<8x128xf32>
      %76 = arith.negf %75 : vector<8x128xf32>
      %77 = math.exp %76 : vector<8x128xf32>
      %cst_78 = arith.constant 1.000000e+00 : f32
      %78 = vector.broadcast %cst_78 : f32 to vector<8x128xf32>
      %79 = arith.addf %78, %77 : vector<8x128xf32>
      %80 = arith.divf %78, %79 : vector<8x128xf32>
      %81 = vector.extract_strided_slice %59 {offsets = [0, 256], sizes = [8, 128], strides = [1, 1]} : vector<8x384xf32> to vector<8x128xf32>
      %82 = vector.extract_strided_slice %64 {offsets = [0, 256], sizes = [8, 128], strides = [1, 1]} : vector<8x384xf32> to vector<8x128xf32>
      %83 = arith.mulf %72, %82 : vector<8x128xf32>
      %84 = arith.addf %81, %83 : vector<8x128xf32>
      %85 = math.tanh %84 : vector<8x128xf32>
      %cst_79 = arith.constant 1.000000e+00 : f32
      %86 = vector.broadcast %cst_79 : f32 to vector<8x128xf32>
      %87 = arith.subf %86, %80 : vector<8x128xf32>
      %88 = arith.mulf %87, %85 : vector<8x128xf32>
      %89 = arith.mulf %80, %arg23 : vector<8x128xf32>
      %90 = arith.addf %88, %89 : vector<8x128xf32>
      %91 = arith.index_cast %arg22 : i32 to index
      %c0_80 = arith.constant 0 : index
      %c0_81 = arith.constant 0 : index
      %92 = vector.load %arg21[%91, %c0_80, %c0_81] : memref<8x8x128xf32, #tpu.memory_space<vmem>>, vector<1x8x128xf32>
      %93 = vector.shape_cast %92 : vector<1x8x128xf32> to vector<8x128xf32>
      %94 = vector.shape_cast %90 : vector<8x128xf32> to vector<1x8x128xf32>
      tpu.vector_store %arg21[%91, %c0_80, %c0_81], %94 {strides = array<i32>} : memref<8x8x128xf32, #tpu.memory_space<vmem>>, vector<1x8x128xf32>,
      scf.yield %90 : vector<8x128xf32>
    }
    %c8_i32_26 = arith.constant 8 : i32
    %c0_27 = arith.constant 0 : index
    %c0_28 = arith.constant 0 : index
    %c0_29 = arith.constant 0 : index
    %24 = vector.load %arg21[%c0_27, %c0_28, %c0_29] : memref<8x8x128xf32, #tpu.memory_space<vmem>>, vector<8x8x128xf32>
    %25 = vector.shape_cast %24 : vector<8x8x128xf32> to vector<64x128xf32>
    %c0_30 = arith.constant 0 : index
    %c0_31 = arith.constant 0 : index
    %26 = vector.load %arg9[%c0_30, %c0_31] : memref<128x384xf32, #tpu.memory_space<vmem>>, vector<128x384xf32>
    %cst_32 = arith.constant dense<0.000000e+00> : vector<64x384xf32>
    %27 = tpu.matmul %25, %26, %cst_32 {dimension_numbers = #tpu.dot_dimension_numbers<[1], [0], [0], [1], [0, 0, 1, 1], [], []>} : vector<64x128xf32>, vector<128x384xf32>, vector<64x384xf32> -> vector<64x384xf32>
    %c0_33 = arith.constant 0 : index
    %c0_34 = arith.constant 0 : index
    %28 = vector.load %arg11[%c0_33, %c0_34] : memref<1x384xf32, #tpu.memory_space<vmem>>, vector<1x384xf32>
    %29 = vector.broadcast %28 : vector<1x384xf32> to vector<64x384xf32>
    %30 = arith.addf %27, %29 : vector<64x384xf32>
    %31 = vector.shape_cast %30 : vector<64x384xf32> to vector<8x8x384xf32>
    %c0_35 = arith.constant 0 : index
    %c0_36 = arith.constant 0 : index
    %c0_37 = arith.constant 0 : index
    %32 = vector.load %arg20[%c0_35, %c0_36, %c0_37] : memref<8x8x384xf32, #tpu.memory_space<vmem>>, vector<8x8x384xf32>
    tpu.vector_store %arg20[%c0_35, %c0_36, %c0_37], %31 {strides = array<i32>} : memref<8x8x384xf32, #tpu.memory_space<vmem>>, vector<8x8x384xf32>,
    %cst_38 = arith.constant 0.000000e+00 : f32
    %33 = vector.broadcast %cst_38 : f32 to vector<8x128xf32>
    %c0_i32_39 = arith.constant 0 : i32
    %c8_i32_40 = arith.constant 8 : i32
    %34 = arith.addi %c0_i32_39, %c8_i32_40 : i32
    %c1_i32_41 = arith.constant 1 : i32
    %35 = scf.for %arg22 = %c0_i32_39 to %34 step %c1_i32_41 iter_args(%arg23 = %33) -> (vector<8x128xf32>)  : i32 {
      %57 = arith.index_cast %arg22 : i32 to index
      %c0_70 = arith.constant 0 : index
      %c0_71 = arith.constant 0 : index
      %58 = vector.load %arg20[%57, %c0_70, %c0_71] : memref<8x8x384xf32, #tpu.memory_space<vmem>>, vector<1x8x384xf32>
      %59 = vector.shape_cast %58 : vector<1x8x384xf32> to vector<8x384xf32>
      %c0_72 = arith.constant 0 : index
      %c0_73 = arith.constant 0 : index
      %60 = vector.load %arg10[%c0_72, %c0_73] : memref<128x384xf32, #tpu.memory_space<vmem>>, vector<128x384xf32>
      %cst_74 = arith.constant dense<0.000000e+00> : vector<8x384xf32>
      %61 = tpu.matmul %arg23, %60, %cst_74 {dimension_numbers = #tpu.dot_dimension_numbers<[1], [0], [0], [1], [0, 0, 1, 1], [], []>} : vector<8x128xf32>, vector<128x384xf32>, vector<8x384xf32> -> vector<8x384xf32>
      %c0_75 = arith.constant 0 : index
      %c0_76 = arith.constant 0 : index
      %62 = vector.load %arg12[%c0_75, %c0_76] : memref<1x384xf32, #tpu.memory_space<vmem>>, vector<1x384xf32>
      %63 = vector.broadcast %62 : vector<1x384xf32> to vector<8x384xf32>
      %64 = arith.addf %61, %63 : vector<8x384xf32>
      %65 = vector.extract_strided_slice %59 {offsets = [0, 0], sizes = [8, 128], strides = [1, 1]} : vector<8x384xf32> to vector<8x128xf32>
      %66 = vector.extract_strided_slice %64 {offsets = [0, 0], sizes = [8, 128], strides = [1, 1]} : vector<8x384xf32> to vector<8x128xf32>
      %67 = arith.addf %65, %66 : vector<8x128xf32>
      %68 = arith.negf %67 : vector<8x128xf32>
      %69 = math.exp %68 : vector<8x128xf32>
      %cst_77 = arith.constant 1.000000e+00 : f32
      %70 = vector.broadcast %cst_77 : f32 to vector<8x128xf32>
      %71 = arith.addf %70, %69 : vector<8x128xf32>
      %72 = arith.divf %70, %71 : vector<8x128xf32>
      %73 = vector.extract_strided_slice %59 {offsets = [0, 128], sizes = [8, 128], strides = [1, 1]} : vector<8x384xf32> to vector<8x128xf32>
      %74 = vector.extract_strided_slice %64 {offsets = [0, 128], sizes = [8, 128], strides = [1, 1]} : vector<8x384xf32> to vector<8x128xf32>
      %75 = arith.addf %73, %74 : vector<8x128xf32>
      %76 = arith.negf %75 : vector<8x128xf32>
      %77 = math.exp %76 : vector<8x128xf32>
      %cst_78 = arith.constant 1.000000e+00 : f32
      %78 = vector.broadcast %cst_78 : f32 to vector<8x128xf32>
      %79 = arith.addf %78, %77 : vector<8x128xf32>
      %80 = arith.divf %78, %79 : vector<8x128xf32>
      %81 = vector.extract_strided_slice %59 {offsets = [0, 256], sizes = [8, 128], strides = [1, 1]} : vector<8x384xf32> to vector<8x128xf32>
      %82 = vector.extract_strided_slice %64 {offsets = [0, 256], sizes = [8, 128], strides = [1, 1]} : vector<8x384xf32> to vector<8x128xf32>
      %83 = arith.mulf %72, %82 : vector<8x128xf32>
      %84 = arith.addf %81, %83 : vector<8x128xf32>
      %85 = math.tanh %84 : vector<8x128xf32>
      %cst_79 = arith.constant 1.000000e+00 : f32
      %86 = vector.broadcast %cst_79 : f32 to vector<8x128xf32>
      %87 = arith.subf %86, %80 : vector<8x128xf32>
      %88 = arith.mulf %87, %85 : vector<8x128xf32>
      %89 = arith.mulf %80, %arg23 : vector<8x128xf32>
      %90 = arith.addf %88, %89 : vector<8x128xf32>
      %91 = arith.index_cast %arg22 : i32 to index
      %c0_80 = arith.constant 0 : index
      %c0_81 = arith.constant 0 : index
      %92 = vector.load %arg21[%91, %c0_80, %c0_81] : memref<8x8x128xf32, #tpu.memory_space<vmem>>, vector<1x8x128xf32>
      %93 = vector.shape_cast %92 : vector<1x8x128xf32> to vector<8x128xf32>
      %94 = vector.shape_cast %90 : vector<8x128xf32> to vector<1x8x128xf32>
      tpu.vector_store %arg21[%91, %c0_80, %c0_81], %94 {strides = array<i32>} : memref<8x8x128xf32, #tpu.memory_space<vmem>>, vector<1x8x128xf32>,
      scf.yield %90 : vector<8x128xf32>
    }
    %c8_i32_42 = arith.constant 8 : i32
    %c0_43 = arith.constant 0 : index
    %c0_44 = arith.constant 0 : index
    %c0_45 = arith.constant 0 : index
    %36 = vector.load %arg21[%c0_43, %c0_44, %c0_45] : memref<8x8x128xf32, #tpu.memory_space<vmem>>, vector<8x8x128xf32>
    %37 = vector.shape_cast %36 : vector<8x8x128xf32> to vector<64x128xf32>
    %c0_46 = arith.constant 0 : index
    %c0_47 = arith.constant 0 : index
    %38 = vector.load %arg13[%c0_46, %c0_47] : memref<128x384xf32, #tpu.memory_space<vmem>>, vector<128x384xf32>
    %cst_48 = arith.constant dense<0.000000e+00> : vector<64x384xf32>
    %39 = tpu.matmul %37, %38, %cst_48 {dimension_numbers = #tpu.dot_dimension_numbers<[1], [0], [0], [1], [0, 0, 1, 1], [], []>} : vector<64x128xf32>, vector<128x384xf32>, vector<64x384xf32> -> vector<64x384xf32>
    %c0_49 = arith.constant 0 : index
    %c0_50 = arith.constant 0 : index
    %40 = vector.load %arg15[%c0_49, %c0_50] : memref<1x384xf32, #tpu.memory_space<vmem>>, vector<1x384xf32>
    %41 = vector.broadcast %40 : vector<1x384xf32> to vector<64x384xf32>
    %42 = arith.addf %39, %41 : vector<64x384xf32>
    %43 = vector.shape_cast %42 : vector<64x384xf32> to vector<8x8x384xf32>
    %c0_51 = arith.constant 0 : index
    %c0_52 = arith.constant 0 : index
    %c0_53 = arith.constant 0 : index
    %44 = vector.load %arg20[%c0_51, %c0_52, %c0_53] : memref<8x8x384xf32, #tpu.memory_space<vmem>>, vector<8x8x384xf32>
    tpu.vector_store %arg20[%c0_51, %c0_52, %c0_53], %43 {strides = array<i32>} : memref<8x8x384xf32, #tpu.memory_space<vmem>>, vector<8x8x384xf32>,
    %cst_54 = arith.constant 0.000000e+00 : f32
    %45 = vector.broadcast %cst_54 : f32 to vector<8x128xf32>
    %c0_i32_55 = arith.constant 0 : i32
    %c8_i32_56 = arith.constant 8 : i32
    %46 = arith.addi %c0_i32_55, %c8_i32_56 : i32
    %c1_i32_57 = arith.constant 1 : i32
    %47 = scf.for %arg22 = %c0_i32_55 to %46 step %c1_i32_57 iter_args(%arg23 = %45) -> (vector<8x128xf32>)  : i32 {
      %57 = arith.index_cast %arg22 : i32 to index
      %c0_70 = arith.constant 0 : index
      %c0_71 = arith.constant 0 : index
      %58 = vector.load %arg20[%57, %c0_70, %c0_71] : memref<8x8x384xf32, #tpu.memory_space<vmem>>, vector<1x8x384xf32>
      %59 = vector.shape_cast %58 : vector<1x8x384xf32> to vector<8x384xf32>
      %c0_72 = arith.constant 0 : index
      %c0_73 = arith.constant 0 : index
      %60 = vector.load %arg14[%c0_72, %c0_73] : memref<128x384xf32, #tpu.memory_space<vmem>>, vector<128x384xf32>
      %cst_74 = arith.constant dense<0.000000e+00> : vector<8x384xf32>
      %61 = tpu.matmul %arg23, %60, %cst_74 {dimension_numbers = #tpu.dot_dimension_numbers<[1], [0], [0], [1], [0, 0, 1, 1], [], []>} : vector<8x128xf32>, vector<128x384xf32>, vector<8x384xf32> -> vector<8x384xf32>
      %c0_75 = arith.constant 0 : index
      %c0_76 = arith.constant 0 : index
      %62 = vector.load %arg16[%c0_75, %c0_76] : memref<1x384xf32, #tpu.memory_space<vmem>>, vector<1x384xf32>
      %63 = vector.broadcast %62 : vector<1x384xf32> to vector<8x384xf32>
      %64 = arith.addf %61, %63 : vector<8x384xf32>
      %65 = vector.extract_strided_slice %59 {offsets = [0, 0], sizes = [8, 128], strides = [1, 1]} : vector<8x384xf32> to vector<8x128xf32>
      %66 = vector.extract_strided_slice %64 {offsets = [0, 0], sizes = [8, 128], strides = [1, 1]} : vector<8x384xf32> to vector<8x128xf32>
      %67 = arith.addf %65, %66 : vector<8x128xf32>
      %68 = arith.negf %67 : vector<8x128xf32>
      %69 = math.exp %68 : vector<8x128xf32>
      %cst_77 = arith.constant 1.000000e+00 : f32
      %70 = vector.broadcast %cst_77 : f32 to vector<8x128xf32>
      %71 = arith.addf %70, %69 : vector<8x128xf32>
      %72 = arith.divf %70, %71 : vector<8x128xf32>
      %73 = vector.extract_strided_slice %59 {offsets = [0, 128], sizes = [8, 128], strides = [1, 1]} : vector<8x384xf32> to vector<8x128xf32>
      %74 = vector.extract_strided_slice %64 {offsets = [0, 128], sizes = [8, 128], strides = [1, 1]} : vector<8x384xf32> to vector<8x128xf32>
      %75 = arith.addf %73, %74 : vector<8x128xf32>
      %76 = arith.negf %75 : vector<8x128xf32>
      %77 = math.exp %76 : vector<8x128xf32>
      %cst_78 = arith.constant 1.000000e+00 : f32
      %78 = vector.broadcast %cst_78 : f32 to vector<8x128xf32>
      %79 = arith.addf %78, %77 : vector<8x128xf32>
      %80 = arith.divf %78, %79 : vector<8x128xf32>
      %81 = vector.extract_strided_slice %59 {offsets = [0, 256], sizes = [8, 128], strides = [1, 1]} : vector<8x384xf32> to vector<8x128xf32>
      %82 = vector.extract_strided_slice %64 {offsets = [0, 256], sizes = [8, 128], strides = [1, 1]} : vector<8x384xf32> to vector<8x128xf32>
      %83 = arith.mulf %72, %82 : vector<8x128xf32>
      %84 = arith.addf %81, %83 : vector<8x128xf32>
      %85 = math.tanh %84 : vector<8x128xf32>
      %cst_79 = arith.constant 1.000000e+00 : f32
      %86 = vector.broadcast %cst_79 : f32 to vector<8x128xf32>
      %87 = arith.subf %86, %80 : vector<8x128xf32>
      %88 = arith.mulf %87, %85 : vector<8x128xf32>
      %89 = arith.mulf %80, %arg23 : vector<8x128xf32>
      %90 = arith.addf %88, %89 : vector<8x128xf32>
      %91 = arith.index_cast %arg22 : i32 to index
      %c0_80 = arith.constant 0 : index
      %c0_81 = arith.constant 0 : index
      %92 = vector.load %arg21[%91, %c0_80, %c0_81] : memref<8x8x128xf32, #tpu.memory_space<vmem>>, vector<1x8x128xf32>
      %93 = vector.shape_cast %92 : vector<1x8x128xf32> to vector<8x128xf32>
      %94 = vector.shape_cast %90 : vector<8x128xf32> to vector<1x8x128xf32>
      tpu.vector_store %arg21[%91, %c0_80, %c0_81], %94 {strides = array<i32>} : memref<8x8x128xf32, #tpu.memory_space<vmem>>, vector<1x8x128xf32>,
      scf.yield %90 : vector<8x128xf32>
    }
    %c8_i32_58 = arith.constant 8 : i32
    %c0_59 = arith.constant 0 : index
    %c0_60 = arith.constant 0 : index
    %c0_61 = arith.constant 0 : index
    %48 = vector.load %arg21[%c0_59, %c0_60, %c0_61] : memref<8x8x128xf32, #tpu.memory_space<vmem>>, vector<8x8x128xf32>
    %49 = vector.shape_cast %48 : vector<8x8x128xf32> to vector<64x128xf32>
    %c0_62 = arith.constant 0 : index
    %c0_63 = arith.constant 0 : index
    %50 = vector.load %arg17[%c0_62, %c0_63] : memref<128x128xf32, #tpu.memory_space<vmem>>, vector<128x128xf32>
    %cst_64 = arith.constant dense<0.000000e+00> : vector<64x128xf32>
    %51 = tpu.matmul %49, %50, %cst_64 {dimension_numbers = #tpu.dot_dimension_numbers<[1], [0], [0], [1], [0, 0, 1, 1], [], []>} : vector<64x128xf32>, vector<128x128xf32>, vector<64x128xf32> -> vector<64x128xf32>
    %c0_65 = arith.constant 0 : index
    %c0_66 = arith.constant 0 : index
    %52 = vector.load %arg18[%c0_65, %c0_66] : memref<1x128xf32, #tpu.memory_space<vmem>>, vector<1x128xf32>
    %53 = vector.broadcast %52 : vector<1x128xf32> to vector<64x128xf32>
    %54 = arith.addf %51, %53 : vector<64x128xf32>
    %55 = vector.shape_cast %54 : vector<64x128xf32> to vector<8x8x128xf32>
    %c0_67 = arith.constant 0 : index
    %c0_68 = arith.constant 0 : index
    %c0_69 = arith.constant 0 : index
    %56 = vector.load %arg19[%c0_67, %c0_68, %c0_69] : memref<8x8x128xf32, #tpu.memory_space<vmem>>, vector<8x8x128xf32>
    tpu.vector_store %arg19[%c0_67, %c0_68, %c0_69], %55 {strides = array<i32>} : memref<8x8x128xf32, #tpu.memory_space<vmem>>, vector<8x8x128xf32>,
    return
  }
}

</mosaic_0001>

<llo_original>
// kernel: tpu_custom_call.1
$region0: #{tpu_custom_call.1}
  #allocation0 [shape = 'u32[]', space=smem, size = 0x4, offset = 0x4, fixed_abs, tag = 'smem constant byte address 0x4 - core index']
  #allocation1 [shape = 'u32[144,128]{1,0:T(1,128)}', space=vmem, size = 0x12000, scoped, tag = 'internal scratch']
  #allocation2 [shape = 'f32[8,8,384]{2,1,0:T(8,128)}', space=vmem, size = 0x18000, scoped, tag = 'scratch operand']
  #allocation3 [shape = 'f32[8,8,128]{2,1,0:T(8,128)}', space=vmem, size = 0x8000, scoped, tag = 'scratch operand']
  %s0 = inlined_call_operand.hbm [shape: f32[8,8,128], index: 0, kind: input, shape index: {}]
  %s1 = inlined_call_operand.hbm [shape: f32[128,384], index: 1, kind: input, shape index: {}]
  %s2 = inlined_call_operand.hbm [shape: f32[128,384], index: 2, kind: input, shape index: {}]
  %s3 = inlined_call_operand.vmem [shape: f32[1,384], index: 3, kind: input, shape index: {}]
  %s4 = inlined_call_operand.vmem [shape: f32[1,384], index: 4, kind: input, shape index: {}]
  %s5 = inlined_call_operand.hbm [shape: f32[128,384], index: 5, kind: input, shape index: {}]
  %s6 = inlined_call_operand.hbm [shape: f32[128,384], index: 6, kind: input, shape index: {}]
  %s7 = inlined_call_operand.vmem [shape: f32[1,384], index: 7, kind: input, shape index: {}]
  %s8 = inlined_call_operand.vmem [shape: f32[1,384], index: 8, kind: input, shape index: {}]
  %s9 = inlined_call_operand.hbm [shape: f32[128,384], index: 9, kind: input, shape index: {}]
  %s10 = inlined_call_operand.hbm [shape: f32[128,384], index: 10, kind: input, shape index: {}]
  %s11 = inlined_call_operand.vmem [shape: f32[1,384], index: 11, kind: input, shape index: {}]
  %s12 = inlined_call_operand.vmem [shape: f32[1,384], index: 12, kind: input, shape index: {}]
  %s13 = inlined_call_operand.hbm [shape: f32[128,384], index: 13, kind: input, shape index: {}]
  %s14 = inlined_call_operand.hbm [shape: f32[128,384], index: 14, kind: input, shape index: {}]
  %s15 = inlined_call_operand.vmem [shape: f32[1,384], index: 15, kind: input, shape index: {}]
  %s16 = inlined_call_operand.vmem [shape: f32[1,384], index: 16, kind: input, shape index: {}]
  %s17 = inlined_call_operand.hbm [shape: f32[128,128], index: 17, kind: input, shape index: {}]
  %s18 = inlined_call_operand.vmem [shape: f32[1,128], index: 18, kind: input, shape index: {}]
  %s19 = inlined_call_operand.hbm [shape: f32[8,8,128], index: 19, kind: output, shape index: {}]
  %s20 = sld [smem:[#allocation0]]
  $region154: #{tpu_custom_call.1} parent=0
    _
  %s22 = ssub.s32 1, %s20
  %s23 = scalar_select 0, %s22, %s20
  $region1: #{tpu_custom_call.1} parent=0
    #allocation4 [shape = 'u8[32768]{0}', space=vmem, size = 0x8000, scoped, tag = 'input window, operand 0, single buffered']
    #allocation5 [shape = 's32[1]{0}', space=sflag, size = 0x4, scoped, tag = 'scoped memory for tpu_custom_call.1']
    #allocation6 [shape = 's32[1]{0}', space=sflag, size = 0x4, scoped, tag = 'scoped memory for tpu_custom_call.1']
    #allocation7 [shape = 'u8[196608]{0}', space=vmem, size = 0x30000, scoped, tag = 'input window, operand 1, single buffered']
    #allocation8 [shape = 's32[1]{0}', space=sflag, size = 0x4, scoped, tag = 'scoped memory for tpu_custom_call.1']
    #allocation9 [shape = 'u8[196608]{0}', space=vmem, size = 0x30000, scoped, tag = 'input window, operand 2, single buffered']
    #allocation10 [shape = 'u8[196608]{0}', space=vmem, size = 0x30000, scoped, tag = 'input window, operand 5, single buffered']
    #allocation11 [shape = 's32[1]{0}', space=sflag, size = 0x4, scoped, tag = 'scoped memory for tpu_custom_call.1']
    #allocation12 [shape = 'u8[196608]{0}', space=vmem, size = 0x30000, scoped, tag = 'input window, operand 6, single buffered']
    #allocation13 [shape = 'u8[196608]{0}', space=vmem, size = 0x30000, scoped, tag = 'input window, operand 9, single buffered']
    #allocation14 [shape = 's32[1]{0}', space=sflag, size = 0x4, scoped, tag = 'scoped memory for tpu_custom_call.1']
    #allocation15 [shape = 'u8[196608]{0}', space=vmem, size = 0x30000, scoped, tag = 'input window, operand 10, single buffered']
    #allocation16 [shape = 'u8[196608]{0}', space=vmem, size = 0x30000, scoped, tag = 'input window, operand 13, single buffered']
    #allocation17 [shape = 's32[1]{0}', space=sflag, size = 0x4, scoped, tag = 'scoped memory for tpu_custom_call.1']
    #allocation18 [shape = 'u8[196608]{0}', space=vmem, size = 0x30000, scoped, tag = 'input window, operand 14, single buffered']
    #allocation19 [shape = 'u8[65536]{0}', space=vmem, size = 0x10000, scoped, tag = 'input window, operand 17, single buffered']
    #allocation20 [shape = 's32[1]{0}', space=sflag, size = 0x4, scoped, tag = 'scoped memory for tpu_custom_call.1']
    #allocation21 [shape = 'u8[32768]{0}', space=vmem, size = 0x8000, scoped, tag = 'output window, operand 0, single buffered']
    %24 = vsyncpa [#allocation5], 0
    %25 = vsyncpa [#allocation8], 0
    %26 = vsyncpa [#allocation11], 0
    %27 = vsyncpa [#allocation14], 0
    %28 = vsyncpa [#allocation17], 0
    %29 = vsyncpa [#allocation20], 0
    %30 = vsyncpa [#allocation6], 0
    // Predicated region
    $region2: #{tpu_custom_call.1} parent=1 // pred_check
      _
    $region3: #{tpu_custom_call.1} parent=1 // pred_check_branch
      %32 = sbr.rel (0) target = $region5
    $region4: #{tpu_custom_call.1} parent=1 // pred_region
      %s34 = ssub.s32 1024, 1024
      %35 = vsyncadd [#allocation5], %s34
      %s36 = sshll.u32 [#allocation4], 4
      %s37 = int_to_ptr.vmem [resolvable:$true] %s36
      %42 = dma.hbm_to_vmem [thread:$0]  %s0, 1024, %s37, [#allocation5], 128, 128, 8
    $region5: #{tpu_custom_call.1} parent=1 // pred_fallthru
      _
    // Predicated region
    $region6: #{tpu_custom_call.1} parent=1 // pred_check
      _
    $region7: #{tpu_custom_call.1} parent=1 // pred_check_branch
      %44 = sbr.rel (0) target = $region9
    $region8: #{tpu_custom_call.1} parent=1 // pred_region
      %s46 = ssub.s32 6144, 6144
      %47 = vsyncadd [#allocation8], %s46
      %s48 = sshll.u32 [#allocation7], 4
      %s49 = int_to_ptr.vmem [resolvable:$true] %s48
      %54 = dma.hbm_to_vmem [thread:$0]  %s1, 6144, %s49, [#allocation8], 384, 384, 24
    $region9: #{tpu_custom_call.1} parent=1 // pred_fallthru
      _
    // Predicated region
    $region10: #{tpu_custom_call.1} parent=1 // pred_check
      _
    $region11: #{tpu_custom_call.1} parent=1 // pred_check_branch
      %56 = sbr.rel (0) target = $region13
    $region12: #{tpu_custom_call.1} parent=1 // pred_region
      %s58 = ssub.s32 6144, 6144
      %59 = vsyncadd [#allocation8], %s58
      %s60 = sshll.u32 [#allocation9], 4
      %s61 = int_to_ptr.vmem [resolvable:$true] %s60
      %66 = dma.hbm_to_vmem [thread:$0]  %s2, 6144, %s61, [#allocation8], 384, 384, 24
    $region13: #{tpu_custom_call.1} parent=1 // pred_fallthru
      _
    // Predicated region
    $region14: #{tpu_custom_call.1} parent=1 // pred_check
      _
    $region15: #{tpu_custom_call.1} parent=1 // pred_check_branch
      %68 = sbr.rel (0) target = $region17
    $region16: #{tpu_custom_call.1} parent=1 // pred_region
      _
    $region17: #{tpu_custom_call.1} parent=1 // pred_fallthru
      _
    // Predicated region
    $region18: #{tpu_custom_call.1} parent=1 // pred_check
      _
    $region19: #{tpu_custom_call.1} parent=1 // pred_check_branch
      %70 = sbr.rel (0) target = $region21
    $region20: #{tpu_custom_call.1} parent=1 // pred_region
      _
    $region21: #{tpu_custom_call.1} parent=1 // pred_fallthru
      _
    // Predicated region
    $region22: #{tpu_custom_call.1} parent=1 // pred_check
      _
    $region23: #{tpu_custom_call.1} parent=1 // pred_check_branch
      %72 = sbr.rel (0) target = $region25
    $region24: #{tpu_custom_call.1} parent=1 // pred_region
      %s74 = ssub.s32 6144, 6144
      %75 = vsyncadd [#allocation11], %s74
      %s76 = sshll.u32 [#allocation10], 4
      %s77 = int_to_ptr.vmem [resolvable:$true] %s76
      %82 = dma.hbm_to_vmem [thread:$0]  %s5, 6144, %s77, [#allocation11], 384, 384, 24
    $region25: #{tpu_custom_call.1} parent=1 // pred_fallthru
      _
    // Predicated region
    $region26: #{tpu_custom_call.1} parent=1 // pred_check
      _
    $region27: #{tpu_custom_call.1} parent=1 // pred_check_branch
      %84 = sbr.rel (0) target = $region29
    $region28: #{tpu_custom_call.1} parent=1 // pred_region
      %s86 = ssub.s32 6144, 6144
      %87 = vsyncadd [#allocation11], %s86
      %s88 = sshll.u32 [#allocation12], 4
      %s89 = int_to_ptr.vmem [resolvable:$true] %s88
      %94 = dma.hbm_to_vmem [thread:$0]  %s6, 6144, %s89, [#allocation11], 384, 384, 24
    $region29: #{tpu_custom_call.1} parent=1 // pred_fallthru
      _
    // Predicated region
    $region30: #{tpu_custom_call.1} parent=1 // pred_check
      _
    $region31: #{tpu_custom_call.1} parent=1 // pred_check_branch
      %96 = sbr.rel (0) target = $region33
    $region32: #{tpu_custom_call.1} parent=1 // pred_region
      _
    $region33: #{tpu_custom_call.1} parent=1 // pred_fallthru
      _
    // Predicated region
    $region34: #{tpu_custom_call.1} parent=1 // pred_check
      _
    $region35: #{tpu_custom_call.1} parent=1 // pred_check_branch
      %98 = sbr.rel (0) target = $region37
    $region36: #{tpu_custom_call.1} parent=1 // pred_region
      _
    $region37: #{tpu_custom_call.1} parent=1 // pred_fallthru
      _
    // Predicated region
    $region38: #{tpu_custom_call.1} parent=1 // pred_check
      _
    $region39: #{tpu_custom_call.1} parent=1 // pred_check_branch
      %100 = sbr.rel (0) target = $region41
    $region40: #{tpu_custom_call.1} parent=1 // pred_region
      %s102 = ssub.s32 6144, 6144
      %103 = vsyncadd [#allocation14], %s102
      %s104 = sshll.u32 [#allocation13], 4
      %s105 = int_to_ptr.vmem [resolvable:$true] %s104
      %110 = dma.hbm_to_vmem [thread:$0]  %s9, 6144, %s105, [#allocation14], 384, 384, 24
    $region41: #{tpu_custom_call.1} parent=1 // pred_fallthru
      _
    // Predicated region
    $region42: #{tpu_custom_call.1} parent=1 // pred_check
      _
    $region43: #{tpu_custom_call.1} parent=1 // pred_check_branch
      %112 = sbr.rel (0) target = $region45
    $region44: #{tpu_custom_call.1} parent=1 // pred_region
      %s114 = ssub.s32 6144, 6144
      %115 = vsyncadd [#allocation14], %s114
      %s116 = sshll.u32 [#allocation15], 4
      %s117 = int_to_ptr.vmem [resolvable:$true] %s116
      %122 = dma.hbm_to_vmem [thread:$0]  %s10, 6144, %s117, [#allocation14], 384, 384, 24
    $region45: #{tpu_custom_call.1} parent=1 // pred_fallthru
      _
    // Predicated region
    $region46: #{tpu_custom_call.1} parent=1 // pred_check
      _
    $region47: #{tpu_custom_call.1} parent=1 // pred_check_branch
      %124 = sbr.rel (0) target = $region49
    $region48: #{tpu_custom_call.1} parent=1 // pred_region
      _
    $region49: #{tpu_custom_call.1} parent=1 // pred_fallthru
      _
    // Predicated region
    $region50: #{tpu_custom_call.1} parent=1 // pred_check
      _
    $region51: #{tpu_custom_call.1} parent=1 // pred_check_branch
      %126 = sbr.rel (0) target = $region53
    $region52: #{tpu_custom_call.1} parent=1 // pred_region
      _
    $region53: #{tpu_custom_call.1} parent=1 // pred_fallthru
      _
    // Predicated region
    $region54: #{tpu_custom_call.1} parent=1 // pred_check
      _
    $region55: #{tpu_custom_call.1} parent=1 // pred_check_branch
      %128 = sbr.rel (0) target = $region57
    $region56: #{tpu_custom_call.1} parent=1 // pred_region
      %s130 = ssub.s32 6144, 6144
      %131 = vsyncadd [#allocation17], %s130
      %s132 = sshll.u32 [#allocation16], 4
      %s133 = int_to_ptr.vmem [resolvable:$true] %s132
      %138 = dma.hbm_to_vmem [thread:$0]  %s13, 6144, %s133, [#allocation17], 384, 384, 24
    $region57: #{tpu_custom_call.1} parent=1 // pred_fallthru
      _
    // Predicated region
    $region58: #{tpu_custom_call.1} parent=1 // pred_check
      _
    $region59: #{tpu_custom_call.1} parent=1 // pred_check_branch
      %140 = sbr.rel (0) target = $region61
    $region60: #{tpu_custom_call.1} parent=1 // pred_region
      %s142 = ssub.s32 6144, 6144
      %143 = vsyncadd [#allocation17], %s142
      %s144 = sshll.u32 [#allocation18], 4
      %s145 = int_to_ptr.vmem [resolvable:$true] %s144
      %150 = dma.hbm_to_vmem [thread:$0]  %s14, 6144, %s145, [#allocation17], 384, 384, 24
    $region61: #{tpu_custom_call.1} parent=1 // pred_fallthru
      _
    // Predicated region
    $region62: #{tpu_custom_call.1} parent=1 // pred_check
      _
    $region63: #{tpu_custom_call.1} parent=1 // pred_check_branch
      %152 = sbr.rel (0) target = $region65
    $region64: #{tpu_custom_call.1} parent=1 // pred_region
      _
    $region65: #{tpu_custom_call.1} parent=1 // pred_fallthru
      _
    // Predicated region
    $region66: #{tpu_custom_call.1} parent=1 // pred_check
      _
    $region67: #{tpu_custom_call.1} parent=1 // pred_check_branch
      %154 = sbr.rel (0) target = $region69
    $region68: #{tpu_custom_call.1} parent=1 // pred_region
      _
    $region69: #{tpu_custom_call.1} parent=1 // pred_fallthru
      _
    // Predicated region
    $region70: #{tpu_custom_call.1} parent=1 // pred_check
      _
    $region71: #{tpu_custom_call.1} parent=1 // pred_check_branch
      %156 = sbr.rel (0) target = $region73
    $region72: #{tpu_custom_call.1} parent=1 // pred_region
      %s158 = ssub.s32 2048, 2048
      %159 = vsyncadd [#allocation20], %s158
      %s160 = sshll.u32 [#allocation19], 4
      %s161 = int_to_ptr.vmem [resolvable:$true] %s160
      %166 = dma.hbm_to_vmem [thread:$0]  %s17, 2048, %s161, [#allocation20], 128, 128, 8
    $region73: #{tpu_custom_call.1} parent=1 // pred_fallthru
      _
    // Predicated region
    $region74: #{tpu_custom_call.1} parent=1 // pred_check
      _
    $region75: #{tpu_custom_call.1} parent=1 // pred_check_branch
      %168 = sbr.rel (0) target = $region77
    $region76: #{tpu_custom_call.1} parent=1 // pred_region
      _
    $region77: #{tpu_custom_call.1} parent=1 // pred_fallthru
      _
    // Predicated region
    $region78: #{tpu_custom_call.1} parent=1 // pred_check
      _
    $region79: #{tpu_custom_call.1} parent=1 // pred_check_branch
      %170 = sbr.rel (0) target = $region81
    $region80: #{tpu_custom_call.1} parent=1 // pred_region
      %171 = dma.done [#allocation5], 1024
    $region81: #{tpu_custom_call.1} parent=1 // pred_fallthru
      _
    // Predicated region
    $region82: #{tpu_custom_call.1} parent=1 // pred_check
      _
    $region83: #{tpu_custom_call.1} parent=1 // pred_check_branch
      %173 = sbr.rel (0) target = $region85
    $region84: #{tpu_custom_call.1} parent=1 // pred_region
      %174 = dma.done [#allocation8], 6144
    $region85: #{tpu_custom_call.1} parent=1 // pred_fallthru
      _
    // Predicated region
    $region86: #{tpu_custom_call.1} parent=1 // pred_check
      _
    $region87: #{tpu_custom_call.1} parent=1 // pred_check_branch
      %176 = sbr.rel (0) target = $region89
    $region88: #{tpu_custom_call.1} parent=1 // pred_region
      %177 = dma.done [#allocation8], 6144
    $region89: #{tpu_custom_call.1} parent=1 // pred_fallthru
      _
    // Predicated region
    $region90: #{tpu_custom_call.1} parent=1 // pred_check
      _
    $region91: #{tpu_custom_call.1} parent=1 // pred_check_branch
      %179 = sbr.rel (0) target = $region93
    $region92: #{tpu_custom_call.1} parent=1 // pred_region
      %180 = dma.done [#allocation11], 6144
    $region93: #{tpu_custom_call.1} parent=1 // pred_fallthru
      _
    // Predicated region
    $region94: #{tpu_custom_call.1} parent=1 // pred_check
      _
    $region95: #{tpu_custom_call.1} parent=1 // pred_check_branch
      %182 = sbr.rel (0) target = $region97
    $region96: #{tpu_custom_call.1} parent=1 // pred_region
      %183 = dma.done [#allocation11], 6144
    $region97: #{tpu_custom_call.1} parent=1 // pred_fallthru
      _
    // Predicated region
    $region98: #{tpu_custom_call.1} parent=1 // pred_check
      _
    $region99: #{tpu_custom_call.1} parent=1 // pred_check_branch
      %185 = sbr.rel (0) target = $region101
    $region100: #{tpu_custom_call.1} parent=1 // pred_region
      %186 = dma.done [#allocation14], 6144
    $region101: #{tpu_custom_call.1} parent=1 // pred_fallthru
      _
    // Predicated region
    $region102: #{tpu_custom_call.1} parent=1 // pred_check
      _
    $region103: #{tpu_custom_call.1} parent=1 // pred_check_branch
      %188 = sbr.rel (0) target = $region105
    $region104: #{tpu_custom_call.1} parent=1 // pred_region
      %189 = dma.done [#allocation14], 6144
    $region105: #{tpu_custom_call.1} parent=1 // pred_fallthru
      _
    // Predicated region
    $region106: #{tpu_custom_call.1} parent=1 // pred_check
      _
    $region107: #{tpu_custom_call.1} parent=1 // pred_check_branch
      %191 = sbr.rel (0) target = $region109
    $region108: #{tpu_custom_call.1} parent=1 // pred_region
      %192 = dma.done [#allocation17], 6144
    $region109: #{tpu_custom_call.1} parent=1 // pred_fallthru
      _
    // Predicated region
    $region110: #{tpu_custom_call.1} parent=1 // pred_check
      _
    $region111: #{tpu_custom_call.1} parent=1 // pred_check_branch
      %194 = sbr.rel (0) target = $region113
    $region112: #{tpu_custom_call.1} parent=1 // pred_region
      %195 = dma.done [#allocation17], 6144
    $region113: #{tpu_custom_call.1} parent=1 // pred_fallthru
      _
    // Predicated region
    $region114: #{tpu_custom_call.1} parent=1 // pred_check
      _
    $region115: #{tpu_custom_call.1} parent=1 // pred_check_branch
      %197 = sbr.rel (0) target = $region117
    $region116: #{tpu_custom_call.1} parent=1 // pred_region
      %198 = dma.done [#allocation20], 2048
    $region117: #{tpu_custom_call.1} parent=1 // pred_fallthru
      _
    %v199 = vld [vmem:[#allocation4] sm:$0xff]
    %v200 = vld [vmem:[#allocation4 + $0x8] sm:$0xff]
    %v201 = vld [vmem:[#allocation4 + $0x10] sm:$0xff]
    %v202 = vld [vmem:[#allocation4 + $0x18] sm:$0xff]
    %v203 = vld [vmem:[#allocation4 + $0x20] sm:$0xff]
    %v204 = vld [vmem:[#allocation4 + $0x28] sm:$0xff]
    %v205 = vld [vmem:[#allocation4 + $0x30] sm:$0xff]
    %v206 = vld [vmem:[#allocation4 + $0x38] sm:$0xff]
    %v207 = vld [vmem:[#allocation7] sm:$0xff]
    %v208 = vld [vmem:[#allocation7 + $0x8] sm:$0xff]
    %v209 = vld [vmem:[#allocation7 + $0x10] sm:$0xff]
    %v210 = vld [vmem:[#allocation7 + $0x18] sm:$0xff]
    %v211 = vld [vmem:[#allocation7 + $0x20] sm:$0xff]
    %v212 = vld [vmem:[#allocation7 + $0x28] sm:$0xff]
    %v213 = vld [vmem:[#allocation7 + $0x30] sm:$0xff]
    %v214 = vld [vmem:[#allocation7 + $0x38] sm:$0xff]
    %v215 = vld [vmem:[#allocation7 + $0x40] sm:$0xff]
    %v216 = vld [vmem:[#allocation7 + $0x48] sm:$0xff]
    %v217 = vld [vmem:[#allocation7 + $0x50] sm:$0xff]
    %v218 = vld [vmem:[#allocation7 + $0x58] sm:$0xff]
    %v219 = vld [vmem:[#allocation7 + $0x60] sm:$0xff]
    %v220 = vld [vmem:[#allocation7 + $0x68] sm:$0xff]
    %v221 = vld [vmem:[#allocation7 + $0x70] sm:$0xff]
    %v222 = vld [vmem:[#allocation7 + $0x78] sm:$0xff]
    %v223 = vld [vmem:[#allocation7 + $0x80] sm:$0xff]
    %v224 = vld [vmem:[#allocation7 + $0x88] sm:$0xff]
    %v225 = vld [vmem:[#allocation7 + $0x90] sm:$0xff]
    %v226 = vld [vmem:[#allocation7 + $0x98] sm:$0xff]
    %v227 = vld [vmem:[#allocation7 + $0xa0] sm:$0xff]
    %v228 = vld [vmem:[#allocation7 + $0xa8] sm:$0xff]
    %v229 = vld [vmem:[#allocation7 + $0xb0] sm:$0xff]
    %v230 = vld [vmem:[#allocation7 + $0xb8] sm:$0xff]
    %v231 = vld [vmem:[#allocation7 + $0xc0] sm:$0xff]
    %v232 = vld [vmem:[#allocation7 + $0xc8] sm:$0xff]
    %v233 = vld [vmem:[#allocation7 + $0xd0] sm:$0xff]
    %v234 = vld [vmem:[#allocation7 + $0xd8] sm:$0xff]
    %v235 = vld [vmem:[#allocation7 + $0xe0] sm:$0xff]
    %v236 = vld [vmem:[#allocation7 + $0xe8] sm:$0xff]
    %v237 = vld [vmem:[#allocation7 + $0xf0] sm:$0xff]
    %v238 = vld [vmem:[#allocation7 + $0xf8] sm:$0xff]
    %v239 = vld [vmem:[#allocation7 + $0x100] sm:$0xff]
    %v240 = vld [vmem:[#allocation7 + $0x108] sm:$0xff]
    %v241 = vld [vmem:[#allocation7 + $0x110] sm:$0xff]
    %v242 = vld [vmem:[#allocation7 + $0x118] sm:$0xff]
    %v243 = vld [vmem:[#allocation7 + $0x120] sm:$0xff]
    %v244 = vld [vmem:[#allocation7 + $0x128] sm:$0xff]
    %v245 = vld [vmem:[#allocation7 + $0x130] sm:$0xff]
    %v246 = vld [vmem:[#allocation7 + $0x138] sm:$0xff]
    %v247 = vld [vmem:[#allocation7 + $0x140] sm:$0xff]
    %v248 = vld [vmem:[#allocation7 + $0x148] sm:$0xff]
    %v249 = vld [vmem:[#allocation7 + $0x150] sm:$0xff]
    %v250 = vld [vmem:[#allocation7 + $0x158] sm:$0xff]
    %v251 = vld [vmem:[#allocation7 + $0x160] sm:$0xff]
    %v252 = vld [vmem:[#allocation7 + $0x168] sm:$0xff]
    %v253 = vld [vmem:[#allocation7 + $0x170] sm:$0xff]
    %v254 = vld [vmem:[#allocation7 + $0x178] sm:$0xff]
    %v255 = vld [vmem:[%s3] sm:$0x7]
    %v257 = vlaneseq
    %v258 = vshrl.u32 %v257, 7
    %v259 = vsub.s32 0, %v258
    %v260 = vrot.slane %v255, %v259
    %v261 = vlaneseq
    %v262 = vshrl.u32 %v261, 7
    %v263 = vsub.s32 1, %v262
    %v264 = vrot.slane %v255, %v263
    %v265 = vlaneseq
    %v266 = vshrl.u32 %v265, 7
    %v267 = vsub.s32 2, %v266
    %v268 = vrot.slane %v255, %v267
    %272 = vmatprep.subr.mxu0 %v208
    %273 = vmatpush1.msra.mxu0 %v207
    %274 = vmatprep.subr.mxu0 %v211
    %275 = vmatpush1.msra.mxu0 %v210
    %276 = vmatprep.subr.mxu0 %v214
    %277 = vmatpush1.msra.mxu0 %v213
    %278 = vmatprep.subr.mxu0 %v217
    %279 = vmatpush1.msra.mxu0 %v216
    %280 = vmatprep.subr.mxu0 %v220
    %281 = vmatpush1.msra.mxu0 %v219
    %282 = vmatprep.subr.mxu0 %v223
    %283 = vmatpush1.msra.mxu0 %v222
    %284 = vmatprep.subr.mxu0 %v226
    %285 = vmatpush1.msra.mxu0 %v225
    %286 = vmatprep.subr.mxu0 %v229
    %287 = vmatpush1.msra.mxu0 %v228
    %288 = vmatprep.subr.mxu0 %v232
    %289 = vmatpush1.msra.mxu0 %v231
    %290 = vmatprep.subr.mxu0 %v235
    %291 = vmatpush1.msra.mxu0 %v234
    %292 = vmatprep.subr.mxu0 %v238
    %293 = vmatpush1.msra.mxu0 %v237
    %294 = vmatprep.subr.mxu0 %v241
    %295 = vmatpush1.msra.mxu0 %v240
    %296 = vmatprep.subr.mxu0 %v244
    %297 = vmatpush1.msra.mxu0 %v243
    %298 = vmatprep.subr.mxu0 %v247
    %299 = vmatpush1.msra.mxu0 %v246
    %300 = vmatprep.subr.mxu0 %v250
    %301 = vmatpush1.msra.mxu0 %v249
    %302 = vmatprep.subr.mxu0 %v253
    %303 = vmatpush1.msra.mxu0 %v252
    %304 = vmatprep.subr.mxu0 0.0
    %305 = vmatpush1.msra.mxu0 0.0
    %306 = vmatprep.subr.mxu0 0.0
    %307 = vmatpush1.msra.mxu0 0.0
    %308 = vmatprep.subr.mxu0 0.0
    %309 = vmatpush1.msra.mxu0 0.0
    %310 = vmatprep.subr.mxu0 0.0
    %311 = vmatpush1.msra.mxu0 0.0
    %312 = vmatprep.subr.mxu0 0.0
    %313 = vmatpush1.msra.mxu0 0.0
    %314 = vmatprep.subr.mxu0 0.0
    %315 = vmatpush1.msra.mxu0 0.0
    %316 = vmatprep.subr.mxu0 0.0
    %317 = vmatpush1.msra.mxu0 0.0
    %318 = vmatprep.subr.mxu0 0.0
    %319 = vmatpush1.msra.mxu0 0.0
    %320 = vmatprep.subr.mxu0 0.0
    %321 = vmatpush1.msra.mxu0 0.0
    %322 = vmatprep.subr.mxu0 0.0
    %323 = vmatpush1.msra.mxu0 0.0
    %324 = vmatprep.subr.mxu0 0.0
    %325 = vmatpush1.msra.mxu0 0.0
    %326 = vmatprep.subr.mxu0 0.0
    %327 = vmatpush1.msra.mxu0 0.0
    %328 = vmatprep.subr.mxu0 0.0
    %329 = vmatpush1.msra.mxu0 0.0
    %330 = vmatprep.subr.mxu0 0.0
    %331 = vmatpush1.msra.mxu0 0.0
    %332 = vmatprep.subr.mxu0 0.0
    %333 = vmatpush1.msra.mxu0 0.0
    %334 = vmatprep.subr.mxu0 0.0
    %335 = vmatpush1.msra.mxu0 0.0
    %336 = vmatprep.mubr.f32.mxu0 0.0
    %337 = vmatmul.mubr.f32.gmra.mrb[0].mxu0 %v199
    %v338 = vpop.f32.mrb[0].mxu0
    %v339 = vadd.f32 %v260, %v338
    %v340 = vpop.f32.mrb[0].mxu0
    %v341 = vadd.f32 %v264, %v340
    %342 = vmatprep.mubr.f32.mxu0 0.0
    %343 = vmatmul.mubr.f32.gmra.mrb[0].mxu0 %v200
    %v344 = vpop.f32.mrb[0].mxu0
    %v345 = vadd.f32 %v260, %v344
    %v346 = vpop.f32.mrb[0].mxu0
    %v347 = vadd.f32 %v264, %v346
    %348 = vmatprep.mubr.f32.mxu0 0.0
    %349 = vmatmul.mubr.f32.gmra.mrb[0].mxu0 %v201
    %v350 = vpop.f32.mrb[0].mxu0
    %v351 = vadd.f32 %v260, %v350
    %v352 = vpop.f32.mrb[0].mxu0
    %v353 = vadd.f32 %v264, %v352
    %354 = vmatprep.mubr.f32.mxu0 0.0
    %355 = vmatmul.mubr.f32.gmra.mrb[0].mxu0 %v202
    %v356 = vpop.f32.mrb[0].mxu0
    %v357 = vadd.f32 %v260, %v356
    %v358 = vpop.f32.mrb[0].mxu0
    %v359 = vadd.f32 %v264, %v358
    %360 = vmatprep.mubr.f32.mxu0 0.0
    %361 = vmatmul.mubr.f32.gmra.mrb[0].mxu0 %v203
    %v362 = vpop.f32.mrb[0].mxu0
    %v363 = vadd.f32 %v260, %v362
    %v364 = vpop.f32.mrb[0].mxu0
    %v365 = vadd.f32 %v264, %v364
    %366 = vmatprep.mubr.f32.mxu0 0.0
    %367 = vmatmul.mubr.f32.gmra.mrb[0].mxu0 %v204
    %v368 = vpop.f32.mrb[0].mxu0
    %v369 = vadd.f32 %v260, %v368
    %v370 = vpop.f32.mrb[0].mxu0
    %v371 = vadd.f32 %v264, %v370
    %372 = vmatprep.mubr.f32.mxu0 0.0
    %373 = vmatmul.mubr.f32.gmra.mrb[0].mxu0 %v205
    %v374 = vpop.f32.mrb[0].mxu0
    %v375 = vadd.f32 %v260, %v374
    %v376 = vpop.f32.mrb[0].mxu0
    %v377 = vadd.f32 %v264, %v376
    %378 = vmatprep.mubr.f32.mxu0 0.0
    %379 = vmatmul.mubr.f32.gmra.mrb[0].mxu0 %v206
    %v380 = vpop.f32.mrb[0].mxu0
    %v381 = vadd.f32 %v260, %v380
    %v382 = vpop.f32.mrb[0].mxu0
    %v383 = vadd.f32 %v264, %v382
    %384 = vdwg.mxu0
    %385 = vmatprep.subr.mxu0 0.0
    %386 = vmatpush1.msra.mxu0 %v209
    %387 = vmatprep.subr.mxu0 0.0
    %388 = vmatpush1.msra.mxu0 %v212
    %389 = vmatprep.subr.mxu0 0.0
    %390 = vmatpush1.msra.mxu0 %v215
    %391 = vmatprep.subr.mxu0 0.0
    %392 = vmatpush1.msra.mxu0 %v218
    %393 = vmatprep.subr.mxu0 0.0
    %394 = vmatpush1.msra.mxu0 %v221
    %395 = vmatprep.subr.mxu0 0.0
    %396 = vmatpush1.msra.mxu0 %v224
    %397 = vmatprep.subr.mxu0 0.0
    %398 = vmatpush1.msra.mxu0 %v227
    %399 = vmatprep.subr.mxu0 0.0
    %400 = vmatpush1.msra.mxu0 %v230
    %401 = vmatprep.subr.mxu0 0.0
    %402 = vmatpush1.msra.mxu0 %v233
    %403 = vmatprep.subr.mxu0 0.0
    %404 = vmatpush1.msra.mxu0 %v236
    %405 = vmatprep.subr.mxu0 0.0
    %406 = vmatpush1.msra.mxu0 %v239
    %407 = vmatprep.subr.mxu0 0.0
    %408 = vmatpush1.msra.mxu0 %v242
    %409 = vmatprep.subr.mxu0 0.0
    %410 = vmatpush1.msra.mxu0 %v245
    %411 = vmatprep.subr.mxu0 0.0
    %412 = vmatpush1.msra.mxu0 %v248
    %413 = vmatprep.subr.mxu0 0.0
    %414 = vmatpush1.msra.mxu0 %v251
    %415 = vmatprep.subr.mxu0 0.0
    %416 = vmatpush1.msra.mxu0 %v254
    %417 = vmatprep.subr.mxu0 0.0
    %418 = vmatpush1.msra.mxu0 0.0
    %419 = vmatprep.subr.mxu0 0.0
    %420 = vmatpush1.msra.mxu0 0.0
    %421 = vmatprep.subr.mxu0 0.0
    %422 = vmatpush1.msra.mxu0 0.0
    %423 = vmatprep.subr.mxu0 0.0
    %424 = vmatpush1.msra.mxu0 0.0
    %425 = vmatprep.subr.mxu0 0.0
    %426 = vmatpush1.msra.mxu0 0.0
    %427 = vmatprep.subr.mxu0 0.0
    %428 = vmatpush1.msra.mxu0 0.0
    %429 = vmatprep.subr.mxu0 0.0
    %430 = vmatpush1.msra.mxu0 0.0
    %431 = vmatprep.subr.mxu0 0.0
    %432 = vmatpush1.msra.mxu0 0.0
    %433 = vmatprep.subr.mxu0 0.0
    %434 = vmatpush1.msra.mxu0 0.0
    %435 = vmatprep.subr.mxu0 0.0
    %436 = vmatpush1.msra.mxu0 0.0
    %437 = vmatprep.subr.mxu0 0.0
    %438 = vmatpush1.msra.mxu0 0.0
    %439 = vmatprep.subr.mxu0 0.0
    %440 = vmatpush1.msra.mxu0 0.0
    %441 = vmatprep.subr.mxu0 0.0
    %442 = vmatpush1.msra.mxu0 0.0
    %443 = vmatprep.subr.mxu0 0.0
    %444 = vmatpush1.msra.mxu0 0.0
    %445 = vmatprep.subr.mxu0 0.0
    %446 = vmatpush1.msra.mxu0 0.0
    %447 = vmatprep.subr.mxu0 0.0
    %448 = vmatpush1.msra.mxu0 0.0
    %449 = vmatprep.mubr.f32.mxu0 0.0
    %450 = vmatmul.mubr.f32.gmra.mrb[0].mxu0 %v199
    %v451 = vpop.f32.mrb[0].mxu0
    %v452 = vadd.f32 %v268, %v451
    %v453 = vpop.f32.mrb[0].mxu0
    %454 = vmatprep.mubr.f32.mxu0 0.0
    %455 = vmatmul.mubr.f32.gmra.mrb[0].mxu0 %v200
    %v456 = vpop.f32.mrb[0].mxu0
    %v457 = vadd.f32 %v268, %v456
    %v458 = vpop.f32.mrb[0].mxu0
    %459 = vmatprep.mubr.f32.mxu0 0.0
    %460 = vmatmul.mubr.f32.gmra.mrb[0].mxu0 %v201
    %v461 = vpop.f32.mrb[0].mxu0
    %v462 = vadd.f32 %v268, %v461
    %v463 = vpop.f32.mrb[0].mxu0
    %464 = vmatprep.mubr.f32.mxu0 0.0
    %465 = vmatmul.mubr.f32.gmra.mrb[0].mxu0 %v202
    %v466 = vpop.f32.mrb[0].mxu0
    %v467 = vadd.f32 %v268, %v466
    %v468 = vpop.f32.mrb[0].mxu0
    %469 = vmatprep.mubr.f32.mxu0 0.0
    %470 = vmatmul.mubr.f32.gmra.mrb[0].mxu0 %v203
    %v471 = vpop.f32.mrb[0].mxu0
    %v472 = vadd.f32 %v268, %v471
    %v473 = vpop.f32.mrb[0].mxu0
    %474 = vmatprep.mubr.f32.mxu0 0.0
    %475 = vmatmul.mubr.f32.gmra.mrb[0].mxu0 %v204
    %v476 = vpop.f32.mrb[0].mxu0
    %v477 = vadd.f32 %v268, %v476
    %v478 = vpop.f32.mrb[0].mxu0
    %479 = vmatprep.mubr.f32.mxu0 0.0
    %480 = vmatmul.mubr.f32.gmra.mrb[0].mxu0 %v205
    %v481 = vpop.f32.mrb[0].mxu0
    %v482 = vadd.f32 %v268, %v481
    %v483 = vpop.f32.mrb[0].mxu0
    %484 = vmatprep.mubr.f32.mxu0 0.0
    %485 = vmatmul.mubr.f32.gmra.mrb[0].mxu0 %v206
    %v486 = vpop.f32.mrb[0].mxu0
    %v487 = vadd.f32 %v268, %v486
    %v488 = vpop.f32.mrb[0].mxu0
    %489 = vdwg.mxu0
    %490 = vst [vmem:[#allocation2] sm:$0xff] %v339
    %491 = vst [vmem:[#allocation2 + $0x8] sm:$0xff] %v341
    %492 = vst [vmem:[#allocation2 + $0x10] sm:$0xff] %v452
    %493 = vst [vmem:[#allocation2 + $0x18] sm:$0xff] %v345
    %494 = vst [vmem:[#allocation2 + $0x20] sm:$0xff] %v347
    %495 = vst [vmem:[#allocation2 + $0x28] sm:$0xff] %v457
    %496 = vst [vmem:[#allocation2 + $0x30] sm:$0xff] %v351
    %497 = vst [vmem:[#allocation2 + $0x38] sm:$0xff] %v353
    %498 = vst [vmem:[#allocation2 + $0x40] sm:$0xff] %v462
    %499 = vst [vmem:[#allocation2 + $0x48] sm:$0xff] %v357
    %500 = vst [vmem:[#allocation2 + $0x50] sm:$0xff] %v359
    %501 = vst [vmem:[#allocation2 + $0x58] sm:$0xff] %v467
    %502 = vst [vmem:[#allocation2 + $0x60] sm:$0xff] %v363
    %503 = vst [vmem:[#allocation2 + $0x68] sm:$0xff] %v365
    %504 = vst [vmem:[#allocation2 + $0x70] sm:$0xff] %v472
    %505 = vst [vmem:[#allocation2 + $0x78] sm:$0xff] %v369
    %506 = vst [vmem:[#allocation2 + $0x80] sm:$0xff] %v371
    %507 = vst [vmem:[#allocation2 + $0x88] sm:$0xff] %v477
    %508 = vst [vmem:[#allocation2 + $0x90] sm:$0xff] %v375
    %509 = vst [vmem:[#allocation2 + $0x98] sm:$0xff] %v377
    %510 = vst [vmem:[#allocation2 + $0xa0] sm:$0xff] %v482
    %511 = vst [vmem:[#allocation2 + $0xa8] sm:$0xff] %v381
    %512 = vst [vmem:[#allocation2 + $0xb0] sm:$0xff] %v383
    %513 = vst [vmem:[#allocation2 + $0xb8] sm:$0xff] %v487
    loop: start=0, step=1, limit=8
    $region118: #{tpu_custom_call.1} parent=1 // loop_pre_header
      _
    $region119: #{tpu_custom_call.1} parent=1 // loop_header
      %s515 = sphi 0, %s519
      %p516 = scmp.ge.s32.totalorder %s515, 8
      %v520 = vphi 0.0, %v753
    $region120: #{tpu_custom_call.1} parent=1 // loop_header_branch
      %518 = sbr.rel (%p516) target = $region124
    $region121: #{tpu_custom_call.1} parent=1 // loop_body
      %s521 = smul.u32 %s515, 3
      %s522 = smul.addr %s521, 8
      %s523 = scalar_lea.vmem [#allocation2], %s522
      %v524 = vld [vmem:[%s523] sm:$0xff]
      %v525 = vld [vmem:[%s523 + $0x8] sm:$0xff]
      %v526 = vld [vmem:[%s523 + $0x10] sm:$0xff]
      %v527 = vld [vmem:[#allocation9] sm:$0xff]
      %v528 = vld [vmem:[#allocation9 + $0x8] sm:$0xff]
      %v529 = vld [vmem:[#allocation9 + $0x10] sm:$0xff]
      %v530 = vld [vmem:[#allocation9 + $0x18] sm:$0xff]
      %v531 = vld [vmem:[#allocation9 + $0x20] sm:$0xff]
      %v532 = vld [vmem:[#allocation9 + $0x28] sm:$0xff]
      %v533 = vld [vmem:[#allocation9 + $0x30] sm:$0xff]
      %v534 = vld [vmem:[#allocation9 + $0x38] sm:$0xff]
      %v535 = vld [vmem:[#allocation9 + $0x40] sm:$0xff]
      %v536 = vld [vmem:[#allocation9 + $0x48] sm:$0xff]
      %v537 = vld [vmem:[#allocation9 + $0x50] sm:$0xff]
      %v538 = vld [vmem:[#allocation9 + $0x58] sm:$0xff]
      %v539 = vld [vmem:[#allocation9 + $0x60] sm:$0xff]
      %v540 = vld [vmem:[#allocation9 + $0x68] sm:$0xff]
      %v541 = vld [vmem:[#allocation9 + $0x70] sm:$0xff]
      %v542 = vld [vmem:[#allocation9 + $0x78] sm:$0xff]
      %v543 = vld [vmem:[#allocation9 + $0x80] sm:$0xff]
      %v544 = vld [vmem:[#allocation9 + $0x88] sm:$0xff]
      %v545 = vld [vmem:[#allocation9 + $0x90] sm:$0xff]
      %v546 = vld [vmem:[#allocation9 + $0x98] sm:$0xff]
      %v547 = vld [vmem:[#allocation9 + $0xa0] sm:$0xff]
      %v548 = vld [vmem:[#allocation9 + $0xa8] sm:$0xff]
      %v549 = vld [vmem:[#allocation9 + $0xb0] sm:$0xff]
      %v550 = vld [vmem:[#allocation9 + $0xb8] sm:$0xff]
      %v551 = vld [vmem:[#allocation9 + $0xc0] sm:$0xff]
      %v552 = vld [vmem:[#allocation9 + $0xc8] sm:$0xff]
      %v553 = vld [vmem:[#allocation9 + $0xd0] sm:$0xff]
      %v554 = vld [vmem:[#allocation9 + $0xd8] sm:$0xff]
      %v555 = vld [vmem:[#allocation9 + $0xe0] sm:$0xff]
      %v556 = vld [vmem:[#allocation9 + $0xe8] sm:$0xff]
      %v557 = vld [vmem:[#allocation9 + $0xf0] sm:$0xff]
      %v558 = vld [vmem:[#allocation9 + $0xf8] sm:$0xff]
      %v559 = vld [vmem:[#allocation9 + $0x100] sm:$0xff]
      %v560 = vld [vmem:[#allocation9 + $0x108] sm:$0xff]
      %v561 = vld [vmem:[#allocation9 + $0x110] sm:$0xff]
      %v562 = vld [vmem:[#allocation9 + $0x118] sm:$0xff]
      %v563 = vld [vmem:[#allocation9 + $0x120] sm:$0xff]
      %v564 = vld [vmem:[#allocation9 + $0x128] sm:$0xff]
      %v565 = vld [vmem:[#allocation9 + $0x130] sm:$0xff]
      %v566 = vld [vmem:[#allocation9 + $0x138] sm:$0xff]
      %v567 = vld [vmem:[#allocation9 + $0x140] sm:$0xff]
      %v568 = vld [vmem:[#allocation9 + $0x148] sm:$0xff]
      %v569 = vld [vmem:[#allocation9 + $0x150] sm:$0xff]
      %v570 = vld [vmem:[#allocation9 + $0x158] sm:$0xff]
      %v571 = vld [vmem:[#allocation9 + $0x160] sm:$0xff]
      %v572 = vld [vmem:[#allocation9 + $0x168] sm:$0xff]
      %v573 = vld [vmem:[#allocation9 + $0x170] sm:$0xff]
      %v574 = vld [vmem:[#allocation9 + $0x178] sm:$0xff]
      %v575 = vld [vmem:[%s4] sm:$0x7]
      %v577 = vlaneseq
      %v578 = vshrl.u32 %v577, 7
      %v579 = vsub.s32 0, %v578
      %v580 = vrot.slane %v575, %v579
      %v581 = vlaneseq
      %v582 = vshrl.u32 %v581, 7
      %v583 = vsub.s32 1, %v582
      %v584 = vrot.slane %v575, %v583
      %v585 = vlaneseq
      %v586 = vshrl.u32 %v585, 7
      %v587 = vsub.s32 2, %v586
      %v588 = vrot.slane %v575, %v587
      %592 = vmatprep.subr.mxu0 %v528
      %593 = vmatpush1.msra.mxu0 %v527
      %594 = vmatprep.subr.mxu0 %v531
      %595 = vmatpush1.msra.mxu0 %v530
      %596 = vmatprep.subr.mxu0 %v534
      %597 = vmatpush1.msra.mxu0 %v533
      %598 = vmatprep.subr.mxu0 %v537
      %599 = vmatpush1.msra.mxu0 %v536
      %600 = vmatprep.subr.mxu0 %v540
      %601 = vmatpush1.msra.mxu0 %v539
      %602 = vmatprep.subr.mxu0 %v543
      %603 = vmatpush1.msra.mxu0 %v542
      %604 = vmatprep.subr.mxu0 %v546
      %605 = vmatpush1.msra.mxu0 %v545
      %606 = vmatprep.subr.mxu0 %v549
      %607 = vmatpush1.msra.mxu0 %v548
      %608 = vmatprep.subr.mxu0 %v552
      %609 = vmatpush1.msra.mxu0 %v551
      %610 = vmatprep.subr.mxu0 %v555
      %611 = vmatpush1.msra.mxu0 %v554
      %612 = vmatprep.subr.mxu0 %v558
      %613 = vmatpush1.msra.mxu0 %v557
      %614 = vmatprep.subr.mxu0 %v561
      %615 = vmatpush1.msra.mxu0 %v560
      %616 = vmatprep.subr.mxu0 %v564
      %617 = vmatpush1.msra.mxu0 %v563
      %618 = vmatprep.subr.mxu0 %v567
      %619 = vmatpush1.msra.mxu0 %v566
      %620 = vmatprep.subr.mxu0 %v570
      %621 = vmatpush1.msra.mxu0 %v569
      %622 = vmatprep.subr.mxu0 %v573
      %623 = vmatpush1.msra.mxu0 %v572
      %624 = vmatprep.subr.mxu0 0.0
      %625 = vmatpush1.msra.mxu0 0.0
      %626 = vmatprep.subr.mxu0 0.0
      %627 = vmatpush1.msra.mxu0 0.0
      %628 = vmatprep.subr.mxu0 0.0
      %629 = vmatpush1.msra.mxu0 0.0
      %630 = vmatprep.subr.mxu0 0.0
      %631 = vmatpush1.msra.mxu0 0.0
      %632 = vmatprep.subr.mxu0 0.0
      %633 = vmatpush1.msra.mxu0 0.0
      %634 = vmatprep.subr.mxu0 0.0
      %635 = vmatpush1.msra.mxu0 0.0
      %636 = vmatprep.subr.mxu0 0.0
      %637 = vmatpush1.msra.mxu0 0.0
      %638 = vmatprep.subr.mxu0 0.0
      %639 = vmatpush1.msra.mxu0 0.0
      %640 = vmatprep.subr.mxu0 0.0
      %641 = vmatpush1.msra.mxu0 0.0
      %642 = vmatprep.subr.mxu0 0.0
      %643 = vmatpush1.msra.mxu0 0.0
      %644 = vmatprep.subr.mxu0 0.0
      %645 = vmatpush1.msra.mxu0 0.0
      %646 = vmatprep.subr.mxu0 0.0
      %647 = vmatpush1.msra.mxu0 0.0
      %648 = vmatprep.subr.mxu0 0.0
      %649 = vmatpush1.msra.mxu0 0.0
      %650 = vmatprep.subr.mxu0 0.0
      %651 = vmatpush1.msra.mxu0 0.0
      %652 = vmatprep.subr.mxu0 0.0
      %653 = vmatpush1.msra.mxu0 0.0
      %654 = vmatprep.subr.mxu0 0.0
      %655 = vmatpush1.msra.mxu0 0.0
      %656 = vmatprep.mubr.f32.mxu0 0.0
      %657 = vmatmul.mubr.f32.gmra.mrb[0].mxu0 %v520
      %v658 = vpop.f32.mrb[0].mxu0
      %v659 = vadd.f32 %v580, %v658
      %v660 = vpop.f32.mrb[0].mxu0
      %v661 = vadd.f32 %v584, %v660
      %662 = vdwg.mxu0
      %663 = vmatprep.subr.mxu0 0.0
      %664 = vmatpush1.msra.mxu0 %v529
      %665 = vmatprep.subr.mxu0 0.0
      %666 = vmatpush1.msra.mxu0 %v532
      %667 = vmatprep.subr.mxu0 0.0
      %668 = vmatpush1.msra.mxu0 %v535
      %669 = vmatprep.subr.mxu0 0.0
      %670 = vmatpush1.msra.mxu0 %v538
      %671 = vmatprep.subr.mxu0 0.0
      %672 = vmatpush1.msra.mxu0 %v541
      %673 = vmatprep.subr.mxu0 0.0
      %674 = vmatpush1.msra.mxu0 %v544
      %675 = vmatprep.subr.mxu0 0.0
      %676 = vmatpush1.msra.mxu0 %v547
      %677 = vmatprep.subr.mxu0 0.0
      %678 = vmatpush1.msra.mxu0 %v550
      %679 = vmatprep.subr.mxu0 0.0
      %680 = vmatpush1.msra.mxu0 %v553
      %681 = vmatprep.subr.mxu0 0.0
      %682 = vmatpush1.msra.mxu0 %v556
      %683 = vmatprep.subr.mxu0 0.0
      %684 = vmatpush1.msra.mxu0 %v559
      %685 = vmatprep.subr.mxu0 0.0
      %686 = vmatpush1.msra.mxu0 %v562
      %687 = vmatprep.subr.mxu0 0.0
      %688 = vmatpush1.msra.mxu0 %v565
      %689 = vmatprep.subr.mxu0 0.0
      %690 = vmatpush1.msra.mxu0 %v568
      %691 = vmatprep.subr.mxu0 0.0
      %692 = vmatpush1.msra.mxu0 %v571
      %693 = vmatprep.subr.mxu0 0.0
      %694 = vmatpush1.msra.mxu0 %v574
      %695 = vmatprep.subr.mxu0 0.0
      %696 = vmatpush1.msra.mxu0 0.0
      %697 = vmatprep.subr.mxu0 0.0
      %698 = vmatpush1.msra.mxu0 0.0
      %699 = vmatprep.subr.mxu0 0.0
      %700 = vmatpush1.msra.mxu0 0.0
      %701 = vmatprep.subr.mxu0 0.0
      %702 = vmatpush1.msra.mxu0 0.0
      %703 = vmatprep.subr.mxu0 0.0
      %704 = vmatpush1.msra.mxu0 0.0
      %705 = vmatprep.subr.mxu0 0.0
      %706 = vmatpush1.msra.mxu0 0.0
      %707 = vmatprep.subr.mxu0 0.0
      %708 = vmatpush1.msra.mxu0 0.0
      %709 = vmatprep.subr.mxu0 0.0
      %710 = vmatpush1.msra.mxu0 0.0
      %711 = vmatprep.subr.mxu0 0.0
      %712 = vmatpush1.msra.mxu0 0.0
      %713 = vmatprep.subr.mxu0 0.0
      %714 = vmatpush1.msra.mxu0 0.0
      %715 = vmatprep.subr.mxu0 0.0
      %716 = vmatpush1.msra.mxu0 0.0
      %717 = vmatprep.subr.mxu0 0.0
      %718 = vmatpush1.msra.mxu0 0.0
      %719 = vmatprep.subr.mxu0 0.0
      %720 = vmatpush1.msra.mxu0 0.0
      %721 = vmatprep.subr.mxu0 0.0
      %722 = vmatpush1.msra.mxu0 0.0
      %723 = vmatprep.subr.mxu0 0.0
      %724 = vmatpush1.msra.mxu0 0.0
      %725 = vmatprep.subr.mxu0 0.0
      %726 = vmatpush1.msra.mxu0 0.0
      %727 = vmatprep.mubr.f32.mxu0 0.0
      %728 = vmatmul.mubr.f32.gmra.mrb[0].mxu0 %v520
      %v729 = vpop.f32.mrb[0].mxu0
      %v730 = vadd.f32 %v588, %v729
      %v731 = vpop.f32.mrb[0].mxu0
      %732 = vdwg.mxu0
      %v733 = vadd.f32 %v524, %v659
      %v734 = vxor.u32 %v733, 2147483648
      %v735 = vmul.f32 %v734, 1.442695
      %v736 = vpow.pop %v735
      %v737 = vadd.f32 %v736, 1.0
      %v738 = vrcp.pop %v737
      %v739 = vmul.f32 1.0, %v738
      %v740 = vadd.f32 %v525, %v661
      %v741 = vxor.u32 %v740, 2147483648
      %v742 = vmul.f32 %v741, 1.442695
      %v743 = vpow.pop %v742
      %v744 = vadd.f32 %v743, 1.0
      %v745 = vrcp.pop %v744
      %v746 = vmul.f32 1.0, %v745
      %v747 = vmul.f32 %v739, %v730
      %v748 = vadd.f32 %v526, %v747
      %v749 = vtanh.pop %v748
      %v750 = vsub.f32 1.0, %v746
      %v751 = vmul.f32 %v750, %v749
      %v752 = vmul.f32 %v746, %v520
      %v753 = vadd.f32 %v751, %v752
      %s754 = smul.u32 %s515, 8
      %s755 = scalar_lea.vmem [#allocation3], %s754
      %756 = vst [vmem:[%s755] sm:$0xff] %v753
    $region122: #{tpu_custom_call.1} parent=1 // loop_footer
      %s519 = sadd.s32 1, %s515
    $region123: #{tpu_custom_call.1} parent=1 // loop_footer_branch
      %514 = sbr.rel target = $region119
    $region124: #{tpu_custom_call.1} parent=1 // loop_exit
      _
    %v757 = vld [vmem:[#allocation3] sm:$0xff]
    %v758 = vld [vmem:[#allocation3 + $0x8] sm:$0xff]
    %v759 = vld [vmem:[#allocation3 + $0x10] sm:$0xff]
    %v760 = vld [vmem:[#allocation3 + $0x18] sm:$0xff]
    %v761 = vld [vmem:[#allocation3 + $0x20] sm:$0xff]
    %v762 = vld [vmem:[#allocation3 + $0x28] sm:$0xff]
    %v763 = vld [vmem:[#allocation3 + $0x30] sm:$0xff]
    %v764 = vld [vmem:[#allocation3 + $0x38] sm:$0xff]
    %v765 = vld [vmem:[#allocation10] sm:$0xff]
    %v766 = vld [vmem:[#allocation10 + $0x8] sm:$0xff]
    %v767 = vld [vmem:[#allocation10 + $0x10] sm:$0xff]
    %v768 = vld [vmem:[#allocation10 + $0x18] sm:$0xff]
    %v769 = vld [vmem:[#allocation10 + $0x20] sm:$0xff]
    %v770 = vld [vmem:[#allocation10 + $0x28] sm:$0xff]
    %v771 = vld [vmem:[#allocation10 + $0x30] sm:$0xff]
    %v772 = vld [vmem:[#allocation10 + $0x38] sm:$0xff]
    %v773 = vld [vmem:[#allocation10 + $0x40] sm:$0xff]
    %v774 = vld [vmem:[#allocation10 + $0x48] sm:$0xff]
    %v775 = vld [vmem:[#allocation10 + $0x50] sm:$0xff]
    %v776 = vld [vmem:[#allocation10 + $0x58] sm:$0xff]
    %v777 = vld [vmem:[#allocation10 + $0x60] sm:$0xff]
    %v778 = vld [vmem:[#allocation10 + $0x68] sm:$0xff]
    %v779 = vld [vmem:[#allocation10 + $0x70] sm:$0xff]
    %v780 = vld [vmem:[#allocation10 + $0x78] sm:$0xff]
    %v781 = vld [vmem:[#allocation10 + $0x80] sm:$0xff]
    %v782 = vld [vmem:[#allocation10 + $0x88] sm:$0xff]
    %v783 = vld [vmem:[#allocation10 + $0x90] sm:$0xff]
    %v784 = vld [vmem:[#allocation10 + $0x98] sm:$0xff]
    %v785 = vld [vmem:[#allocation10 + $0xa0] sm:$0xff]
    %v786 = vld [vmem:[#allocation10 + $0xa8] sm:$0xff]
    %v787 = vld [vmem:[#allocation10 + $0xb0] sm:$0xff]
    %v788 = vld [vmem:[#allocation10 + $0xb8] sm:$0xff]
    %v789 = vld [vmem:[#allocation10 + $0xc0] sm:$0xff]
    %v790 = vld [vmem:[#allocation10 + $0xc8] sm:$0xff]
    %v791 = vld [vmem:[#allocation10 + $0xd0] sm:$0xff]
    %v792 = vld [vmem:[#allocation10 + $0xd8] sm:$0xff]
    %v793 = vld [vmem:[#allocation10 + $0xe0] sm:$0xff]
    %v794 = vld [vmem:[#allocation10 + $0xe8] sm:$0xff]
    %v795 = vld [vmem:[#allocation10 + $0xf0] sm:$0xff]
    %v796 = vld [vmem:[#allocation10 + $0xf8] sm:$0xff]
    %v797 = vld [vmem:[#allocation10 + $0x100] sm:$0xff]
    %v798 = vld [vmem:[#allocation10 + $0x108] sm:$0xff]
    %v799 = vld [vmem:[#allocation10 + $0x110] sm:$0xff]
    %v800 = vld [vmem:[#allocation10 + $0x118] sm:$0xff]
    %v801 = vld [vmem:[#allocation10 + $0x120] sm:$0xff]
    %v802 = vld [vmem:[#allocation10 + $0x128] sm:$0xff]
    %v803 = vld [vmem:[#allocation10 + $0x130] sm:$0xff]
    %v804 = vld [vmem:[#allocation10 + $0x138] sm:$0xff]
    %v805 = vld [vmem:[#allocation10 + $0x140] sm:$0xff]
    %v806 = vld [vmem:[#allocation10 + $0x148] sm:$0xff]
    %v807 = vld [vmem:[#allocation10 + $0x150] sm:$0xff]
    %v808 = vld [vmem:[#allocation10 + $0x158] sm:$0xff]
    %v809 = vld [vmem:[#allocation10 + $0x160] sm:$0xff]
    %v810 = vld [vmem:[#allocation10 + $0x168] sm:$0xff]
    %v811 = vld [vmem:[#allocation10 + $0x170] sm:$0xff]
    %v812 = vld [vmem:[#allocation10 + $0x178] sm:$0xff]
    %v813 = vld [vmem:[%s7] sm:$0x7]
    %v815 = vlaneseq
    %v816 = vshrl.u32 %v815, 7
    %v817 = vsub.s32 0, %v816
    %v818 = vrot.slane %v813, %v817
    %v819 = vlaneseq
    %v820 = vshrl.u32 %v819, 7
    %v821 = vsub.s32 1, %v820
    %v822 = vrot.slane %v813, %v821
    %v823 = vlaneseq
    %v824 = vshrl.u32 %v823, 7
    %v825 = vsub.s32 2, %v824
    %v826 = vrot.slane %v813, %v825
    %830 = vmatprep.subr.mxu0 %v766
    %831 = vmatpush1.msra.mxu0 %v765
    %832 = vmatprep.subr.mxu0 %v769
    %833 = vmatpush1.msra.mxu0 %v768
    %834 = vmatprep.subr.mxu0 %v772
    %835 = vmatpush1.msra.mxu0 %v771
    %836 = vmatprep.subr.mxu0 %v775
    %837 = vmatpush1.msra.mxu0 %v774
    %838 = vmatprep.subr.mxu0 %v778
    %839 = vmatpush1.msra.mxu0 %v777
    %840 = vmatprep.subr.mxu0 %v781
    %841 = vmatpush1.msra.mxu0 %v780
    %842 = vmatprep.subr.mxu0 %v784
    %843 = vmatpush1.msra.mxu0 %v783
    %844 = vmatprep.subr.mxu0 %v787
    %845 = vmatpush1.msra.mxu0 %v786
    %846 = vmatprep.subr.mxu0 %v790
    %847 = vmatpush1.msra.mxu0 %v789
    %848 = vmatprep.subr.mxu0 %v793
    %849 = vmatpush1.msra.mxu0 %v792
    %850 = vmatprep.subr.mxu0 %v796
    %851 = vmatpush1.msra.mxu0 %v795
    %852 = vmatprep.subr.mxu0 %v799
    %853 = vmatpush1.msra.mxu0 %v798
    %854 = vmatprep.subr.mxu0 %v802
    %855 = vmatpush1.msra.mxu0 %v801
    %856 = vmatprep.subr.mxu0 %v805
    %857 = vmatpush1.msra.mxu0 %v804
    %858 = vmatprep.subr.mxu0 %v808
    %859 = vmatpush1.msra.mxu0 %v807
    %860 = vmatprep.subr.mxu0 %v811
    %861 = vmatpush1.msra.mxu0 %v810
    %862 = vmatprep.subr.mxu0 0.0
    %863 = vmatpush1.msra.mxu0 0.0
    %864 = vmatprep.subr.mxu0 0.0
    %865 = vmatpush1.msra.mxu0 0.0
    %866 = vmatprep.subr.mxu0 0.0
    %867 = vmatpush1.msra.mxu0 0.0
    %868 = vmatprep.subr.mxu0 0.0
    %869 = vmatpush1.msra.mxu0 0.0
    %870 = vmatprep.subr.mxu0 0.0
    %871 = vmatpush1.msra.mxu0 0.0
    %872 = vmatprep.subr.mxu0 0.0
    %873 = vmatpush1.msra.mxu0 0.0
    %874 = vmatprep.subr.mxu0 0.0
    %875 = vmatpush1.msra.mxu0 0.0
    %876 = vmatprep.subr.mxu0 0.0
    %877 = vmatpush1.msra.mxu0 0.0
    %878 = vmatprep.subr.mxu0 0.0
    %879 = vmatpush1.msra.mxu0 0.0
    %880 = vmatprep.subr.mxu0 0.0
    %881 = vmatpush1.msra.mxu0 0.0
    %882 = vmatprep.subr.mxu0 0.0
    %883 = vmatpush1.msra.mxu0 0.0
    %884 = vmatprep.subr.mxu0 0.0
    %885 = vmatpush1.msra.mxu0 0.0
    %886 = vmatprep.subr.mxu0 0.0
    %887 = vmatpush1.msra.mxu0 0.0
    %888 = vmatprep.subr.mxu0 0.0
    %889 = vmatpush1.msra.mxu0 0.0
    %890 = vmatprep.subr.mxu0 0.0
    %891 = vmatpush1.msra.mxu0 0.0
    %892 = vmatprep.subr.mxu0 0.0
    %893 = vmatpush1.msra.mxu0 0.0
    %894 = vmatprep.mubr.f32.mxu0 0.0
    %895 = vmatmul.mubr.f32.gmra.mrb[0].mxu0 %v757
    %v896 = vpop.f32.mrb[0].mxu0
    %v897 = vadd.f32 %v818, %v896
    %v898 = vpop.f32.mrb[0].mxu0
    %v899 = vadd.f32 %v822, %v898
    %900 = vmatprep.mubr.f32.mxu0 0.0
    %901 = vmatmul.mubr.f32.gmra.mrb[0].mxu0 %v758
    %v902 = vpop.f32.mrb[0].mxu0
    %v903 = vadd.f32 %v818, %v902
    %v904 = vpop.f32.mrb[0].mxu0
    %v905 = vadd.f32 %v822, %v904
    %906 = vmatprep.mubr.f32.mxu0 0.0
    %907 = vmatmul.mubr.f32.gmra.mrb[0].mxu0 %v759
    %v908 = vpop.f32.mrb[0].mxu0
    %v909 = vadd.f32 %v818, %v908
    %v910 = vpop.f32.mrb[0].mxu0
    %v911 = vadd.f32 %v822, %v910
    %912 = vmatprep.mubr.f32.mxu0 0.0
    %913 = vmatmul.mubr.f32.gmra.mrb[0].mxu0 %v760
    %v914 = vpop.f32.mrb[0].mxu0
    %v915 = vadd.f32 %v818, %v914
    %v916 = vpop.f32.mrb[0].mxu0
    %v917 = vadd.f32 %v822, %v916
    %918 = vmatprep.mubr.f32.mxu0 0.0
    %919 = vmatmul.mubr.f32.gmra.mrb[0].mxu0 %v761
    %v920 = vpop.f32.mrb[0].mxu0
    %v921 = vadd.f32 %v818, %v920
    %v922 = vpop.f32.mrb[0].mxu0
    %v923 = vadd.f32 %v822, %v922
    %924 = vmatprep.mubr.f32.mxu0 0.0
    %925 = vmatmul.mubr.f32.gmra.mrb[0].mxu0 %v762
    %v926 = vpop.f32.mrb[0].mxu0
    %v927 = vadd.f32 %v818, %v926
    %v928 = vpop.f32.mrb[0].mxu0
    %v929 = vadd.f32 %v822, %v928
    %930 = vmatprep.mubr.f32.mxu0 0.0
    %931 = vmatmul.mubr.f32.gmra.mrb[0].mxu0 %v763
    %v932 = vpop.f32.mrb[0].mxu0
    %v933 = vadd.f32 %v818, %v932
    %v934 = vpop.f32.mrb[0].mxu0
    %v935 = vadd.f32 %v822, %v934
    %936 = vmatprep.mubr.f32.mxu0 0.0
    %937 = vmatmul.mubr.f32.gmra.mrb[0].mxu0 %v764
    %v938 = vpop.f32.mrb[0].mxu0
    %v939 = vadd.f32 %v818, %v938
    %v940 = vpop.f32.mrb[0].mxu0
    %v941 = vadd.f32 %v822, %v940
    %942 = vdwg.mxu0
    %943 = vmatprep.subr.mxu0 0.0
    %944 = vmatpush1.msra.mxu0 %v767
    %945 = vmatprep.subr.mxu0 0.0
    %946 = vmatpush1.msra.mxu0 %v770
    %947 = vmatprep.subr.mxu0 0.0
    %948 = vmatpush1.msra.mxu0 %v773
    %949 = vmatprep.subr.mxu0 0.0
    %950 = vmatpush1.msra.mxu0 %v776
    %951 = vmatprep.subr.mxu0 0.0
    %952 = vmatpush1.msra.mxu0 %v779
    %953 = vmatprep.subr.mxu0 0.0
    %954 = vmatpush1.msra.mxu0 %v782
    %955 = vmatprep.subr.mxu0 0.0
    %956 = vmatpush1.msra.mxu0 %v785
    %957 = vmatprep.subr.mxu0 0.0
    %958 = vmatpush1.msra.mxu0 %v788
    %959 = vmatprep.subr.mxu0 0.0
    %960 = vmatpush1.msra.mxu0 %v791
    %961 = vmatprep.subr.mxu0 0.0
    %962 = vmatpush1.msra.mxu0 %v794
    %963 = vmatprep.subr.mxu0 0.0
    %964 = vmatpush1.msra.mxu0 %v797
    %965 = vmatprep.subr.mxu0 0.0
    %966 = vmatpush1.msra.mxu0 %v800
    %967 = vmatprep.subr.mxu0 0.0
    %968 = vmatpush1.msra.mxu0 %v803
    %969 = vmatprep.subr.mxu0 0.0
    %970 = vmatpush1.msra.mxu0 %v806
    %971 = vmatprep.subr.mxu0 0.0
    %972 = vmatpush1.msra.mxu0 %v809
    %973 = vmatprep.subr.mxu0 0.0
    %974 = vmatpush1.msra.mxu0 %v812
    %975 = vmatprep.subr.mxu0 0.0
    %976 = vmatpush1.msra.mxu0 0.0
    %977 = vmatprep.subr.mxu0 0.0
    %978 = vmatpush1.msra.mxu0 0.0
    %979 = vmatprep.subr.mxu0 0.0
    %980 = vmatpush1.msra.mxu0 0.0
    %981 = vmatprep.subr.mxu0 0.0
    %982 = vmatpush1.msra.mxu0 0.0
    %983 = vmatprep.subr.mxu0 0.0
    %984 = vmatpush1.msra.mxu0 0.0
    %985 = vmatprep.subr.mxu0 0.0
    %986 = vmatpush1.msra.mxu0 0.0
    %987 = vmatprep.subr.mxu0 0.0
    %988 = vmatpush1.msra.mxu0 0.0
    %989 = vmatprep.subr.mxu0 0.0
    %990 = vmatpush1.msra.mxu0 0.0
    %991 = vmatprep.subr.mxu0 0.0
    %992 = vmatpush1.msra.mxu0 0.0
    %993 = vmatprep.subr.mxu0 0.0
    %994 = vmatpush1.msra.mxu0 0.0
    %995 = vmatprep.subr.mxu0 0.0
    %996 = vmatpush1.msra.mxu0 0.0
    %997 = vmatprep.subr.mxu0 0.0
    %998 = vmatpush1.msra.mxu0 0.0
    %999 = vmatprep.subr.mxu0 0.0
    %1000 = vmatpush1.msra.mxu0 0.0
    %1001 = vmatprep.subr.mxu0 0.0
    %1002 = vmatpush1.msra.mxu0 0.0
    %1003 = vmatprep.subr.mxu0 0.0
    %1004 = vmatpush1.msra.mxu0 0.0
    %1005 = vmatprep.subr.mxu0 0.0
    %1006 = vmatpush1.msra.mxu0 0.0
    %1007 = vmatprep.mubr.f32.mxu0 0.0
    %1008 = vmatmul.mubr.f32.gmra.mrb[0].mxu0 %v757
    %v1009 = vpop.f32.mrb[0].mxu0
    %v1010 = vadd.f32 %v826, %v1009
    %v1011 = vpop.f32.mrb[0].mxu0
    %1012 = vmatprep.mubr.f32.mxu0 0.0
    %1013 = vmatmul.mubr.f32.gmra.mrb[0].mxu0 %v758
    %v1014 = vpop.f32.mrb[0].mxu0
    %v1015 = vadd.f32 %v826, %v1014
    %v1016 = vpop.f32.mrb[0].mxu0
    %1017 = vmatprep.mubr.f32.mxu0 0.0
    %1018 = vmatmul.mubr.f32.gmra.mrb[0].mxu0 %v759
    %v1019 = vpop.f32.mrb[0].mxu0
    %v1020 = vadd.f32 %v826, %v1019
    %v1021 = vpop.f32.mrb[0].mxu0
    %1022 = vmatprep.mubr.f32.mxu0 0.0
    %1023 = vmatmul.mubr.f32.gmra.mrb[0].mxu0 %v760
    %v1024 = vpop.f32.mrb[0].mxu0
    %v1025 = vadd.f32 %v826, %v1024
    %v1026 = vpop.f32.mrb[0].mxu0
    %1027 = vmatprep.mubr.f32.mxu0 0.0
    %1028 = vmatmul.mubr.f32.gmra.mrb[0].mxu0 %v761
    %v1029 = vpop.f32.mrb[0].mxu0
    %v1030 = vadd.f32 %v826, %v1029
    %v1031 = vpop.f32.mrb[0].mxu0
    %1032 = vmatprep.mubr.f32.mxu0 0.0
    %1033 = vmatmul.mubr.f32.gmra.mrb[0].mxu0 %v762
    %v1034 = vpop.f32.mrb[0].mxu0
    %v1035 = vadd.f32 %v826, %v1034
    %v1036 = vpop.f32.mrb[0].mxu0
    %1037 = vmatprep.mubr.f32.mxu0 0.0
    %1038 = vmatmul.mubr.f32.gmra.mrb[0].mxu0 %v763
    %v1039 = vpop.f32.mrb[0].mxu0
    %v1040 = vadd.f32 %v826, %v1039
    %v1041 = vpop.f32.mrb[0].mxu0
    %1042 = vmatprep.mubr.f32.mxu0 0.0
    %1043 = vmatmul.mubr.f32.gmra.mrb[0].mxu0 %v764
    %v1044 = vpop.f32.mrb[0].mxu0
    %v1045 = vadd.f32 %v826, %v1044
    %v1046 = vpop.f32.mrb[0].mxu0
    %1047 = vdwg.mxu0
    %1048 = vst [vmem:[#allocation2] sm:$0xff] %v897
    %1049 = vst [vmem:[#allocation2 + $0x8] sm:$0xff] %v899
    %1050 = vst [vmem:[#allocation2 + $0x10] sm:$0xff] %v1010
    %1051 = vst [vmem:[#allocation2 + $0x18] sm:$0xff] %v903
    %1052 = vst [vmem:[#allocation2 + $0x20] sm:$0xff] %v905
    %1053 = vst [vmem:[#allocation2 + $0x28] sm:$0xff] %v1015
    %1054 = vst [vmem:[#allocation2 + $0x30] sm:$0xff] %v909
    %1055 = vst [vmem:[#allocation2 + $0x38] sm:$0xff] %v911
    %1056 = vst [vmem:[#allocation2 + $0x40] sm:$0xff] %v1020
    %1057 = vst [vmem:[#allocation2 + $0x48] sm:$0xff] %v915
    %1058 = vst [vmem:[#allocation2 + $0x50] sm:$0xff] %v917
    %1059 = vst [vmem:[#allocation2 + $0x58] sm:$0xff] %v1025
    %1060 = vst [vmem:[#allocation2 + $0x60] sm:$0xff] %v921
    %1061 = vst [vmem:[#allocation2 + $0x68] sm:$0xff] %v923
    %1062 = vst [vmem:[#allocation2 + $0x70] sm:$0xff] %v1030
    %1063 = vst [vmem:[#allocation2 + $0x78] sm:$0xff] %v927
    %1064 = vst [vmem:[#allocation2 + $0x80] sm:$0xff] %v929
    %1065 = vst [vmem:[#allocation2 + $0x88] sm:$0xff] %v1035
    %1066 = vst [vmem:[#allocation2 + $0x90] sm:$0xff] %v933
    %1067 = vst [vmem:[#allocation2 + $0x98] sm:$0xff] %v935
    %1068 = vst [vmem:[#allocation2 + $0xa0] sm:$0xff] %v1040
    %1069 = vst [vmem:[#allocation2 + $0xa8] sm:$0xff] %v939
    %1070 = vst [vmem:[#allocation2 + $0xb0] sm:$0xff] %v941
    %1071 = vst [vmem:[#allocation2 + $0xb8] sm:$0xff] %v1045
    loop: start=0, step=1, limit=8
    $region125: #{tpu_custom_call.1} parent=1 // loop_pre_header
      _
    $region126: #{tpu_custom_call.1} parent=1 // loop_header
      %s1073 = sphi 0, %s1077
      %p1074 = scmp.ge.s32.totalorder %s1073, 8
      %v1078 = vphi 0.0, %v1311
    $region127: #{tpu_custom_call.1} parent=1 // loop_header_branch
      %1076 = sbr.rel (%p1074) target = $region131
    $region128: #{tpu_custom_call.1} parent=1 // loop_body
      %s1079 = smul.u32 %s1073, 3
      %s1080 = smul.addr %s1079, 8
      %s1081 = scalar_lea.vmem [#allocation2], %s1080
      %v1082 = vld [vmem:[%s1081] sm:$0xff]
      %v1083 = vld [vmem:[%s1081 + $0x8] sm:$0xff]
      %v1084 = vld [vmem:[%s1081 + $0x10] sm:$0xff]
      %v1085 = vld [vmem:[#allocation12] sm:$0xff]
      %v1086 = vld [vmem:[#allocation12 + $0x8] sm:$0xff]
      %v1087 = vld [vmem:[#allocation12 + $0x10] sm:$0xff]
      %v1088 = vld [vmem:[#allocation12 + $0x18] sm:$0xff]
      %v1089 = vld [vmem:[#allocation12 + $0x20] sm:$0xff]
      %v1090 = vld [vmem:[#allocation12 + $0x28] sm:$0xff]
      %v1091 = vld [vmem:[#allocation12 + $0x30] sm:$0xff]
      %v1092 = vld [vmem:[#allocation12 + $0x38] sm:$0xff]
      %v1093 = vld [vmem:[#allocation12 + $0x40] sm:$0xff]
      %v1094 = vld [vmem:[#allocation12 + $0x48] sm:$0xff]
      %v1095 = vld [vmem:[#allocation12 + $0x50] sm:$0xff]
      %v1096 = vld [vmem:[#allocation12 + $0x58] sm:$0xff]
      %v1097 = vld [vmem:[#allocation12 + $0x60] sm:$0xff]
      %v1098 = vld [vmem:[#allocation12 + $0x68] sm:$0xff]
      %v1099 = vld [vmem:[#allocation12 + $0x70] sm:$0xff]
      %v1100 = vld [vmem:[#allocation12 + $0x78] sm:$0xff]
      %v1101 = vld [vmem:[#allocation12 + $0x80] sm:$0xff]
      %v1102 = vld [vmem:[#allocation12 + $0x88] sm:$0xff]
      %v1103 = vld [vmem:[#allocation12 + $0x90] sm:$0xff]
      %v1104 = vld [vmem:[#allocation12 + $0x98] sm:$0xff]
      %v1105 = vld [vmem:[#allocation12 + $0xa0] sm:$0xff]
      %v1106 = vld [vmem:[#allocation12 + $0xa8] sm:$0xff]
      %v1107 = vld [vmem:[#allocation12 + $0xb0] sm:$0xff]
      %v1108 = vld [vmem:[#allocation12 + $0xb8] sm:$0xff]
      %v1109 = vld [vmem:[#allocation12 + $0xc0] sm:$0xff]
      %v1110 = vld [vmem:[#allocation12 + $0xc8] sm:$0xff]
      %v1111 = vld [vmem:[#allocation12 + $0xd0] sm:$0xff]
      %v1112 = vld [vmem:[#allocation12 + $0xd8] sm:$0xff]
      %v1113 = vld [vmem:[#allocation12 + $0xe0] sm:$0xff]
      %v1114 = vld [vmem:[#allocation12 + $0xe8] sm:$0xff]
      %v1115 = vld [vmem:[#allocation12 + $0xf0] sm:$0xff]
      %v1116 = vld [vmem:[#allocation12 + $0xf8] sm:$0xff]
      %v1117 = vld [vmem:[#allocation12 + $0x100] sm:$0xff]
      %v1118 = vld [vmem:[#allocation12 + $0x108] sm:$0xff]
      %v1119 = vld [vmem:[#allocation12 + $0x110] sm:$0xff]
      %v1120 = vld [vmem:[#allocation12 + $0x118] sm:$0xff]
      %v1121 = vld [vmem:[#allocation12 + $0x120] sm:$0xff]
      %v1122 = vld [vmem:[#allocation12 + $0x128] sm:$0xff]
      %v1123 = vld [vmem:[#allocation12 + $0x130] sm:$0xff]
      %v1124 = vld [vmem:[#allocation12 + $0x138] sm:$0xff]
      %v1125 = vld [vmem:[#allocation12 + $0x140] sm:$0xff]
      %v1126 = vld [vmem:[#allocation12 + $0x148] sm:$0xff]
      %v1127 = vld [vmem:[#allocation12 + $0x150] sm:$0xff]
      %v1128 = vld [vmem:[#allocation12 + $0x158] sm:$0xff]
      %v1129 = vld [vmem:[#allocation12 + $0x160] sm:$0xff]
      %v1130 = vld [vmem:[#allocation12 + $0x168] sm:$0xff]
      %v1131 = vld [vmem:[#allocation12 + $0x170] sm:$0xff]
      %v1132 = vld [vmem:[#allocation12 + $0x178] sm:$0xff]
      %v1133 = vld [vmem:[%s8] sm:$0x7]
      %v1135 = vlaneseq
      %v1136 = vshrl.u32 %v1135, 7
      %v1137 = vsub.s32 0, %v1136
      %v1138 = vrot.slane %v1133, %v1137
      %v1139 = vlaneseq
      %v1140 = vshrl.u32 %v1139, 7
      %v1141 = vsub.s32 1, %v1140
      %v1142 = vrot.slane %v1133, %v1141
      %v1143 = vlaneseq
      %v1144 = vshrl.u32 %v1143, 7
      %v1145 = vsub.s32 2, %v1144
      %v1146 = vrot.slane %v1133, %v1145
      %1150 = vmatprep.subr.mxu0 %v1086
      %1151 = vmatpush1.msra.mxu0 %v1085
      %1152 = vmatprep.subr.mxu0 %v1089
      %1153 = vmatpush1.msra.mxu0 %v1088
      %1154 = vmatprep.subr.mxu0 %v1092
      %1155 = vmatpush1.msra.mxu0 %v1091
      %1156 = vmatprep.subr.mxu0 %v1095
      %1157 = vmatpush1.msra.mxu0 %v1094
      %1158 = vmatprep.subr.mxu0 %v1098
      %1159 = vmatpush1.msra.mxu0 %v1097
      %1160 = vmatprep.subr.mxu0 %v1101
      %1161 = vmatpush1.msra.mxu0 %v1100
      %1162 = vmatprep.subr.mxu0 %v1104
      %1163 = vmatpush1.msra.mxu0 %v1103
      %1164 = vmatprep.subr.mxu0 %v1107
      %1165 = vmatpush1.msra.mxu0 %v1106
      %1166 = vmatprep.subr.mxu0 %v1110
      %1167 = vmatpush1.msra.mxu0 %v1109
      %1168 = vmatprep.subr.mxu0 %v1113
      %1169 = vmatpush1.msra.mxu0 %v1112
      %1170 = vmatprep.subr.mxu0 %v1116
      %1171 = vmatpush1.msra.mxu0 %v1115
      %1172 = vmatprep.subr.mxu0 %v1119
      %1173 = vmatpush1.msra.mxu0 %v1118
      %1174 = vmatprep.subr.mxu0 %v1122
      %1175 = vmatpush1.msra.mxu0 %v1121
      %1176 = vmatprep.subr.mxu0 %v1125
      %1177 = vmatpush1.msra.mxu0 %v1124
      %1178 = vmatprep.subr.mxu0 %v1128
      %1179 = vmatpush1.msra.mxu0 %v1127
      %1180 = vmatprep.subr.mxu0 %v1131
      %1181 = vmatpush1.msra.mxu0 %v1130
      %1182 = vmatprep.subr.mxu0 0.0
      %1183 = vmatpush1.msra.mxu0 0.0
      %1184 = vmatprep.subr.mxu0 0.0
      %1185 = vmatpush1.msra.mxu0 0.0
      %1186 = vmatprep.subr.mxu0 0.0
      %1187 = vmatpush1.msra.mxu0 0.0
      %1188 = vmatprep.subr.mxu0 0.0
      %1189 = vmatpush1.msra.mxu0 0.0
      %1190 = vmatprep.subr.mxu0 0.0
      %1191 = vmatpush1.msra.mxu0 0.0
      %1192 = vmatprep.subr.mxu0 0.0
      %1193 = vmatpush1.msra.mxu0 0.0
      %1194 = vmatprep.subr.mxu0 0.0
      %1195 = vmatpush1.msra.mxu0 0.0
      %1196 = vmatprep.subr.mxu0 0.0
      %1197 = vmatpush1.msra.mxu0 0.0
      %1198 = vmatprep.subr.mxu0 0.0
      %1199 = vmatpush1.msra.mxu0 0.0
      %1200 = vmatprep.subr.mxu0 0.0
      %1201 = vmatpush1.msra.mxu0 0.0
      %1202 = vmatprep.subr.mxu0 0.0
      %1203 = vmatpush1.msra.mxu0 0.0
      %1204 = vmatprep.subr.mxu0 0.0
      %1205 = vmatpush1.msra.mxu0 0.0
      %1206 = vmatprep.subr.mxu0 0.0
      %1207 = vmatpush1.msra.mxu0 0.0
      %1208 = vmatprep.subr.mxu0 0.0
      %1209 = vmatpush1.msra.mxu0 0.0
      %1210 = vmatprep.subr.mxu0 0.0
      %1211 = vmatpush1.msra.mxu0 0.0
      %1212 = vmatprep.subr.mxu0 0.0
      %1213 = vmatpush1.msra.mxu0 0.0
      %1214 = vmatprep.mubr.f32.mxu0 0.0
      %1215 = vmatmul.mubr.f32.gmra.mrb[0].mxu0 %v1078
      %v1216 = vpop.f32.mrb[0].mxu0
      %v1217 = vadd.f32 %v1138, %v1216
      %v1218 = vpop.f32.mrb[0].mxu0
      %v1219 = vadd.f32 %v1142, %v1218
      %1220 = vdwg.mxu0
      %1221 = vmatprep.subr.mxu0 0.0
      %1222 = vmatpush1.msra.mxu0 %v1087
      %1223 = vmatprep.subr.mxu0 0.0
      %1224 = vmatpush1.msra.mxu0 %v1090
      %1225 = vmatprep.subr.mxu0 0.0
      %1226 = vmatpush1.msra.mxu0 %v1093
      %1227 = vmatprep.subr.mxu0 0.0
      %1228 = vmatpush1.msra.mxu0 %v1096
      %1229 = vmatprep.subr.mxu0 0.0
      %1230 = vmatpush1.msra.mxu0 %v1099
      %1231 = vmatprep.subr.mxu0 0.0
      %1232 = vmatpush1.msra.mxu0 %v1102
      %1233 = vmatprep.subr.mxu0 0.0
      %1234 = vmatpush1.msra.mxu0 %v1105
      %1235 = vmatprep.subr.mxu0 0.0
      %1236 = vmatpush1.msra.mxu0 %v1108
      %1237 = vmatprep.subr.mxu0 0.0
      %1238 = vmatpush1.msra.mxu0 %v1111
      %1239 = vmatprep.subr.mxu0 0.0
      %1240 = vmatpush1.msra.mxu0 %v1114
      %1241 = vmatprep.subr.mxu0 0.0
      %1242 = vmatpush1.msra.mxu0 %v1117
      %1243 = vmatprep.subr.mxu0 0.0
      %1244 = vmatpush1.msra.mxu0 %v1120
      %1245 = vmatprep.subr.mxu0 0.0
      %1246 = vmatpush1.msra.mxu0 %v1123
      %1247 = vmatprep.subr.mxu0 0.0
      %1248 = vmatpush1.msra.mxu0 %v1126
      %1249 = vmatprep.subr.mxu0 0.0
      %1250 = vmatpush1.msra.mxu0 %v1129
      %1251 = vmatprep.subr.mxu0 0.0
      %1252 = vmatpush1.msra.mxu0 %v1132
      %1253 = vmatprep.subr.mxu0 0.0
      %1254 = vmatpush1.msra.mxu0 0.0
      %1255 = vmatprep.subr.mxu0 0.0
      %1256 = vmatpush1.msra.mxu0 0.0
      %1257 = vmatprep.subr.mxu0 0.0
      %1258 = vmatpush1.msra.mxu0 0.0
      %1259 = vmatprep.subr.mxu0 0.0
      %1260 = vmatpush1.msra.mxu0 0.0
      %1261 = vmatprep.subr.mxu0 0.0
      %1262 = vmatpush1.msra.mxu0 0.0
      %1263 = vmatprep.subr.mxu0 0.0
      %1264 = vmatpush1.msra.mxu0 0.0
      %1265 = vmatprep.subr.mxu0 0.0
      %1266 = vmatpush1.msra.mxu0 0.0
      %1267 = vmatprep.subr.mxu0 0.0
      %1268 = vmatpush1.msra.mxu0 0.0
      %1269 = vmatprep.subr.mxu0 0.0
      %1270 = vmatpush1.msra.mxu0 0.0
      %1271 = vmatprep.subr.mxu0 0.0
      %1272 = vmatpush1.msra.mxu0 0.0
      %1273 = vmatprep.subr.mxu0 0.0
      %1274 = vmatpush1.msra.mxu0 0.0
      %1275 = vmatprep.subr.mxu0 0.0
      %1276 = vmatpush1.msra.mxu0 0.0
      %1277 = vmatprep.subr.mxu0 0.0
      %1278 = vmatpush1.msra.mxu0 0.0
      %1279 = vmatprep.subr.mxu0 0.0
      %1280 = vmatpush1.msra.mxu0 0.0
      %1281 = vmatprep.subr.mxu0 0.0
      %1282 = vmatpush1.msra.mxu0 0.0
      %1283 = vmatprep.subr.mxu0 0.0
      %1284 = vmatpush1.msra.mxu0 0.0
      %1285 = vmatprep.mubr.f32.mxu0 0.0
      %1286 = vmatmul.mubr.f32.gmra.mrb[0].mxu0 %v1078
      %v1287 = vpop.f32.mrb[0].mxu0
      %v1288 = vadd.f32 %v1146, %v1287
      %v1289 = vpop.f32.mrb[0].mxu0
      %1290 = vdwg.mxu0
      %v1291 = vadd.f32 %v1082, %v1217
      %v1292 = vxor.u32 %v1291, 2147483648
      %v1293 = vmul.f32 %v1292, 1.442695
      %v1294 = vpow.pop %v1293
      %v1295 = vadd.f32 %v1294, 1.0
      %v1296 = vrcp.pop %v1295
      %v1297 = vmul.f32 1.0, %v1296
      %v1298 = vadd.f32 %v1083, %v1219
      %v1299 = vxor.u32 %v1298, 2147483648
      %v1300 = vmul.f32 %v1299, 1.442695
      %v1301 = vpow.pop %v1300
      %v1302 = vadd.f32 %v1301, 1.0
      %v1303 = vrcp.pop %v1302
      %v1304 = vmul.f32 1.0, %v1303
      %v1305 = vmul.f32 %v1297, %v1288
      %v1306 = vadd.f32 %v1084, %v1305
      %v1307 = vtanh.pop %v1306
      %v1308 = vsub.f32 1.0, %v1304
      %v1309 = vmul.f32 %v1308, %v1307
      %v1310 = vmul.f32 %v1304, %v1078
      %v1311 = vadd.f32 %v1309, %v1310
      %s1312 = smul.u32 %s1073, 8
      %s1313 = scalar_lea.vmem [#allocation3], %s1312
      %1314 = vst [vmem:[%s1313] sm:$0xff] %v1311
    $region129: #{tpu_custom_call.1} parent=1 // loop_footer
      %s1077 = sadd.s32 1, %s1073
    $region130: #{tpu_custom_call.1} parent=1 // loop_footer_branch
      %1072 = sbr.rel target = $region126
    $region131: #{tpu_custom_call.1} parent=1 // loop_exit
      _
    %v1315 = vld [vmem:[#allocation3] sm:$0xff]
    %v1316 = vld [vmem:[#allocation3 + $0x8] sm:$0xff]
    %v1317 = vld [vmem:[#allocation3 + $0x10] sm:$0xff]
    %v1318 = vld [vmem:[#allocation3 + $0x18] sm:$0xff]
    %v1319 = vld [vmem:[#allocation3 + $0x20] sm:$0xff]
    %v1320 = vld [vmem:[#allocation3 + $0x28] sm:$0xff]
    %v1321 = vld [vmem:[#allocation3 + $0x30] sm:$0xff]
    %v1322 = vld [vmem:[#allocation3 + $0x38] sm:$0xff]
    %v1323 = vld [vmem:[#allocation13] sm:$0xff]
    %v1324 = vld [vmem:[#allocation13 + $0x8] sm:$0xff]
    %v1325 = vld [vmem:[#allocation13 + $0x10] sm:$0xff]
    %v1326 = vld [vmem:[#allocation13 + $0x18] sm:$0xff]
    %v1327 = vld [vmem:[#allocation13 + $0x20] sm:$0xff]
    %v1328 = vld [vmem:[#allocation13 + $0x28] sm:$0xff]
    %v1329 = vld [vmem:[#allocation13 + $0x30] sm:$0xff]
    %v1330 = vld [vmem:[#allocation13 + $0x38] sm:$0xff]
    %v1331 = vld [vmem:[#allocation13 + $0x40] sm:$0xff]
    %v1332 = vld [vmem:[#allocation13 + $0x48] sm:$0xff]
    %v1333 = vld [vmem:[#allocation13 + $0x50] sm:$0xff]
    %v1334 = vld [vmem:[#allocation13 + $0x58] sm:$0xff]
    %v1335 = vld [vmem:[#allocation13 + $0x60] sm:$0xff]
    %v1336 = vld [vmem:[#allocation13 + $0x68] sm:$0xff]
    %v1337 = vld [vmem:[#allocation13 + $0x70] sm:$0xff]
    %v1338 = vld [vmem:[#allocation13 + $0x78] sm:$0xff]
    %v1339 = vld [vmem:[#allocation13 + $0x80] sm:$0xff]
    %v1340 = vld [vmem:[#allocation13 + $0x88] sm:$0xff]
    %v1341 = vld [vmem:[#allocation13 + $0x90] sm:$0xff]
    %v1342 = vld [vmem:[#allocation13 + $0x98] sm:$0xff]
    %v1343 = vld [vmem:[#allocation13 + $0xa0] sm:$0xff]
    %v1344 = vld [vmem:[#allocation13 + $0xa8] sm:$0xff]
    %v1345 = vld [vmem:[#allocation13 + $0xb0] sm:$0xff]
    %v1346 = vld [vmem:[#allocation13 + $0xb8] sm:$0xff]
    %v1347 = vld [vmem:[#allocation13 + $0xc0] sm:$0xff]
    %v1348 = vld [vmem:[#allocation13 + $0xc8] sm:$0xff]
    %v1349 = vld [vmem:[#allocation13 + $0xd0] sm:$0xff]
    %v1350 = vld [vmem:[#allocation13 + $0xd8] sm:$0xff]
    %v1351 = vld [vmem:[#allocation13 + $0xe0] sm:$0xff]
    %v1352 = vld [vmem:[#allocation13 + $0xe8] sm:$0xff]
    %v1353 = vld [vmem:[#allocation13 + $0xf0] sm:$0xff]
    %v1354 = vld [vmem:[#allocation13 + $0xf8] sm:$0xff]
    %v1355 = vld [vmem:[#allocation13 + $0x100] sm:$0xff]
    %v1356 = vld [vmem:[#allocation13 + $0x108] sm:$0xff]
    %v1357 = vld [vmem:[#allocation13 + $0x110] sm:$0xff]
    %v1358 = vld [vmem:[#allocation13 + $0x118] sm:$0xff]
    %v1359 = vld [vmem:[#allocation13 + $0x120] sm:$0xff]
    %v1360 = vld [vmem:[#allocation13 + $0x128] sm:$0xff]
    %v1361 = vld [vmem:[#allocation13 + $0x130] sm:$0xff]
    %v1362 = vld [vmem:[#allocation13 + $0x138] sm:$0xff]
    %v1363 = vld [vmem:[#allocation13 + $0x140] sm:$0xff]
    %v1364 = vld [vmem:[#allocation13 + $0x148] sm:$0xff]
    %v1365 = vld [vmem:[#allocation13 + $0x150] sm:$0xff]
    %v1366 = vld [vmem:[#allocation13 + $0x158] sm:$0xff]
    %v1367 = vld [vmem:[#allocation13 + $0x160] sm:$0xff]
    %v1368 = vld [vmem:[#allocation13 + $0x168] sm:$0xff]
    %v1369 = vld [vmem:[#allocation13 + $0x170] sm:$0xff]
    %v1370 = vld [vmem:[#allocation13 + $0x178] sm:$0xff]
    %v1371 = vld [vmem:[%s11] sm:$0x7]
    %v1373 = vlaneseq
    %v1374 = vshrl.u32 %v1373, 7
    %v1375 = vsub.s32 0, %v1374
    %v1376 = vrot.slane %v1371, %v1375
    %v1377 = vlaneseq
    %v1378 = vshrl.u32 %v1377, 7
    %v1379 = vsub.s32 1, %v1378
    %v1380 = vrot.slane %v1371, %v1379
    %v1381 = vlaneseq
    %v1382 = vshrl.u32 %v1381, 7
    %v1383 = vsub.s32 2, %v1382
    %v1384 = vrot.slane %v1371, %v1383
    %1388 = vmatprep.subr.mxu0 %v1324
    %1389 = vmatpush1.msra.mxu0 %v1323
    %1390 = vmatprep.subr.mxu0 %v1327
    %1391 = vmatpush1.msra.mxu0 %v1326
    %1392 = vmatprep.subr.mxu0 %v1330
    %1393 = vmatpush1.msra.mxu0 %v1329
    %1394 = vmatprep.subr.mxu0 %v1333
    %1395 = vmatpush1.msra.mxu0 %v1332
    %1396 = vmatprep.subr.mxu0 %v1336
    %1397 = vmatpush1.msra.mxu0 %v1335
    %1398 = vmatprep.subr.mxu0 %v1339
    %1399 = vmatpush1.msra.mxu0 %v1338
    %1400 = vmatprep.subr.mxu0 %v1342
    %1401 = vmatpush1.msra.mxu0 %v1341
    %1402 = vmatprep.subr.mxu0 %v1345
    %1403 = vmatpush1.msra.mxu0 %v1344
    %1404 = vmatprep.subr.mxu0 %v1348
    %1405 = vmatpush1.msra.mxu0 %v1347
    %1406 = vmatprep.subr.mxu0 %v1351
    %1407 = vmatpush1.msra.mxu0 %v1350
    %1408 = vmatprep.subr.mxu0 %v1354
    %1409 = vmatpush1.msra.mxu0 %v1353
    %1410 = vmatprep.subr.mxu0 %v1357
    %1411 = vmatpush1.msra.mxu0 %v1356
    %1412 = vmatprep.subr.mxu0 %v1360
    %1413 = vmatpush1.msra.mxu0 %v1359
    %1414 = vmatprep.subr.mxu0 %v1363
    %1415 = vmatpush1.msra.mxu0 %v1362
    %1416 = vmatprep.subr.mxu0 %v1366
    %1417 = vmatpush1.msra.mxu0 %v1365
    %1418 = vmatprep.subr.mxu0 %v1369
    %1419 = vmatpush1.msra.mxu0 %v1368
    %1420 = vmatprep.subr.mxu0 0.0
    %1421 = vmatpush1.msra.mxu0 0.0
    %1422 = vmatprep.subr.mxu0 0.0
    %1423 = vmatpush1.msra.mxu0 0.0
    %1424 = vmatprep.subr.mxu0 0.0
    %1425 = vmatpush1.msra.mxu0 0.0
    %1426 = vmatprep.subr.mxu0 0.0
    %1427 = vmatpush1.msra.mxu0 0.0
    %1428 = vmatprep.subr.mxu0 0.0
    %1429 = vmatpush1.msra.mxu0 0.0
    %1430 = vmatprep.subr.mxu0 0.0
    %1431 = vmatpush1.msra.mxu0 0.0
    %1432 = vmatprep.subr.mxu0 0.0
    %1433 = vmatpush1.msra.mxu0 0.0
    %1434 = vmatprep.subr.mxu0 0.0
    %1435 = vmatpush1.msra.mxu0 0.0
    %1436 = vmatprep.subr.mxu0 0.0
    %1437 = vmatpush1.msra.mxu0 0.0
    %1438 = vmatprep.subr.mxu0 0.0
    %1439 = vmatpush1.msra.mxu0 0.0
    %1440 = vmatprep.subr.mxu0 0.0
    %1441 = vmatpush1.msra.mxu0 0.0
    %1442 = vmatprep.subr.mxu0 0.0
    %1443 = vmatpush1.msra.mxu0 0.0
    %1444 = vmatprep.subr.mxu0 0.0
    %1445 = vmatpush1.msra.mxu0 0.0
    %1446 = vmatprep.subr.mxu0 0.0
    %1447 = vmatpush1.msra.mxu0 0.0
    %1448 = vmatprep.subr.mxu0 0.0
    %1449 = vmatpush1.msra.mxu0 0.0
    %1450 = vmatprep.subr.mxu0 0.0
    %1451 = vmatpush1.msra.mxu0 0.0
    %1452 = vmatprep.mubr.f32.mxu0 0.0
    %1453 = vmatmul.mubr.f32.gmra.mrb[0].mxu0 %v1315
    %v1454 = vpop.f32.mrb[0].mxu0
    %v1455 = vadd.f32 %v1376, %v1454
    %v1456 = vpop.f32.mrb[0].mxu0
    %v1457 = vadd.f32 %v1380, %v1456
    %1458 = vmatprep.mubr.f32.mxu0 0.0
    %1459 = vmatmul.mubr.f32.gmra.mrb[0].mxu0 %v1316
    %v1460 = vpop.f32.mrb[0].mxu0
    %v1461 = vadd.f32 %v1376, %v1460
    %v1462 = vpop.f32.mrb[0].mxu0
    %v1463 = vadd.f32 %v1380, %v1462
    %1464 = vmatprep.mubr.f32.mxu0 0.0
    %1465 = vmatmul.mubr.f32.gmra.mrb[0].mxu0 %v1317
    %v1466 = vpop.f32.mrb[0].mxu0
    %v1467 = vadd.f32 %v1376, %v1466
    %v1468 = vpop.f32.mrb[0].mxu0
    %v1469 = vadd.f32 %v1380, %v1468
    %1470 = vmatprep.mubr.f32.mxu0 0.0
    %1471 = vmatmul.mubr.f32.gmra.mrb[0].mxu0 %v1318
    %v1472 = vpop.f32.mrb[0].mxu0
    %v1473 = vadd.f32 %v1376, %v1472
    %v1474 = vpop.f32.mrb[0].mxu0
    %v1475 = vadd.f32 %v1380, %v1474
    %1476 = vmatprep.mubr.f32.mxu0 0.0
    %1477 = vmatmul.mubr.f32.gmra.mrb[0].mxu0 %v1319
    %v1478 = vpop.f32.mrb[0].mxu0
    %v1479 = vadd.f32 %v1376, %v1478
    %v1480 = vpop.f32.mrb[0].mxu0
    %v1481 = vadd.f32 %v1380, %v1480
    %1482 = vmatprep.mubr.f32.mxu0 0.0
    %1483 = vmatmul.mubr.f32.gmra.mrb[0].mxu0 %v1320
    %v1484 = vpop.f32.mrb[0].mxu0
    %v1485 = vadd.f32 %v1376, %v1484
    %v1486 = vpop.f32.mrb[0].mxu0
    %v1487 = vadd.f32 %v1380, %v1486
    %1488 = vmatprep.mubr.f32.mxu0 0.0
    %1489 = vmatmul.mubr.f32.gmra.mrb[0].mxu0 %v1321
    %v1490 = vpop.f32.mrb[0].mxu0
    %v1491 = vadd.f32 %v1376, %v1490
    %v1492 = vpop.f32.mrb[0].mxu0
    %v1493 = vadd.f32 %v1380, %v1492
    %1494 = vmatprep.mubr.f32.mxu0 0.0
    %1495 = vmatmul.mubr.f32.gmra.mrb[0].mxu0 %v1322
    %v1496 = vpop.f32.mrb[0].mxu0
    %v1497 = vadd.f32 %v1376, %v1496
    %v1498 = vpop.f32.mrb[0].mxu0
    %v1499 = vadd.f32 %v1380, %v1498
    %1500 = vdwg.mxu0
    %1501 = vmatprep.subr.mxu0 0.0
    %1502 = vmatpush1.msra.mxu0 %v1325
    %1503 = vmatprep.subr.mxu0 0.0
    %1504 = vmatpush1.msra.mxu0 %v1328
    %1505 = vmatprep.subr.mxu0 0.0
    %1506 = vmatpush1.msra.mxu0 %v1331
    %1507 = vmatprep.subr.mxu0 0.0
    %1508 = vmatpush1.msra.mxu0 %v1334
    %1509 = vmatprep.subr.mxu0 0.0
    %1510 = vmatpush1.msra.mxu0 %v1337
    %1511 = vmatprep.subr.mxu0 0.0
    %1512 = vmatpush1.msra.mxu0 %v1340
    %1513 = vmatprep.subr.mxu0 0.0
    %1514 = vmatpush1.msra.mxu0 %v1343
    %1515 = vmatprep.subr.mxu0 0.0
    %1516 = vmatpush1.msra.mxu0 %v1346
    %1517 = vmatprep.subr.mxu0 0.0
    %1518 = vmatpush1.msra.mxu0 %v1349
    %1519 = vmatprep.subr.mxu0 0.0
    %1520 = vmatpush1.msra.mxu0 %v1352
    %1521 = vmatprep.subr.mxu0 0.0
    %1522 = vmatpush1.msra.mxu0 %v1355
    %1523 = vmatprep.subr.mxu0 0.0
    %1524 = vmatpush1.msra.mxu0 %v1358
    %1525 = vmatprep.subr.mxu0 0.0
    %1526 = vmatpush1.msra.mxu0 %v1361
    %1527 = vmatprep.subr.mxu0 0.0
    %1528 = vmatpush1.msra.mxu0 %v1364
    %1529 = vmatprep.subr.mxu0 0.0
    %1530 = vmatpush1.msra.mxu0 %v1367
    %1531 = vmatprep.subr.mxu0 0.0
    %1532 = vmatpush1.msra.mxu0 %v1370
    %1533 = vmatprep.subr.mxu0 0.0
    %1534 = vmatpush1.msra.mxu0 0.0
    %1535 = vmatprep.subr.mxu0 0.0
    %1536 = vmatpush1.msra.mxu0 0.0
    %1537 = vmatprep.subr.mxu0 0.0
    %1538 = vmatpush1.msra.mxu0 0.0
    %1539 = vmatprep.subr.mxu0 0.0
    %1540 = vmatpush1.msra.mxu0 0.0
    %1541 = vmatprep.subr.mxu0 0.0
    %1542 = vmatpush1.msra.mxu0 0.0
    %1543 = vmatprep.subr.mxu0 0.0
    %1544 = vmatpush1.msra.mxu0 0.0
    %1545 = vmatprep.subr.mxu0 0.0
    %1546 = vmatpush1.msra.mxu0 0.0
    %1547 = vmatprep.subr.mxu0 0.0
    %1548 = vmatpush1.msra.mxu0 0.0
    %1549 = vmatprep.subr.mxu0 0.0
    %1550 = vmatpush1.msra.mxu0 0.0
    %1551 = vmatprep.subr.mxu0 0.0
    %1552 = vmatpush1.msra.mxu0 0.0
    %1553 = vmatprep.subr.mxu0 0.0
    %1554 = vmatpush1.msra.mxu0 0.0
    %1555 = vmatprep.subr.mxu0 0.0
    %1556 = vmatpush1.msra.mxu0 0.0
    %1557 = vmatprep.subr.mxu0 0.0
    %1558 = vmatpush1.msra.mxu0 0.0
    %1559 = vmatprep.subr.mxu0 0.0
    %1560 = vmatpush1.msra.mxu0 0.0
    %1561 = vmatprep.subr.mxu0 0.0
    %1562 = vmatpush1.msra.mxu0 0.0
    %1563 = vmatprep.subr.mxu0 0.0
    %1564 = vmatpush1.msra.mxu0 0.0
    %1565 = vmatprep.mubr.f32.mxu0 0.0
    %1566 = vmatmul.mubr.f32.gmra.mrb[0].mxu0 %v1315
    %v1567 = vpop.f32.mrb[0].mxu0
    %v1568 = vadd.f32 %v1384, %v1567
    %v1569 = vpop.f32.mrb[0].mxu0
    %1570 = vmatprep.mubr.f32.mxu0 0.0
    %1571 = vmatmul.mubr.f32.gmra.mrb[0].mxu0 %v1316
    %v1572 = vpop.f32.mrb[0].mxu0
    %v1573 = vadd.f32 %v1384, %v1572
    %v1574 = vpop.f32.mrb[0].mxu0
    %1575 = vmatprep.mubr.f32.mxu0 0.0
    %1576 = vmatmul.mubr.f32.gmra.mrb[0].mxu0 %v1317
    %v1577 = vpop.f32.mrb[0].mxu0
    %v1578 = vadd.f32 %v1384, %v1577
    %v1579 = vpop.f32.mrb[0].mxu0
    %1580 = vmatprep.mubr.f32.mxu0 0.0
    %1581 = vmatmul.mubr.f32.gmra.mrb[0].mxu0 %v1318
    %v1582 = vpop.f32.mrb[0].mxu0
    %v1583 = vadd.f32 %v1384, %v1582
    %v1584 = vpop.f32.mrb[0].mxu0
    %1585 = vmatprep.mubr.f32.mxu0 0.0
    %1586 = vmatmul.mubr.f32.gmra.mrb[0].mxu0 %v1319
    %v1587 = vpop.f32.mrb[0].mxu0
    %v1588 = vadd.f32 %v1384, %v1587
    %v1589 = vpop.f32.mrb[0].mxu0
    %1590 = vmatprep.mubr.f32.mxu0 0.0
    %1591 = vmatmul.mubr.f32.gmra.mrb[0].mxu0 %v1320
    %v1592 = vpop.f32.mrb[0].mxu0
    %v1593 = vadd.f32 %v1384, %v1592
    %v1594 = vpop.f32.mrb[0].mxu0
    %1595 = vmatprep.mubr.f32.mxu0 0.0
    %1596 = vmatmul.mubr.f32.gmra.mrb[0].mxu0 %v1321
    %v1597 = vpop.f32.mrb[0].mxu0
    %v1598 = vadd.f32 %v1384, %v1597
    %v1599 = vpop.f32.mrb[0].mxu0
    %1600 = vmatprep.mubr.f32.mxu0 0.0
    %1601 = vmatmul.mubr.f32.gmra.mrb[0].mxu0 %v1322
    %v1602 = vpop.f32.mrb[0].mxu0
    %v1603 = vadd.f32 %v1384, %v1602
    %v1604 = vpop.f32.mrb[0].mxu0
    %1605 = vdwg.mxu0
    %1606 = vst [vmem:[#allocation2] sm:$0xff] %v1455
    %1607 = vst [vmem:[#allocation2 + $0x8] sm:$0xff] %v1457
    %1608 = vst [vmem:[#allocation2 + $0x10] sm:$0xff] %v1568
    %1609 = vst [vmem:[#allocation2 + $0x18] sm:$0xff] %v1461
    %1610 = vst [vmem:[#allocation2 + $0x20] sm:$0xff] %v1463
    %1611 = vst [vmem:[#allocation2 + $0x28] sm:$0xff] %v1573
    %1612 = vst [vmem:[#allocation2 + $0x30] sm:$0xff] %v1467
    %1613 = vst [vmem:[#allocation2 + $0x38] sm:$0xff] %v1469
    %1614 = vst [vmem:[#allocation2 + $0x40] sm:$0xff] %v1578
    %1615 = vst [vmem:[#allocation2 + $0x48] sm:$0xff] %v1473
    %1616 = vst [vmem:[#allocation2 + $0x50] sm:$0xff] %v1475
    %1617 = vst [vmem:[#allocation2 + $0x58] sm:$0xff] %v1583
    %1618 = vst [vmem:[#allocation2 + $0x60] sm:$0xff] %v1479
    %1619 = vst [vmem:[#allocation2 + $0x68] sm:$0xff] %v1481
    %1620 = vst [vmem:[#allocation2 + $0x70] sm:$0xff] %v1588
    %1621 = vst [vmem:[#allocation2 + $0x78] sm:$0xff] %v1485
    %1622 = vst [vmem:[#allocation2 + $0x80] sm:$0xff] %v1487
    %1623 = vst [vmem:[#allocation2 + $0x88] sm:$0xff] %v1593
    %1624 = vst [vmem:[#allocation2 + $0x90] sm:$0xff] %v1491
    %1625 = vst [vmem:[#allocation2 + $0x98] sm:$0xff] %v1493
    %1626 = vst [vmem:[#allocation2 + $0xa0] sm:$0xff] %v1598
    %1627 = vst [vmem:[#allocation2 + $0xa8] sm:$0xff] %v1497
    %1628 = vst [vmem:[#allocation2 + $0xb0] sm:$0xff] %v1499
    %1629 = vst [vmem:[#allocation2 + $0xb8] sm:$0xff] %v1603
    loop: start=0, step=1, limit=8
    $region132: #{tpu_custom_call.1} parent=1 // loop_pre_header
      _
    $region133: #{tpu_custom_call.1} parent=1 // loop_header
      %s1631 = sphi 0, %s1635
      %p1632 = scmp.ge.s32.totalorder %s1631, 8
      %v1636 = vphi 0.0, %v1869
    $region134: #{tpu_custom_call.1} parent=1 // loop_header_branch
      %1634 = sbr.rel (%p1632) target = $region138
    $region135: #{tpu_custom_call.1} parent=1 // loop_body
      %s1637 = smul.u32 %s1631, 3
      %s1638 = smul.addr %s1637, 8
      %s1639 = scalar_lea.vmem [#allocation2], %s1638
      %v1640 = vld [vmem:[%s1639] sm:$0xff]
      %v1641 = vld [vmem:[%s1639 + $0x8] sm:$0xff]
      %v1642 = vld [vmem:[%s1639 + $0x10] sm:$0xff]
      %v1643 = vld [vmem:[#allocation15] sm:$0xff]
      %v1644 = vld [vmem:[#allocation15 + $0x8] sm:$0xff]
      %v1645 = vld [vmem:[#allocation15 + $0x10] sm:$0xff]
      %v1646 = vld [vmem:[#allocation15 + $0x18] sm:$0xff]
      %v1647 = vld [vmem:[#allocation15 + $0x20] sm:$0xff]
      %v1648 = vld [vmem:[#allocation15 + $0x28] sm:$0xff]
      %v1649 = vld [vmem:[#allocation15 + $0x30] sm:$0xff]
      %v1650 = vld [vmem:[#allocation15 + $0x38] sm:$0xff]
      %v1651 = vld [vmem:[#allocation15 + $0x40] sm:$0xff]
      %v1652 = vld [vmem:[#allocation15 + $0x48] sm:$0xff]
      %v1653 = vld [vmem:[#allocation15 + $0x50] sm:$0xff]
      %v1654 = vld [vmem:[#allocation15 + $0x58] sm:$0xff]
      %v1655 = vld [vmem:[#allocation15 + $0x60] sm:$0xff]
      %v1656 = vld [vmem:[#allocation15 + $0x68] sm:$0xff]
      %v1657 = vld [vmem:[#allocation15 + $0x70] sm:$0xff]
      %v1658 = vld [vmem:[#allocation15 + $0x78] sm:$0xff]
      %v1659 = vld [vmem:[#allocation15 + $0x80] sm:$0xff]
      %v1660 = vld [vmem:[#allocation15 + $0x88] sm:$0xff]
      %v1661 = vld [vmem:[#allocation15 + $0x90] sm:$0xff]
      %v1662 = vld [vmem:[#allocation15 + $0x98] sm:$0xff]
      %v1663 = vld [vmem:[#allocation15 + $0xa0] sm:$0xff]
      %v1664 = vld [vmem:[#allocation15 + $0xa8] sm:$0xff]
      %v1665 = vld [vmem:[#allocation15 + $0xb0] sm:$0xff]
      %v1666 = vld [vmem:[#allocation15 + $0xb8] sm:$0xff]
      %v1667 = vld [vmem:[#allocation15 + $0xc0] sm:$0xff]
      %v1668 = vld [vmem:[#allocation15 + $0xc8] sm:$0xff]
      %v1669 = vld [vmem:[#allocation15 + $0xd0] sm:$0xff]
      %v1670 = vld [vmem:[#allocation15 + $0xd8] sm:$0xff]
      %v1671 = vld [vmem:[#allocation15 + $0xe0] sm:$0xff]
      %v1672 = vld [vmem:[#allocation15 + $0xe8] sm:$0xff]
      %v1673 = vld [vmem:[#allocation15 + $0xf0] sm:$0xff]
      %v1674 = vld [vmem:[#allocation15 + $0xf8] sm:$0xff]
      %v1675 = vld [vmem:[#allocation15 + $0x100] sm:$0xff]
      %v1676 = vld [vmem:[#allocation15 + $0x108] sm:$0xff]
      %v1677 = vld [vmem:[#allocation15 + $0x110] sm:$0xff]
      %v1678 = vld [vmem:[#allocation15 + $0x118] sm:$0xff]
      %v1679 = vld [vmem:[#allocation15 + $0x120] sm:$0xff]
      %v1680 = vld [vmem:[#allocation15 + $0x128] sm:$0xff]
      %v1681 = vld [vmem:[#allocation15 + $0x130] sm:$0xff]
      %v1682 = vld [vmem:[#allocation15 + $0x138] sm:$0xff]
      %v1683 = vld [vmem:[#allocation15 + $0x140] sm:$0xff]
      %v1684 = vld [vmem:[#allocation15 + $0x148] sm:$0xff]
      %v1685 = vld [vmem:[#allocation15 + $0x150] sm:$0xff]
      %v1686 = vld [vmem:[#allocation15 + $0x158] sm:$0xff]
      %v1687 = vld [vmem:[#allocation15 + $0x160] sm:$0xff]
      %v1688 = vld [vmem:[#allocation15 + $0x168] sm:$0xff]
      %v1689 = vld [vmem:[#allocation15 + $0x170] sm:$0xff]
      %v1690 = vld [vmem:[#allocation15 + $0x178] sm:$0xff]
      %v1691 = vld [vmem:[%s12] sm:$0x7]
      %v1693 = vlaneseq
      %v1694 = vshrl.u32 %v1693, 7
      %v1695 = vsub.s32 0, %v1694
      %v1696 = vrot.slane %v1691, %v1695
      %v1697 = vlaneseq
      %v1698 = vshrl.u32 %v1697, 7
      %v1699 = vsub.s32 1, %v1698
      %v1700 = vrot.slane %v1691, %v1699
      %v1701 = vlaneseq
      %v1702 = vshrl.u32 %v1701, 7
      %v1703 = vsub.s32 2, %v1702
      %v1704 = vrot.slane %v1691, %v1703
      %1708 = vmatprep.subr.mxu0 %v1644
      %1709 = vmatpush1.msra.mxu0 %v1643
      %1710 = vmatprep.subr.mxu0 %v1647
      %1711 = vmatpush1.msra.mxu0 %v1646
      %1712 = vmatprep.subr.mxu0 %v1650
      %1713 = vmatpush1.msra.mxu0 %v1649
      %1714 = vmatprep.subr.mxu0 %v1653
      %1715 = vmatpush1.msra.mxu0 %v1652
      %1716 = vmatprep.subr.mxu0 %v1656
      %1717 = vmatpush1.msra.mxu0 %v1655
      %1718 = vmatprep.subr.mxu0 %v1659
      %1719 = vmatpush1.msra.mxu0 %v1658
      %1720 = vmatprep.subr.mxu0 %v1662
      %1721 = vmatpush1.msra.mxu0 %v1661
      %1722 = vmatprep.subr.mxu0 %v1665
      %1723 = vmatpush1.msra.mxu0 %v1664
      %1724 = vmatprep.subr.mxu0 %v1668
      %1725 = vmatpush1.msra.mxu0 %v1667
      %1726 = vmatprep.subr.mxu0 %v1671
      %1727 = vmatpush1.msra.mxu0 %v1670
      %1728 = vmatprep.subr.mxu0 %v1674
      %1729 = vmatpush1.msra.mxu0 %v1673
      %1730 = vmatprep.subr.mxu0 %v1677
      %1731 = vmatpush1.msra.mxu0 %v1676
      %1732 = vmatprep.subr.mxu0 %v1680
      %1733 = vmatpush1.msra.mxu0 %v1679
      %1734 = vmatprep.subr.mxu0 %v1683
      %1735 = vmatpush1.msra.mxu0 %v1682
      %1736 = vmatprep.subr.mxu0 %v1686
      %1737 = vmatpush1.msra.mxu0 %v1685
      %1738 = vmatprep.subr.mxu0 %v1689
      %1739 = vmatpush1.msra.mxu0 %v1688
      %1740 = vmatprep.subr.mxu0 0.0
      %1741 = vmatpush1.msra.mxu0 0.0
      %1742 = vmatprep.subr.mxu0 0.0
      %1743 = vmatpush1.msra.mxu0 0.0
      %1744 = vmatprep.subr.mxu0 0.0
      %1745 = vmatpush1.msra.mxu0 0.0
      %1746 = vmatprep.subr.mxu0 0.0
      %1747 = vmatpush1.msra.mxu0 0.0
      %1748 = vmatprep.subr.mxu0 0.0
      %1749 = vmatpush1.msra.mxu0 0.0
      %1750 = vmatprep.subr.mxu0 0.0
      %1751 = vmatpush1.msra.mxu0 0.0
      %1752 = vmatprep.subr.mxu0 0.0
      %1753 = vmatpush1.msra.mxu0 0.0
      %1754 = vmatprep.subr.mxu0 0.0
      %1755 = vmatpush1.msra.mxu0 0.0
      %1756 = vmatprep.subr.mxu0 0.0
      %1757 = vmatpush1.msra.mxu0 0.0
      %1758 = vmatprep.subr.mxu0 0.0
      %1759 = vmatpush1.msra.mxu0 0.0
      %1760 = vmatprep.subr.mxu0 0.0
      %1761 = vmatpush1.msra.mxu0 0.0
      %1762 = vmatprep.subr.mxu0 0.0
      %1763 = vmatpush1.msra.mxu0 0.0
      %1764 = vmatprep.subr.mxu0 0.0
      %1765 = vmatpush1.msra.mxu0 0.0
      %1766 = vmatprep.subr.mxu0 0.0
      %1767 = vmatpush1.msra.mxu0 0.0
      %1768 = vmatprep.subr.mxu0 0.0
      %1769 = vmatpush1.msra.mxu0 0.0
      %1770 = vmatprep.subr.mxu0 0.0
      %1771 = vmatpush1.msra.mxu0 0.0
      %1772 = vmatprep.mubr.f32.mxu0 0.0
      %1773 = vmatmul.mubr.f32.gmra.mrb[0].mxu0 %v1636
      %v1774 = vpop.f32.mrb[0].mxu0
      %v1775 = vadd.f32 %v1696, %v1774
      %v1776 = vpop.f32.mrb[0].mxu0
      %v1777 = vadd.f32 %v1700, %v1776
      %1778 = vdwg.mxu0
      %1779 = vmatprep.subr.mxu0 0.0
      %1780 = vmatpush1.msra.mxu0 %v1645
      %1781 = vmatprep.subr.mxu0 0.0
      %1782 = vmatpush1.msra.mxu0 %v1648
      %1783 = vmatprep.subr.mxu0 0.0
      %1784 = vmatpush1.msra.mxu0 %v1651
      %1785 = vmatprep.subr.mxu0 0.0
      %1786 = vmatpush1.msra.mxu0 %v1654
      %1787 = vmatprep.subr.mxu0 0.0
      %1788 = vmatpush1.msra.mxu0 %v1657
      %1789 = vmatprep.subr.mxu0 0.0
      %1790 = vmatpush1.msra.mxu0 %v1660
      %1791 = vmatprep.subr.mxu0 0.0
      %1792 = vmatpush1.msra.mxu0 %v1663
      %1793 = vmatprep.subr.mxu0 0.0
      %1794 = vmatpush1.msra.mxu0 %v1666
      %1795 = vmatprep.subr.mxu0 0.0
      %1796 = vmatpush1.msra.mxu0 %v1669
      %1797 = vmatprep.subr.mxu0 0.0
      %1798 = vmatpush1.msra.mxu0 %v1672
      %1799 = vmatprep.subr.mxu0 0.0
      %1800 = vmatpush1.msra.mxu0 %v1675
      %1801 = vmatprep.subr.mxu0 0.0
      %1802 = vmatpush1.msra.mxu0 %v1678
      %1803 = vmatprep.subr.mxu0 0.0
      %1804 = vmatpush1.msra.mxu0 %v1681
      %1805 = vmatprep.subr.mxu0 0.0
      %1806 = vmatpush1.msra.mxu0 %v1684
      %1807 = vmatprep.subr.mxu0 0.0
      %1808 = vmatpush1.msra.mxu0 %v1687
      %1809 = vmatprep.subr.mxu0 0.0
      %1810 = vmatpush1.msra.mxu0 %v1690
      %1811 = vmatprep.subr.mxu0 0.0
      %1812 = vmatpush1.msra.mxu0 0.0
      %1813 = vmatprep.subr.mxu0 0.0
      %1814 = vmatpush1.msra.mxu0 0.0
      %1815 = vmatprep.subr.mxu0 0.0
      %1816 = vmatpush1.msra.mxu0 0.0
      %1817 = vmatprep.subr.mxu0 0.0
      %1818 = vmatpush1.msra.mxu0 0.0
      %1819 = vmatprep.subr.mxu0 0.0
      %1820 = vmatpush1.msra.mxu0 0.0
      %1821 = vmatprep.subr.mxu0 0.0
      %1822 = vmatpush1.msra.mxu0 0.0
      %1823 = vmatprep.subr.mxu0 0.0
      %1824 = vmatpush1.msra.mxu0 0.0
      %1825 = vmatprep.subr.mxu0 0.0
      %1826 = vmatpush1.msra.mxu0 0.0
      %1827 = vmatprep.subr.mxu0 0.0
      %1828 = vmatpush1.msra.mxu0 0.0
      %1829 = vmatprep.subr.mxu0 0.0
      %1830 = vmatpush1.msra.mxu0 0.0
      %1831 = vmatprep.subr.mxu0 0.0
      %1832 = vmatpush1.msra.mxu0 0.0
      %1833 = vmatprep.subr.mxu0 0.0
      %1834 = vmatpush1.msra.mxu0 0.0
      %1835 = vmatprep.subr.mxu0 0.0
      %1836 = vmatpush1.msra.mxu0 0.0
      %1837 = vmatprep.subr.mxu0 0.0
      %1838 = vmatpush1.msra.mxu0 0.0
      %1839 = vmatprep.subr.mxu0 0.0
      %1840 = vmatpush1.msra.mxu0 0.0
      %1841 = vmatprep.subr.mxu0 0.0
      %1842 = vmatpush1.msra.mxu0 0.0
      %1843 = vmatprep.mubr.f32.mxu0 0.0
      %1844 = vmatmul.mubr.f32.gmra.mrb[0].mxu0 %v1636
      %v1845 = vpop.f32.mrb[0].mxu0
      %v1846 = vadd.f32 %v1704, %v1845
      %v1847 = vpop.f32.mrb[0].mxu0
      %1848 = vdwg.mxu0
      %v1849 = vadd.f32 %v1640, %v1775
      %v1850 = vxor.u32 %v1849, 2147483648
      %v1851 = vmul.f32 %v1850, 1.442695
      %v1852 = vpow.pop %v1851
      %v1853 = vadd.f32 %v1852, 1.0
      %v1854 = vrcp.pop %v1853
      %v1855 = vmul.f32 1.0, %v1854
      %v1856 = vadd.f32 %v1641, %v1777
      %v1857 = vxor.u32 %v1856, 2147483648
      %v1858 = vmul.f32 %v1857, 1.442695
      %v1859 = vpow.pop %v1858
      %v1860 = vadd.f32 %v1859, 1.0
      %v1861 = vrcp.pop %v1860
      %v1862 = vmul.f32 1.0, %v1861
      %v1863 = vmul.f32 %v1855, %v1846
      %v1864 = vadd.f32 %v1642, %v1863
      %v1865 = vtanh.pop %v1864
      %v1866 = vsub.f32 1.0, %v1862
      %v1867 = vmul.f32 %v1866, %v1865
      %v1868 = vmul.f32 %v1862, %v1636
      %v1869 = vadd.f32 %v1867, %v1868
      %s1870 = smul.u32 %s1631, 8
      %s1871 = scalar_lea.vmem [#allocation3], %s1870
      %1872 = vst [vmem:[%s1871] sm:$0xff] %v1869
    $region136: #{tpu_custom_call.1} parent=1 // loop_footer
      %s1635 = sadd.s32 1, %s1631
    $region137: #{tpu_custom_call.1} parent=1 // loop_footer_branch
      %1630 = sbr.rel target = $region133
    $region138: #{tpu_custom_call.1} parent=1 // loop_exit
      _
    %v1873 = vld [vmem:[#allocation3] sm:$0xff]
    %v1874 = vld [vmem:[#allocation3 + $0x8] sm:$0xff]
    %v1875 = vld [vmem:[#allocation3 + $0x10] sm:$0xff]
    %v1876 = vld [vmem:[#allocation3 + $0x18] sm:$0xff]
    %v1877 = vld [vmem:[#allocation3 + $0x20] sm:$0xff]
    %v1878 = vld [vmem:[#allocation3 + $0x28] sm:$0xff]
    %v1879 = vld [vmem:[#allocation3 + $0x30] sm:$0xff]
    %v1880 = vld [vmem:[#allocation3 + $0x38] sm:$0xff]
    %v1881 = vld [vmem:[#allocation16] sm:$0xff]
    %v1882 = vld [vmem:[#allocation16 + $0x8] sm:$0xff]
    %v1883 = vld [vmem:[#allocation16 + $0x10] sm:$0xff]
    %v1884 = vld [vmem:[#allocation16 + $0x18] sm:$0xff]
    %v1885 = vld [vmem:[#allocation16 + $0x20] sm:$0xff]
    %v1886 = vld [vmem:[#allocation16 + $0x28] sm:$0xff]
    %v1887 = vld [vmem:[#allocation16 + $0x30] sm:$0xff]
    %v1888 = vld [vmem:[#allocation16 + $0x38] sm:$0xff]
    %v1889 = vld [vmem:[#allocation16 + $0x40] sm:$0xff]
    %v1890 = vld [vmem:[#allocation16 + $0x48] sm:$0xff]
    %v1891 = vld [vmem:[#allocation16 + $0x50] sm:$0xff]
    %v1892 = vld [vmem:[#allocation16 + $0x58] sm:$0xff]
    %v1893 = vld [vmem:[#allocation16 + $0x60] sm:$0xff]
    %v1894 = vld [vmem:[#allocation16 + $0x68] sm:$0xff]
    %v1895 = vld [vmem:[#allocation16 + $0x70] sm:$0xff]
    %v1896 = vld [vmem:[#allocation16 + $0x78] sm:$0xff]
    %v1897 = vld [vmem:[#allocation16 + $0x80] sm:$0xff]
    %v1898 = vld [vmem:[#allocation16 + $0x88] sm:$0xff]
    %v1899 = vld [vmem:[#allocation16 + $0x90] sm:$0xff]
    %v1900 = vld [vmem:[#allocation16 + $0x98] sm:$0xff]
    %v1901 = vld [vmem:[#allocation16 + $0xa0] sm:$0xff]
    %v1902 = vld [vmem:[#allocation16 + $0xa8] sm:$0xff]
    %v1903 = vld [vmem:[#allocation16 + $0xb0] sm:$0xff]
    %v1904 = vld [vmem:[#allocation16 + $0xb8] sm:$0xff]
    %v1905 = vld [vmem:[#allocation16 + $0xc0] sm:$0xff]
    %v1906 = vld [vmem:[#allocation16 + $0xc8] sm:$0xff]
    %v1907 = vld [vmem:[#allocation16 + $0xd0] sm:$0xff]
    %v1908 = vld [vmem:[#allocation16 + $0xd8] sm:$0xff]
    %v1909 = vld [vmem:[#allocation16 + $0xe0] sm:$0xff]
    %v1910 = vld [vmem:[#allocation16 + $0xe8] sm:$0xff]
    %v1911 = vld [vmem:[#allocation16 + $0xf0] sm:$0xff]
    %v1912 = vld [vmem:[#allocation16 + $0xf8] sm:$0xff]
    %v1913 = vld [vmem:[#allocation16 + $0x100] sm:$0xff]
    %v1914 = vld [vmem:[#allocation16 + $0x108] sm:$0xff]
    %v1915 = vld [vmem:[#allocation16 + $0x110] sm:$0xff]
    %v1916 = vld [vmem:[#allocation16 + $0x118] sm:$0xff]
    %v1917 = vld [vmem:[#allocation16 + $0x120] sm:$0xff]
    %v1918 = vld [vmem:[#allocation16 + $0x128] sm:$0xff]
    %v1919 = vld [vmem:[#allocation16 + $0x130] sm:$0xff]
    %v1920 = vld [vmem:[#allocation16 + $0x138] sm:$0xff]
    %v1921 = vld [vmem:[#allocation16 + $0x140] sm:$0xff]
    %v1922 = vld [vmem:[#allocation16 + $0x148] sm:$0xff]
    %v1923 = vld [vmem:[#allocation16 + $0x150] sm:$0xff]
    %v1924 = vld [vmem:[#allocation16 + $0x158] sm:$0xff]
    %v1925 = vld [vmem:[#allocation16 + $0x160] sm:$0xff]
    %v1926 = vld [vmem:[#allocation16 + $0x168] sm:$0xff]
    %v1927 = vld [vmem:[#allocation16 + $0x170] sm:$0xff]
    %v1928 = vld [vmem:[#allocation16 + $0x178] sm:$0xff]
    %v1929 = vld [vmem:[%s15] sm:$0x7]
    %v1931 = vlaneseq
    %v1932 = vshrl.u32 %v1931, 7
    %v1933 = vsub.s32 0, %v1932
    %v1934 = vrot.slane %v1929, %v1933
    %v1935 = vlaneseq
    %v1936 = vshrl.u32 %v1935, 7
    %v1937 = vsub.s32 1, %v1936
    %v1938 = vrot.slane %v1929, %v1937
    %v1939 = vlaneseq
    %v1940 = vshrl.u32 %v1939, 7
    %v1941 = vsub.s32 2, %v1940
    %v1942 = vrot.slane %v1929, %v1941
    %1946 = vmatprep.subr.mxu0 %v1882
    %1947 = vmatpush1.msra.mxu0 %v1881
    %1948 = vmatprep.subr.mxu0 %v1885
    %1949 = vmatpush1.msra.mxu0 %v1884
    %1950 = vmatprep.subr.mxu0 %v1888
    %1951 = vmatpush1.msra.mxu0 %v1887
    %1952 = vmatprep.subr.mxu0 %v1891
    %1953 = vmatpush1.msra.mxu0 %v1890
    %1954 = vmatprep.subr.mxu0 %v1894
    %1955 = vmatpush1.msra.mxu0 %v1893
    %1956 = vmatprep.subr.mxu0 %v1897
    %1957 = vmatpush1.msra.mxu0 %v1896
    %1958 = vmatprep.subr.mxu0 %v1900
    %1959 = vmatpush1.msra.mxu0 %v1899
    %1960 = vmatprep.subr.mxu0 %v1903
    %1961 = vmatpush1.msra.mxu0 %v1902
    %1962 = vmatprep.subr.mxu0 %v1906
    %1963 = vmatpush1.msra.mxu0 %v1905
    %1964 = vmatprep.subr.mxu0 %v1909
    %1965 = vmatpush1.msra.mxu0 %v1908
    %1966 = vmatprep.subr.mxu0 %v1912
    %1967 = vmatpush1.msra.mxu0 %v1911
    %1968 = vmatprep.subr.mxu0 %v1915
    %1969 = vmatpush1.msra.mxu0 %v1914
    %1970 = vmatprep.subr.mxu0 %v1918
    %1971 = vmatpush1.msra.mxu0 %v1917
    %1972 = vmatprep.subr.mxu0 %v1921
    %1973 = vmatpush1.msra.mxu0 %v1920
    %1974 = vmatprep.subr.mxu0 %v1924
    %1975 = vmatpush1.msra.mxu0 %v1923
    %1976 = vmatprep.subr.mxu0 %v1927
    %1977 = vmatpush1.msra.mxu0 %v1926
    %1978 = vmatprep.subr.mxu0 0.0
    %1979 = vmatpush1.msra.mxu0 0.0
    %1980 = vmatprep.subr.mxu0 0.0
    %1981 = vmatpush1.msra.mxu0 0.0
    %1982 = vmatprep.subr.mxu0 0.0
    %1983 = vmatpush1.msra.mxu0 0.0
    %1984 = vmatprep.subr.mxu0 0.0
    %1985 = vmatpush1.msra.mxu0 0.0
    %1986 = vmatprep.subr.mxu0 0.0
    %1987 = vmatpush1.msra.mxu0 0.0
    %1988 = vmatprep.subr.mxu0 0.0
    %1989 = vmatpush1.msra.mxu0 0.0
    %1990 = vmatprep.subr.mxu0 0.0
    %1991 = vmatpush1.msra.mxu0 0.0
    %1992 = vmatprep.subr.mxu0 0.0
    %1993 = vmatpush1.msra.mxu0 0.0
    %1994 = vmatprep.subr.mxu0 0.0
    %1995 = vmatpush1.msra.mxu0 0.0
    %1996 = vmatprep.subr.mxu0 0.0
    %1997 = vmatpush1.msra.mxu0 0.0
    %1998 = vmatprep.subr.mxu0 0.0
    %1999 = vmatpush1.msra.mxu0 0.0
    %2000 = vmatprep.subr.mxu0 0.0
    %2001 = vmatpush1.msra.mxu0 0.0
    %2002 = vmatprep.subr.mxu0 0.0
    %2003 = vmatpush1.msra.mxu0 0.0
    %2004 = vmatprep.subr.mxu0 0.0
    %2005 = vmatpush1.msra.mxu0 0.0
    %2006 = vmatprep.subr.mxu0 0.0
    %2007 = vmatpush1.msra.mxu0 0.0
    %2008 = vmatprep.subr.mxu0 0.0
    %2009 = vmatpush1.msra.mxu0 0.0
    %2010 = vmatprep.mubr.f32.mxu0 0.0
    %2011 = vmatmul.mubr.f32.gmra.mrb[0].mxu0 %v1873
    %v2012 = vpop.f32.mrb[0].mxu0
    %v2013 = vadd.f32 %v1934, %v2012
    %v2014 = vpop.f32.mrb[0].mxu0
    %v2015 = vadd.f32 %v1938, %v2014
    %2016 = vmatprep.mubr.f32.mxu0 0.0
    %2017 = vmatmul.mubr.f32.gmra.mrb[0].mxu0 %v1874
    %v2018 = vpop.f32.mrb[0].mxu0
    %v2019 = vadd.f32 %v1934, %v2018
    %v2020 = vpop.f32.mrb[0].mxu0
    %v2021 = vadd.f32 %v1938, %v2020
    %2022 = vmatprep.mubr.f32.mxu0 0.0
    %2023 = vmatmul.mubr.f32.gmra.mrb[0].mxu0 %v1875
    %v2024 = vpop.f32.mrb[0].mxu0
    %v2025 = vadd.f32 %v1934, %v2024
    %v2026 = vpop.f32.mrb[0].mxu0
    %v2027 = vadd.f32 %v1938, %v2026
    %2028 = vmatprep.mubr.f32.mxu0 0.0
    %2029 = vmatmul.mubr.f32.gmra.mrb[0].mxu0 %v1876
    %v2030 = vpop.f32.mrb[0].mxu0
    %v2031 = vadd.f32 %v1934, %v2030
    %v2032 = vpop.f32.mrb[0].mxu0
    %v2033 = vadd.f32 %v1938, %v2032
    %2034 = vmatprep.mubr.f32.mxu0 0.0
    %2035 = vmatmul.mubr.f32.gmra.mrb[0].mxu0 %v1877
    %v2036 = vpop.f32.mrb[0].mxu0
    %v2037 = vadd.f32 %v1934, %v2036
    %v2038 = vpop.f32.mrb[0].mxu0
    %v2039 = vadd.f32 %v1938, %v2038
    %2040 = vmatprep.mubr.f32.mxu0 0.0
    %2041 = vmatmul.mubr.f32.gmra.mrb[0].mxu0 %v1878
    %v2042 = vpop.f32.mrb[0].mxu0
    %v2043 = vadd.f32 %v1934, %v2042
    %v2044 = vpop.f32.mrb[0].mxu0
    %v2045 = vadd.f32 %v1938, %v2044
    %2046 = vmatprep.mubr.f32.mxu0 0.0
    %2047 = vmatmul.mubr.f32.gmra.mrb[0].mxu0 %v1879
    %v2048 = vpop.f32.mrb[0].mxu0
    %v2049 = vadd.f32 %v1934, %v2048
    %v2050 = vpop.f32.mrb[0].mxu0
    %v2051 = vadd.f32 %v1938, %v2050
    %2052 = vmatprep.mubr.f32.mxu0 0.0
    %2053 = vmatmul.mubr.f32.gmra.mrb[0].mxu0 %v1880
    %v2054 = vpop.f32.mrb[0].mxu0
    %v2055 = vadd.f32 %v1934, %v2054
    %v2056 = vpop.f32.mrb[0].mxu0
    %v2057 = vadd.f32 %v1938, %v2056
    %2058 = vdwg.mxu0
    %2059 = vmatprep.subr.mxu0 0.0
    %2060 = vmatpush1.msra.mxu0 %v1883
    %2061 = vmatprep.subr.mxu0 0.0
    %2062 = vmatpush1.msra.mxu0 %v1886
    %2063 = vmatprep.subr.mxu0 0.0
    %2064 = vmatpush1.msra.mxu0 %v1889
    %2065 = vmatprep.subr.mxu0 0.0
    %2066 = vmatpush1.msra.mxu0 %v1892
    %2067 = vmatprep.subr.mxu0 0.0
    %2068 = vmatpush1.msra.mxu0 %v1895
    %2069 = vmatprep.subr.mxu0 0.0
    %2070 = vmatpush1.msra.mxu0 %v1898
    %2071 = vmatprep.subr.mxu0 0.0
    %2072 = vmatpush1.msra.mxu0 %v1901
    %2073 = vmatprep.subr.mxu0 0.0
    %2074 = vmatpush1.msra.mxu0 %v1904
    %2075 = vmatprep.subr.mxu0 0.0
    %2076 = vmatpush1.msra.mxu0 %v1907
    %2077 = vmatprep.subr.mxu0 0.0
    %2078 = vmatpush1.msra.mxu0 %v1910
    %2079 = vmatprep.subr.mxu0 0.0
    %2080 = vmatpush1.msra.mxu0 %v1913
    %2081 = vmatprep.subr.mxu0 0.0
    %2082 = vmatpush1.msra.mxu0 %v1916
    %2083 = vmatprep.subr.mxu0 0.0
    %2084 = vmatpush1.msra.mxu0 %v1919
    %2085 = vmatprep.subr.mxu0 0.0
    %2086 = vmatpush1.msra.mxu0 %v1922
    %2087 = vmatprep.subr.mxu0 0.0
    %2088 = vmatpush1.msra.mxu0 %v1925
    %2089 = vmatprep.subr.mxu0 0.0
    %2090 = vmatpush1.msra.mxu0 %v1928
    %2091 = vmatprep.subr.mxu0 0.0
    %2092 = vmatpush1.msra.mxu0 0.0
    %2093 = vmatprep.subr.mxu0 0.0
    %2094 = vmatpush1.msra.mxu0 0.0
    %2095 = vmatprep.subr.mxu0 0.0
    %2096 = vmatpush1.msra.mxu0 0.0
    %2097 = vmatprep.subr.mxu0 0.0
    %2098 = vmatpush1.msra.mxu0 0.0
    %2099 = vmatprep.subr.mxu0 0.0
    %2100 = vmatpush1.msra.mxu0 0.0
    %2101 = vmatprep.subr.mxu0 0.0
    %2102 = vmatpush1.msra.mxu0 0.0
    %2103 = vmatprep.subr.mxu0 0.0
    %2104 = vmatpush1.msra.mxu0 0.0
    %2105 = vmatprep.subr.mxu0 0.0
    %2106 = vmatpush1.msra.mxu0 0.0
    %2107 = vmatprep.subr.mxu0 0.0
    %2108 = vmatpush1.msra.mxu0 0.0
    %2109 = vmatprep.subr.mxu0 0.0
    %2110 = vmatpush1.msra.mxu0 0.0
    %2111 = vmatprep.subr.mxu0 0.0
    %2112 = vmatpush1.msra.mxu0 0.0
    %2113 = vmatprep.subr.mxu0 0.0
    %2114 = vmatpush1.msra.mxu0 0.0
    %2115 = vmatprep.subr.mxu0 0.0
    %2116 = vmatpush1.msra.mxu0 0.0
    %2117 = vmatprep.subr.mxu0 0.0
    %2118 = vmatpush1.msra.mxu0 0.0
    %2119 = vmatprep.subr.mxu0 0.0
    %2120 = vmatpush1.msra.mxu0 0.0
    %2121 = vmatprep.subr.mxu0 0.0
    %2122 = vmatpush1.msra.mxu0 0.0
    %2123 = vmatprep.mubr.f32.mxu0 0.0
    %2124 = vmatmul.mubr.f32.gmra.mrb[0].mxu0 %v1873
    %v2125 = vpop.f32.mrb[0].mxu0
    %v2126 = vadd.f32 %v1942, %v2125
    %v2127 = vpop.f32.mrb[0].mxu0
    %2128 = vmatprep.mubr.f32.mxu0 0.0
    %2129 = vmatmul.mubr.f32.gmra.mrb[0].mxu0 %v1874
    %v2130 = vpop.f32.mrb[0].mxu0
    %v2131 = vadd.f32 %v1942, %v2130
    %v2132 = vpop.f32.mrb[0].mxu0
    %2133 = vmatprep.mubr.f32.mxu0 0.0
    %2134 = vmatmul.mubr.f32.gmra.mrb[0].mxu0 %v1875
    %v2135 = vpop.f32.mrb[0].mxu0
    %v2136 = vadd.f32 %v1942, %v2135
    %v2137 = vpop.f32.mrb[0].mxu0
    %2138 = vmatprep.mubr.f32.mxu0 0.0
    %2139 = vmatmul.mubr.f32.gmra.mrb[0].mxu0 %v1876
    %v2140 = vpop.f32.mrb[0].mxu0
    %v2141 = vadd.f32 %v1942, %v2140
    %v2142 = vpop.f32.mrb[0].mxu0
    %2143 = vmatprep.mubr.f32.mxu0 0.0
    %2144 = vmatmul.mubr.f32.gmra.mrb[0].mxu0 %v1877
    %v2145 = vpop.f32.mrb[0].mxu0
    %v2146 = vadd.f32 %v1942, %v2145
    %v2147 = vpop.f32.mrb[0].mxu0
    %2148 = vmatprep.mubr.f32.mxu0 0.0
    %2149 = vmatmul.mubr.f32.gmra.mrb[0].mxu0 %v1878
    %v2150 = vpop.f32.mrb[0].mxu0
    %v2151 = vadd.f32 %v1942, %v2150
    %v2152 = vpop.f32.mrb[0].mxu0
    %2153 = vmatprep.mubr.f32.mxu0 0.0
    %2154 = vmatmul.mubr.f32.gmra.mrb[0].mxu0 %v1879
    %v2155 = vpop.f32.mrb[0].mxu0
    %v2156 = vadd.f32 %v1942, %v2155
    %v2157 = vpop.f32.mrb[0].mxu0
    %2158 = vmatprep.mubr.f32.mxu0 0.0
    %2159 = vmatmul.mubr.f32.gmra.mrb[0].mxu0 %v1880
    %v2160 = vpop.f32.mrb[0].mxu0
    %v2161 = vadd.f32 %v1942, %v2160
    %v2162 = vpop.f32.mrb[0].mxu0
    %2163 = vdwg.mxu0
    %2164 = vst [vmem:[#allocation2] sm:$0xff] %v2013
    %2165 = vst [vmem:[#allocation2 + $0x8] sm:$0xff] %v2015
    %2166 = vst [vmem:[#allocation2 + $0x10] sm:$0xff] %v2126
    %2167 = vst [vmem:[#allocation2 + $0x18] sm:$0xff] %v2019
    %2168 = vst [vmem:[#allocation2 + $0x20] sm:$0xff] %v2021
    %2169 = vst [vmem:[#allocation2 + $0x28] sm:$0xff] %v2131
    %2170 = vst [vmem:[#allocation2 + $0x30] sm:$0xff] %v2025
    %2171 = vst [vmem:[#allocation2 + $0x38] sm:$0xff] %v2027
    %2172 = vst [vmem:[#allocation2 + $0x40] sm:$0xff] %v2136
    %2173 = vst [vmem:[#allocation2 + $0x48] sm:$0xff] %v2031
    %2174 = vst [vmem:[#allocation2 + $0x50] sm:$0xff] %v2033
    %2175 = vst [vmem:[#allocation2 + $0x58] sm:$0xff] %v2141
    %2176 = vst [vmem:[#allocation2 + $0x60] sm:$0xff] %v2037
    %2177 = vst [vmem:[#allocation2 + $0x68] sm:$0xff] %v2039
    %2178 = vst [vmem:[#allocation2 + $0x70] sm:$0xff] %v2146
    %2179 = vst [vmem:[#allocation2 + $0x78] sm:$0xff] %v2043
    %2180 = vst [vmem:[#allocation2 + $0x80] sm:$0xff] %v2045
    %2181 = vst [vmem:[#allocation2 + $0x88] sm:$0xff] %v2151
    %2182 = vst [vmem:[#allocation2 + $0x90] sm:$0xff] %v2049
    %2183 = vst [vmem:[#allocation2 + $0x98] sm:$0xff] %v2051
    %2184 = vst [vmem:[#allocation2 + $0xa0] sm:$0xff] %v2156
    %2185 = vst [vmem:[#allocation2 + $0xa8] sm:$0xff] %v2055
    %2186 = vst [vmem:[#allocation2 + $0xb0] sm:$0xff] %v2057
    %2187 = vst [vmem:[#allocation2 + $0xb8] sm:$0xff] %v2161
    loop: start=0, step=1, limit=8
    $region139: #{tpu_custom_call.1} parent=1 // loop_pre_header
      _
    $region140: #{tpu_custom_call.1} parent=1 // loop_header
      %s2189 = sphi 0, %s2193
      %p2190 = scmp.ge.s32.totalorder %s2189, 8
      %v2194 = vphi 0.0, %v2427
    $region141: #{tpu_custom_call.1} parent=1 // loop_header_branch
      %2192 = sbr.rel (%p2190) target = $region145
    $region142: #{tpu_custom_call.1} parent=1 // loop_body
      %s2195 = smul.u32 %s2189, 3
      %s2196 = smul.addr %s2195, 8
      %s2197 = scalar_lea.vmem [#allocation2], %s2196
      %v2198 = vld [vmem:[%s2197] sm:$0xff]
      %v2199 = vld [vmem:[%s2197 + $0x8] sm:$0xff]
      %v2200 = vld [vmem:[%s2197 + $0x10] sm:$0xff]
      %v2201 = vld [vmem:[#allocation18] sm:$0xff]
      %v2202 = vld [vmem:[#allocation18 + $0x8] sm:$0xff]
      %v2203 = vld [vmem:[#allocation18 + $0x10] sm:$0xff]
      %v2204 = vld [vmem:[#allocation18 + $0x18] sm:$0xff]
      %v2205 = vld [vmem:[#allocation18 + $0x20] sm:$0xff]
      %v2206 = vld [vmem:[#allocation18 + $0x28] sm:$0xff]
      %v2207 = vld [vmem:[#allocation18 + $0x30] sm:$0xff]
      %v2208 = vld [vmem:[#allocation18 + $0x38] sm:$0xff]
      %v2209 = vld [vmem:[#allocation18 + $0x40] sm:$0xff]
      %v2210 = vld [vmem:[#allocation18 + $0x48] sm:$0xff]
      %v2211 = vld [vmem:[#allocation18 + $0x50] sm:$0xff]
      %v2212 = vld [vmem:[#allocation18 + $0x58] sm:$0xff]
      %v2213 = vld [vmem:[#allocation18 + $0x60] sm:$0xff]
      %v2214 = vld [vmem:[#allocation18 + $0x68] sm:$0xff]
      %v2215 = vld [vmem:[#allocation18 + $0x70] sm:$0xff]
      %v2216 = vld [vmem:[#allocation18 + $0x78] sm:$0xff]
      %v2217 = vld [vmem:[#allocation18 + $0x80] sm:$0xff]
      %v2218 = vld [vmem:[#allocation18 + $0x88] sm:$0xff]
      %v2219 = vld [vmem:[#allocation18 + $0x90] sm:$0xff]
      %v2220 = vld [vmem:[#allocation18 + $0x98] sm:$0xff]
      %v2221 = vld [vmem:[#allocation18 + $0xa0] sm:$0xff]
      %v2222 = vld [vmem:[#allocation18 + $0xa8] sm:$0xff]
      %v2223 = vld [vmem:[#allocation18 + $0xb0] sm:$0xff]
      %v2224 = vld [vmem:[#allocation18 + $0xb8] sm:$0xff]
      %v2225 = vld [vmem:[#allocation18 + $0xc0] sm:$0xff]
      %v2226 = vld [vmem:[#allocation18 + $0xc8] sm:$0xff]
      %v2227 = vld [vmem:[#allocation18 + $0xd0] sm:$0xff]
      %v2228 = vld [vmem:[#allocation18 + $0xd8] sm:$0xff]
      %v2229 = vld [vmem:[#allocation18 + $0xe0] sm:$0xff]
      %v2230 = vld [vmem:[#allocation18 + $0xe8] sm:$0xff]
      %v2231 = vld [vmem:[#allocation18 + $0xf0] sm:$0xff]
      %v2232 = vld [vmem:[#allocation18 + $0xf8] sm:$0xff]
      %v2233 = vld [vmem:[#allocation18 + $0x100] sm:$0xff]
      %v2234 = vld [vmem:[#allocation18 + $0x108] sm:$0xff]
      %v2235 = vld [vmem:[#allocation18 + $0x110] sm:$0xff]
      %v2236 = vld [vmem:[#allocation18 + $0x118] sm:$0xff]
      %v2237 = vld [vmem:[#allocation18 + $0x120] sm:$0xff]
      %v2238 = vld [vmem:[#allocation18 + $0x128] sm:$0xff]
      %v2239 = vld [vmem:[#allocation18 + $0x130] sm:$0xff]
      %v2240 = vld [vmem:[#allocation18 + $0x138] sm:$0xff]
      %v2241 = vld [vmem:[#allocation18 + $0x140] sm:$0xff]
      %v2242 = vld [vmem:[#allocation18 + $0x148] sm:$0xff]
      %v2243 = vld [vmem:[#allocation18 + $0x150] sm:$0xff]
      %v2244 = vld [vmem:[#allocation18 + $0x158] sm:$0xff]
      %v2245 = vld [vmem:[#allocation18 + $0x160] sm:$0xff]
      %v2246 = vld [vmem:[#allocation18 + $0x168] sm:$0xff]
      %v2247 = vld [vmem:[#allocation18 + $0x170] sm:$0xff]
      %v2248 = vld [vmem:[#allocation18 + $0x178] sm:$0xff]
      %v2249 = vld [vmem:[%s16] sm:$0x7]
      %v2251 = vlaneseq
      %v2252 = vshrl.u32 %v2251, 7
      %v2253 = vsub.s32 0, %v2252
      %v2254 = vrot.slane %v2249, %v2253
      %v2255 = vlaneseq
      %v2256 = vshrl.u32 %v2255, 7
      %v2257 = vsub.s32 1, %v2256
      %v2258 = vrot.slane %v2249, %v2257
      %v2259 = vlaneseq
      %v2260 = vshrl.u32 %v2259, 7
      %v2261 = vsub.s32 2, %v2260
      %v2262 = vrot.slane %v2249, %v2261
      %2266 = vmatprep.subr.mxu0 %v2202
      %2267 = vmatpush1.msra.mxu0 %v2201
      %2268 = vmatprep.subr.mxu0 %v2205
      %2269 = vmatpush1.msra.mxu0 %v2204
      %2270 = vmatprep.subr.mxu0 %v2208
      %2271 = vmatpush1.msra.mxu0 %v2207
      %2272 = vmatprep.subr.mxu0 %v2211
      %2273 = vmatpush1.msra.mxu0 %v2210
      %2274 = vmatprep.subr.mxu0 %v2214
      %2275 = vmatpush1.msra.mxu0 %v2213
      %2276 = vmatprep.subr.mxu0 %v2217
      %2277 = vmatpush1.msra.mxu0 %v2216
      %2278 = vmatprep.subr.mxu0 %v2220
      %2279 = vmatpush1.msra.mxu0 %v2219
      %2280 = vmatprep.subr.mxu0 %v2223
      %2281 = vmatpush1.msra.mxu0 %v2222
      %2282 = vmatprep.subr.mxu0 %v2226
      %2283 = vmatpush1.msra.mxu0 %v2225
      %2284 = vmatprep.subr.mxu0 %v2229
      %2285 = vmatpush1.msra.mxu0 %v2228
      %2286 = vmatprep.subr.mxu0 %v2232
      %2287 = vmatpush1.msra.mxu0 %v2231
      %2288 = vmatprep.subr.mxu0 %v2235
      %2289 = vmatpush1.msra.mxu0 %v2234
      %2290 = vmatprep.subr.mxu0 %v2238
      %2291 = vmatpush1.msra.mxu0 %v2237
      %2292 = vmatprep.subr.mxu0 %v2241
      %2293 = vmatpush1.msra.mxu0 %v2240
      %2294 = vmatprep.subr.mxu0 %v2244
      %2295 = vmatpush1.msra.mxu0 %v2243
      %2296 = vmatprep.subr.mxu0 %v2247
      %2297 = vmatpush1.msra.mxu0 %v2246
      %2298 = vmatprep.subr.mxu0 0.0
      %2299 = vmatpush1.msra.mxu0 0.0
      %2300 = vmatprep.subr.mxu0 0.0
      %2301 = vmatpush1.msra.mxu0 0.0
      %2302 = vmatprep.subr.mxu0 0.0
      %2303 = vmatpush1.msra.mxu0 0.0
      %2304 = vmatprep.subr.mxu0 0.0
      %2305 = vmatpush1.msra.mxu0 0.0
      %2306 = vmatprep.subr.mxu0 0.0
      %2307 = vmatpush1.msra.mxu0 0.0
      %2308 = vmatprep.subr.mxu0 0.0
      %2309 = vmatpush1.msra.mxu0 0.0
      %2310 = vmatprep.subr.mxu0 0.0
      %2311 = vmatpush1.msra.mxu0 0.0
      %2312 = vmatprep.subr.mxu0 0.0
      %2313 = vmatpush1.msra.mxu0 0.0
      %2314 = vmatprep.subr.mxu0 0.0
      %2315 = vmatpush1.msra.mxu0 0.0
      %2316 = vmatprep.subr.mxu0 0.0
      %2317 = vmatpush1.msra.mxu0 0.0
      %2318 = vmatprep.subr.mxu0 0.0
      %2319 = vmatpush1.msra.mxu0 0.0
      %2320 = vmatprep.subr.mxu0 0.0
      %2321 = vmatpush1.msra.mxu0 0.0
      %2322 = vmatprep.subr.mxu0 0.0
      %2323 = vmatpush1.msra.mxu0 0.0
      %2324 = vmatprep.subr.mxu0 0.0
      %2325 = vmatpush1.msra.mxu0 0.0
      %2326 = vmatprep.subr.mxu0 0.0
      %2327 = vmatpush1.msra.mxu0 0.0
      %2328 = vmatprep.subr.mxu0 0.0
      %2329 = vmatpush1.msra.mxu0 0.0
      %2330 = vmatprep.mubr.f32.mxu0 0.0
      %2331 = vmatmul.mubr.f32.gmra.mrb[0].mxu0 %v2194
      %v2332 = vpop.f32.mrb[0].mxu0
      %v2333 = vadd.f32 %v2254, %v2332
      %v2334 = vpop.f32.mrb[0].mxu0
      %v2335 = vadd.f32 %v2258, %v2334
      %2336 = vdwg.mxu0
      %2337 = vmatprep.subr.mxu0 0.0
      %2338 = vmatpush1.msra.mxu0 %v2203
      %2339 = vmatprep.subr.mxu0 0.0
      %2340 = vmatpush1.msra.mxu0 %v2206
      %2341 = vmatprep.subr.mxu0 0.0
      %2342 = vmatpush1.msra.mxu0 %v2209
      %2343 = vmatprep.subr.mxu0 0.0
      %2344 = vmatpush1.msra.mxu0 %v2212
      %2345 = vmatprep.subr.mxu0 0.0
      %2346 = vmatpush1.msra.mxu0 %v2215
      %2347 = vmatprep.subr.mxu0 0.0
      %2348 = vmatpush1.msra.mxu0 %v2218
      %2349 = vmatprep.subr.mxu0 0.0
      %2350 = vmatpush1.msra.mxu0 %v2221
      %2351 = vmatprep.subr.mxu0 0.0
      %2352 = vmatpush1.msra.mxu0 %v2224
      %2353 = vmatprep.subr.mxu0 0.0
      %2354 = vmatpush1.msra.mxu0 %v2227
      %2355 = vmatprep.subr.mxu0 0.0
      %2356 = vmatpush1.msra.mxu0 %v2230
      %2357 = vmatprep.subr.mxu0 0.0
      %2358 = vmatpush1.msra.mxu0 %v2233
      %2359 = vmatprep.subr.mxu0 0.0
      %2360 = vmatpush1.msra.mxu0 %v2236
      %2361 = vmatprep.subr.mxu0 0.0
      %2362 = vmatpush1.msra.mxu0 %v2239
      %2363 = vmatprep.subr.mxu0 0.0
      %2364 = vmatpush1.msra.mxu0 %v2242
      %2365 = vmatprep.subr.mxu0 0.0
      %2366 = vmatpush1.msra.mxu0 %v2245
      %2367 = vmatprep.subr.mxu0 0.0
      %2368 = vmatpush1.msra.mxu0 %v2248
      %2369 = vmatprep.subr.mxu0 0.0
      %2370 = vmatpush1.msra.mxu0 0.0
      %2371 = vmatprep.subr.mxu0 0.0
      %2372 = vmatpush1.msra.mxu0 0.0
      %2373 = vmatprep.subr.mxu0 0.0
      %2374 = vmatpush1.msra.mxu0 0.0
      %2375 = vmatprep.subr.mxu0 0.0
      %2376 = vmatpush1.msra.mxu0 0.0
      %2377 = vmatprep.subr.mxu0 0.0
      %2378 = vmatpush1.msra.mxu0 0.0
      %2379 = vmatprep.subr.mxu0 0.0
      %2380 = vmatpush1.msra.mxu0 0.0
      %2381 = vmatprep.subr.mxu0 0.0
      %2382 = vmatpush1.msra.mxu0 0.0
      %2383 = vmatprep.subr.mxu0 0.0
      %2384 = vmatpush1.msra.mxu0 0.0
      %2385 = vmatprep.subr.mxu0 0.0
      %2386 = vmatpush1.msra.mxu0 0.0
      %2387 = vmatprep.subr.mxu0 0.0
      %2388 = vmatpush1.msra.mxu0 0.0
      %2389 = vmatprep.subr.mxu0 0.0
      %2390 = vmatpush1.msra.mxu0 0.0
      %2391 = vmatprep.subr.mxu0 0.0
      %2392 = vmatpush1.msra.mxu0 0.0
      %2393 = vmatprep.subr.mxu0 0.0
      %2394 = vmatpush1.msra.mxu0 0.0
      %2395 = vmatprep.subr.mxu0 0.0
      %2396 = vmatpush1.msra.mxu0 0.0
      %2397 = vmatprep.subr.mxu0 0.0
      %2398 = vmatpush1.msra.mxu0 0.0
      %2399 = vmatprep.subr.mxu0 0.0
      %2400 = vmatpush1.msra.mxu0 0.0
      %2401 = vmatprep.mubr.f32.mxu0 0.0
      %2402 = vmatmul.mubr.f32.gmra.mrb[0].mxu0 %v2194
      %v2403 = vpop.f32.mrb[0].mxu0
      %v2404 = vadd.f32 %v2262, %v2403
      %v2405 = vpop.f32.mrb[0].mxu0
      %2406 = vdwg.mxu0
      %v2407 = vadd.f32 %v2198, %v2333
      %v2408 = vxor.u32 %v2407, 2147483648
      %v2409 = vmul.f32 %v2408, 1.442695
      %v2410 = vpow.pop %v2409
      %v2411 = vadd.f32 %v2410, 1.0
      %v2412 = vrcp.pop %v2411
      %v2413 = vmul.f32 1.0, %v2412
      %v2414 = vadd.f32 %v2199, %v2335
      %v2415 = vxor.u32 %v2414, 2147483648
      %v2416 = vmul.f32 %v2415, 1.442695
      %v2417 = vpow.pop %v2416
      %v2418 = vadd.f32 %v2417, 1.0
      %v2419 = vrcp.pop %v2418
      %v2420 = vmul.f32 1.0, %v2419
      %v2421 = vmul.f32 %v2413, %v2404
      %v2422 = vadd.f32 %v2200, %v2421
      %v2423 = vtanh.pop %v2422
      %v2424 = vsub.f32 1.0, %v2420
      %v2425 = vmul.f32 %v2424, %v2423
      %v2426 = vmul.f32 %v2420, %v2194
      %v2427 = vadd.f32 %v2425, %v2426
      %s2428 = smul.u32 %s2189, 8
      %s2429 = scalar_lea.vmem [#allocation3], %s2428
      %2430 = vst [vmem:[%s2429] sm:$0xff] %v2427
    $region143: #{tpu_custom_call.1} parent=1 // loop_footer
      %s2193 = sadd.s32 1, %s2189
    $region144: #{tpu_custom_call.1} parent=1 // loop_footer_branch
      %2188 = sbr.rel target = $region140
    $region145: #{tpu_custom_call.1} parent=1 // loop_exit
      _
    %v2431 = vld [vmem:[#allocation3] sm:$0xff]
    %v2432 = vld [vmem:[#allocation3 + $0x8] sm:$0xff]
    %v2433 = vld [vmem:[#allocation3 + $0x10] sm:$0xff]
    %v2434 = vld [vmem:[#allocation3 + $0x18] sm:$0xff]
    %v2435 = vld [vmem:[#allocation3 + $0x20] sm:$0xff]
    %v2436 = vld [vmem:[#allocation3 + $0x28] sm:$0xff]
    %v2437 = vld [vmem:[#allocation3 + $0x30] sm:$0xff]
    %v2438 = vld [vmem:[#allocation3 + $0x38] sm:$0xff]
    %v2439 = vld [vmem:[#allocation19] sm:$0xff]
    %v2440 = vld [vmem:[#allocation19 + $0x8] sm:$0xff]
    %v2441 = vld [vmem:[#allocation19 + $0x10] sm:$0xff]
    %v2442 = vld [vmem:[#allocation19 + $0x18] sm:$0xff]
    %v2443 = vld [vmem:[#allocation19 + $0x20] sm:$0xff]
    %v2444 = vld [vmem:[#allocation19 + $0x28] sm:$0xff]
    %v2445 = vld [vmem:[#allocation19 + $0x30] sm:$0xff]
    %v2446 = vld [vmem:[#allocation19 + $0x38] sm:$0xff]
    %v2447 = vld [vmem:[#allocation19 + $0x40] sm:$0xff]
    %v2448 = vld [vmem:[#allocation19 + $0x48] sm:$0xff]
    %v2449 = vld [vmem:[#allocation19 + $0x50] sm:$0xff]
    %v2450 = vld [vmem:[#allocation19 + $0x58] sm:$0xff]
    %v2451 = vld [vmem:[#allocation19 + $0x60] sm:$0xff]
    %v2452 = vld [vmem:[#allocation19 + $0x68] sm:$0xff]
    %v2453 = vld [vmem:[#allocation19 + $0x70] sm:$0xff]
    %v2454 = vld [vmem:[#allocation19 + $0x78] sm:$0xff]
    %v2455 = vld [vmem:[%s18] sm:$0x1]
    %v2457 = vlaneseq
    %v2458 = vshrl.u32 %v2457, 7
    %v2459 = vsub.s32 0, %v2458
    %v2460 = vrot.slane %v2455, %v2459
    %2462 = vmatprep.subr.mxu0 0.0
    %2463 = vmatpush1.msra.mxu0 %v2439
    %2464 = vmatprep.subr.mxu0 0.0
    %2465 = vmatpush1.msra.mxu0 %v2440
    %2466 = vmatprep.subr.mxu0 0.0
    %2467 = vmatpush1.msra.mxu0 %v2441
    %2468 = vmatprep.subr.mxu0 0.0
    %2469 = vmatpush1.msra.mxu0 %v2442
    %2470 = vmatprep.subr.mxu0 0.0
    %2471 = vmatpush1.msra.mxu0 %v2443
    %2472 = vmatprep.subr.mxu0 0.0
    %2473 = vmatpush1.msra.mxu0 %v2444
    %2474 = vmatprep.subr.mxu0 0.0
    %2475 = vmatpush1.msra.mxu0 %v2445
    %2476 = vmatprep.subr.mxu0 0.0
    %2477 = vmatpush1.msra.mxu0 %v2446
    %2478 = vmatprep.subr.mxu0 0.0
    %2479 = vmatpush1.msra.mxu0 %v2447
    %2480 = vmatprep.subr.mxu0 0.0
    %2481 = vmatpush1.msra.mxu0 %v2448
    %2482 = vmatprep.subr.mxu0 0.0
    %2483 = vmatpush1.msra.mxu0 %v2449
    %2484 = vmatprep.subr.mxu0 0.0
    %2485 = vmatpush1.msra.mxu0 %v2450
    %2486 = vmatprep.subr.mxu0 0.0
    %2487 = vmatpush1.msra.mxu0 %v2451
    %2488 = vmatprep.subr.mxu0 0.0
    %2489 = vmatpush1.msra.mxu0 %v2452
    %2490 = vmatprep.subr.mxu0 0.0
    %2491 = vmatpush1.msra.mxu0 %v2453
    %2492 = vmatprep.subr.mxu0 0.0
    %2493 = vmatpush1.msra.mxu0 %v2454
    %2494 = vmatprep.subr.mxu0 0.0
    %2495 = vmatpush1.msra.mxu0 0.0
    %2496 = vmatprep.subr.mxu0 0.0
    %2497 = vmatpush1.msra.mxu0 0.0
    %2498 = vmatprep.subr.mxu0 0.0
    %2499 = vmatpush1.msra.mxu0 0.0
    %2500 = vmatprep.subr.mxu0 0.0
    %2501 = vmatpush1.msra.mxu0 0.0
    %2502 = vmatprep.subr.mxu0 0.0
    %2503 = vmatpush1.msra.mxu0 0.0
    %2504 = vmatprep.subr.mxu0 0.0
    %2505 = vmatpush1.msra.mxu0 0.0
    %2506 = vmatprep.subr.mxu0 0.0
    %2507 = vmatpush1.msra.mxu0 0.0
    %2508 = vmatprep.subr.mxu0 0.0
    %2509 = vmatpush1.msra.mxu0 0.0
    %2510 = vmatprep.subr.mxu0 0.0
    %2511 = vmatpush1.msra.mxu0 0.0
    %2512 = vmatprep.subr.mxu0 0.0
    %2513 = vmatpush1.msra.mxu0 0.0
    %2514 = vmatprep.subr.mxu0 0.0
    %2515 = vmatpush1.msra.mxu0 0.0
    %2516 = vmatprep.subr.mxu0 0.0
    %2517 = vmatpush1.msra.mxu0 0.0
    %2518 = vmatprep.subr.mxu0 0.0
    %2519 = vmatpush1.msra.mxu0 0.0
    %2520 = vmatprep.subr.mxu0 0.0
    %2521 = vmatpush1.msra.mxu0 0.0
    %2522 = vmatprep.subr.mxu0 0.0
    %2523 = vmatpush1.msra.mxu0 0.0
    %2524 = vmatprep.subr.mxu0 0.0
    %2525 = vmatpush1.msra.mxu0 0.0
    %2526 = vmatprep.mubr.f32.mxu0 0.0
    %2527 = vmatmul.mubr.f32.gmra.mrb[0].mxu0 %v2431
    %v2528 = vpop.f32.mrb[0].mxu0
    %v2529 = vadd.f32 %v2460, %v2528
    %v2530 = vpop.f32.mrb[0].mxu0
    %2531 = vmatprep.mubr.f32.mxu0 0.0
    %2532 = vmatmul.mubr.f32.gmra.mrb[0].mxu0 %v2432
    %v2533 = vpop.f32.mrb[0].mxu0
    %v2534 = vadd.f32 %v2460, %v2533
    %v2535 = vpop.f32.mrb[0].mxu0
    %2536 = vmatprep.mubr.f32.mxu0 0.0
    %2537 = vmatmul.mubr.f32.gmra.mrb[0].mxu0 %v2433
    %v2538 = vpop.f32.mrb[0].mxu0
    %v2539 = vadd.f32 %v2460, %v2538
    %v2540 = vpop.f32.mrb[0].mxu0
    %2541 = vmatprep.mubr.f32.mxu0 0.0
    %2542 = vmatmul.mubr.f32.gmra.mrb[0].mxu0 %v2434
    %v2543 = vpop.f32.mrb[0].mxu0
    %v2544 = vadd.f32 %v2460, %v2543
    %v2545 = vpop.f32.mrb[0].mxu0
    %2546 = vmatprep.mubr.f32.mxu0 0.0
    %2547 = vmatmul.mubr.f32.gmra.mrb[0].mxu0 %v2435
    %v2548 = vpop.f32.mrb[0].mxu0
    %v2549 = vadd.f32 %v2460, %v2548
    %v2550 = vpop.f32.mrb[0].mxu0
    %2551 = vmatprep.mubr.f32.mxu0 0.0
    %2552 = vmatmul.mubr.f32.gmra.mrb[0].mxu0 %v2436
    %v2553 = vpop.f32.mrb[0].mxu0
    %v2554 = vadd.f32 %v2460, %v2553
    %v2555 = vpop.f32.mrb[0].mxu0
    %2556 = vmatprep.mubr.f32.mxu0 0.0
    %2557 = vmatmul.mubr.f32.gmra.mrb[0].mxu0 %v2437
    %v2558 = vpop.f32.mrb[0].mxu0
    %v2559 = vadd.f32 %v2460, %v2558
    %v2560 = vpop.f32.mrb[0].mxu0
    %2561 = vmatprep.mubr.f32.mxu0 0.0
    %2562 = vmatmul.mubr.f32.gmra.mrb[0].mxu0 %v2438
    %v2563 = vpop.f32.mrb[0].mxu0
    %v2564 = vadd.f32 %v2460, %v2563
    %v2565 = vpop.f32.mrb[0].mxu0
    %2566 = vdwg.mxu0
    %2567 = vst [vmem:[#allocation21] sm:$0xff] %v2529
    %2568 = vst [vmem:[#allocation21 + $0x8] sm:$0xff] %v2534
    %2569 = vst [vmem:[#allocation21 + $0x10] sm:$0xff] %v2539
    %2570 = vst [vmem:[#allocation21 + $0x18] sm:$0xff] %v2544
    %2571 = vst [vmem:[#allocation21 + $0x20] sm:$0xff] %v2549
    %2572 = vst [vmem:[#allocation21 + $0x28] sm:$0xff] %v2554
    %2573 = vst [vmem:[#allocation21 + $0x30] sm:$0xff] %v2559
    %2574 = vst [vmem:[#allocation21 + $0x38] sm:$0xff] %v2564
    // Predicated region
    $region146: #{tpu_custom_call.1} parent=1 // pred_check
      _
    $region147: #{tpu_custom_call.1} parent=1 // pred_check_branch
      %2576 = sbr.rel (0) target = $region149
    $region148: #{tpu_custom_call.1} parent=1 // pred_region
      %s2578 = ssub.s32 1024, 1024
      %2579 = vsyncadd [#allocation6], %s2578
      %s2580 = sshll.u32 [#allocation21], 4
      %s2581 = int_to_ptr.vmem [resolvable:$true] %s2580
      %2586 = dma.vmem_to_hbm [thread:$0]  %s2581, 1024, %s19, [#allocation6], 128, 128, 8
    $region149: #{tpu_custom_call.1} parent=1 // pred_fallthru
      _
    // Predicated region
    $region150: #{tpu_custom_call.1} parent=1 // pred_check
      _
    $region151: #{tpu_custom_call.1} parent=1 // pred_check_branch
      %2588 = sbr.rel (0) target = $region153
    $region152: #{tpu_custom_call.1} parent=1 // pred_region
      %2589 = dma.done [#allocation6], 1024
    $region153: #{tpu_custom_call.1} parent=1 // pred_fallthru
      _
    %2590 = vsyncpa [#allocation5], 1
    %2591 = vsyncpa [#allocation8], 1
    %2592 = vsyncpa [#allocation11], 1
    %2593 = vsyncpa [#allocation14], 1
    %2594 = vsyncpa [#allocation17], 1
    %2595 = vsyncpa [#allocation20], 1
    %2596 = vsyncpa [#allocation6], 1

</llo_original>
